<compile_context>
chip_gen: v7x
topology: tpu7x:2x2x1
jax: 0.10.0
libtpu: 0.0.40
codegen_flags: <defaults>
</compile_context>

<pallas_src>
import functools
import numpy as np

import jax
import jax.numpy as jnp
from jax import lax
from jax.experimental import pallas as pl
from jax.experimental.pallas import tpu as pltpu


# ----------------------------------------------------------------------------
# Exact (erf-based) GELU via Abramowitz & Stegun 7.1.26 (max abs err ~1.5e-7);
# uses only exp/mul/add/where, which lower on the TPU VPU/EUP.
# ----------------------------------------------------------------------------
def _erf(x):
    a1, a2, a3, a4, a5 = 0.254829592, -0.284496736, 1.421413741, -1.453152027, 1.061405429
    p = 0.3275911
    ax = jnp.abs(x)
    t = 1.0 / (1.0 + p * ax)
    poly = t * (a1 + t * (a2 + t * (a3 + t * (a4 + t * a5))))
    y = 1.0 - poly * jnp.exp(-ax * ax)
    return jnp.where(x < 0.0, -y, y)


def _gelu(x):
    return 0.5 * x * (1.0 + _erf(x * 0.7071067811865476))


# ----------------------------------------------------------------------------
# Bilinear x2 interpolation matrix (align_corners=True) along one spatial axis.
# ----------------------------------------------------------------------------
def _interp_matrix(n_in, n_out):
    out_idx = np.arange(n_out)
    src = out_idx * (n_in - 1) / (n_out - 1) if n_out > 1 else np.zeros(n_out)
    lo = np.clip(np.floor(src).astype(np.int64), 0, n_in - 1)
    hi = np.minimum(lo + 1, n_in - 1)
    frac = (src - lo).astype(np.float32)
    a = np.zeros((n_out, n_in), np.float32)
    a[out_idx, lo] += (1.0 - frac)
    a[out_idx, hi] += frac
    return a


# ----------------------------------------------------------------------------
# One fused kernel per sample: bilinear upsample + channel-concat +
# DoubleConv(residual) + DoubleConv.  Activations live as (C, H*W) with the
# flattened spatial index on the 128-lane axis; every 3x3 conv is an im2col
# build into a bf16 VMEM scratch plus a single bf16 MXU matmul (f32 acc).
# ----------------------------------------------------------------------------
_TAPS = [(dy, dx) for dy in (-1, 0, 1) for dx in (-1, 0, 1)]


def _fused_up_kernel(skip_ref, xlo_ref, upmat_ref,
                     w1_ref, g1_ref, b1_ref, w2_ref, g2_ref, b2_ref,
                     w3_ref, g3_ref, b3_ref, w4_ref, g4_ref, b4_ref,
                     o_ref, xcat_ref, pad_ref, patch_ref,
                     *, h, w, c_skip, c_in, c_mid, c_out):
    hw = h * w
    halo = w + 1                       # left/right zero pad wide enough for any 3x3 tap shift

    # ---- x_cat = concat([skip, upsample(x_lo)]) assembled in VMEM ------------
    # Upsample fused as one lane-dense MXU matmul: (c_x, hw_lo) @ (hw_lo, hw).
    xcat_ref[0:c_skip, :] = skip_ref[0]
    xcat_ref[c_skip:c_in, :] = jnp.dot(xlo_ref[0], upmat_ref[...],
                                       preferred_element_type=jnp.float32)
    x_cat = xcat_ref[...]                                   # (c_in, hw) f32

    # ---- zero halo strips (interior [halo:halo+hw] is rewritten by every conv).
    # Intentionally NOT gated on program_id(0)==0: scratch is per-core under megacore,
    # so the core owning grid step 1 would otherwise read uninitialized halos.
    zstrip = jnp.zeros((c_in, halo), jnp.float32)
    pad_ref[:, 0:halo] = zstrip
    pad_ref[:, halo + hw:halo + hw + halo] = zstrip

    # ---- column-validity masks: spatial is flattened row-major on lanes, so a
    #      dx shift wraps across image rows unless masked ----------------------
    col = lax.broadcasted_iota(jnp.int32, (1, hw), 1) % w
    ok = {-1: col >= 1, 1: col <= (w - 2)}

    def conv3x3(x, w_ref):
        # x: (cin, hw) f32; w_ref: (cout, 9*cin) bf16 -> (cout, hw) f32, one MXU matmul.
        cin = x.shape[0]
        pad_ref[0:cin, halo:halo + hw] = x
        # TODO(synk): on v5e (1 vst slot) keep the centre tap out of patch_ref (second
        # small dot) or use pltpu.roll + dy masks to drop pad_ref maintenance entirely.
        for t_idx, (dy, dx) in enumerate(_TAPS):
            s = halo + dy * w + dx
            slab = pad_ref[0:cin, s:s + hw]                 # shifted neighbourhood
            if dx != 0:
                slab = jnp.where(ok[dx], slab, 0.0)
            patch_ref[t_idx * cin:(t_idx + 1) * cin, :] = slab.astype(jnp.bfloat16)
        return jnp.dot(w_ref[...], patch_ref[0:9 * cin, :],
                       preferred_element_type=jnp.float32)

    def group_norm(x, g_ref, b_ref):
        # GroupNorm(num_groups=1): two-pass (centered) statistics over all (C, H, W).
        n = x.shape[0] * x.shape[1]
        mu = jnp.sum(x) / n
        xc = x - mu
        var = jnp.sum(xc * xc) / n
        return xc * lax.rsqrt(var + 1e-5) * g_ref[...] + b_ref[...]

    # ---- DoubleConv(c_in, c_in, residual=True) --------------------------------
    t1 = conv3x3(x_cat, w1_ref)
    t1 = _gelu(group_norm(t1, g1_ref, b1_ref))
    t1 = conv3x3(t1, w2_ref)
    t1 = group_norm(t1, g2_ref, b2_ref)
    x1 = _gelu(x_cat + t1)

    # ---- DoubleConv(c_in, c_out, mid=c_in // 2) --------------------------------
    t2 = conv3x3(x1, w3_ref)
    t2 = _gelu(group_norm(t2, g3_ref, b3_ref))
    t2 = conv3x3(t2, w4_ref)
    t2 = group_norm(t2, g4_ref, b4_ref)

    o_ref[0] = t2                                            # lane-dense (c_out, hw) store


def _pack_conv_weight(w_oihw):
    # (cout, cin, 3, 3) OIHW -> (cout, 9*cin) bf16, column index = (ky*3+kx)*cin + c.
    cout, cin = w_oihw.shape[0], w_oihw.shape[1]
    return (jnp.transpose(w_oihw, (0, 2, 3, 1))
            .reshape(cout, 9 * cin).astype(jnp.bfloat16))


def _gn_param(v):
    return v.astype(jnp.float32).reshape(-1, 1)


def fused_up_call(skip_flat, xlo_flat, upmat, p, h, w):
    b, c_skip, hw = skip_flat.shape
    c_x, hw_lo = xlo_flat.shape[1], xlo_flat.shape[2]
    c_in = c_skip + c_x
    c_out, c_mid = p["w4"].shape[0], p["w4"].shape[1]
    assert hw == h * w and hw_lo == (h // 2) * (w // 2)

    weights = [
        _pack_conv_weight(p["w1"]), _gn_param(p["g1"]), _gn_param(p["b1"]),
        _pack_conv_weight(p["w2"]), _gn_param(p["g2"]), _gn_param(p["b2"]),
        _pack_conv_weight(p["w3"]), _gn_param(p["g3"]), _gn_param(p["b3"]),
        _pack_conv_weight(p["w4"]), _gn_param(p["g4"]), _gn_param(p["b4"]),
    ]

    def const_spec(a):
        nd = a.ndim
        return pl.BlockSpec(a.shape, lambda i, nd=nd: (0,) * nd)

    kernel = functools.partial(
        _fused_up_kernel, h=h, w=w,
        c_skip=c_skip, c_in=c_in, c_mid=c_mid, c_out=c_out)

    # Advisory cost estimate so XLA schedules neighbouring ops around the custom call.
    flops = b * (
        2 * c_x * hw_lo * hw                 # fused bilinear upsample matmul
        + 2 * c_in * 9 * c_in * hw           # conv1
        + 2 * c_in * 9 * c_in * hw           # conv2
        + 2 * c_mid * 9 * c_in * hw          # conv3
        + 2 * c_out * 9 * c_mid * hw)        # conv4
    transcendentals = b * (2 * c_in + c_mid) * hw            # one exp per GELU element
    bytes_accessed = int(
        skip_flat.size * 4 + xlo_flat.size * 4 + upmat.size * 4
        + sum(int(a.size) * a.dtype.itemsize for a in weights)
        + b * c_out * hw * 4)
    cost = pl.CostEstimate(flops=int(flops),
                           transcendentals=int(transcendentals),
                           bytes_accessed=bytes_accessed)

    # TODO(synk): for production shapes, add a grid axis over hw chunks (one-row halo),
    # pick per-generation tile sizes and raise vmem_limit_bytes via CompilerParams.
    return pl.pallas_call(
        kernel,
        out_shape=jax.ShapeDtypeStruct((b, c_out, hw), jnp.float32),
        grid=(b,),
        in_specs=[
            pl.BlockSpec((1, c_skip, hw), lambda i: (i, 0, 0)),
            pl.BlockSpec((1, c_x, hw_lo), lambda i: (i, 0, 0)),
            const_spec(upmat),
        ] + [const_spec(a) for a in weights],
        out_specs=pl.BlockSpec((1, c_out, hw), lambda i: (i, 0, 0)),
        scratch_shapes=[
            pltpu.VMEM((c_in, hw), jnp.float32),                    # x_cat
            pltpu.VMEM((c_in, hw + 2 * (w + 1)), jnp.float32),      # halo-padded rows
            pltpu.VMEM((9 * c_in, hw), jnp.bfloat16),               # im2col patches (bf16)
        ],
        compiler_params=pltpu.CompilerParams(dimension_semantics=("parallel",)),
        cost_estimate=cost,
    )(skip_flat, xlo_flat, upmat, *weights)


# ----------------------------------------------------------------------------
# Public wrapper: NCHW in / NCHW out.  (C, H*W) is just flattened NCHW, so the
# wrapper only does free reshapes - no transposes, no HBM concat / upsample pass.
# ----------------------------------------------------------------------------
def up_forward(x, skip_x, t, params):
    del t  # the reference Up.forward computes emb_layer(t) but discards it, returning x only.
    b, c_x, h_lo, w_lo = x.shape
    _, c_skip, h, w = skip_x.shape
    assert h == 2 * h_lo and w == 2 * w_lo

    # kron(Ah, Aw)^T maps a flattened low-res image to its flattened x2 bilinear
    # upsample (align_corners=True); applied inside the kernel as one matmul.
    ah = _interp_matrix(h_lo, h)                              # (h, h_lo)
    aw = _interp_matrix(w_lo, w)                              # (w, w_lo)
    upmat = jnp.asarray(np.kron(ah, aw).T)                    # (h_lo*w_lo, h*w)

    # TODO(synk): if the surrounding model runs bf16, keep these bf16 and upcast in VMEM.
    xlo_flat = x.astype(jnp.float32).reshape(b, c_x, h_lo * w_lo)
    skip_flat = skip_x.astype(jnp.float32).reshape(b, c_skip, h * w)

    out_flat = fused_up_call(skip_flat, xlo_flat, upmat, params, h, w)
    return out_flat.reshape(b, out_flat.shape[1], h, w)


# ----------------------------------------------------------------------------
# Pure-JAX reference at matched precision (bf16 conv operands, f32 accumulation)
# for the correctness check.
# ----------------------------------------------------------------------------
def ref_forward(x, skip_x, p):
    _, _, h_lo, w_lo = x.shape
    ah = jnp.asarray(_interp_matrix(h_lo, 2 * h_lo))
    aw = jnp.asarray(_interp_matrix(w_lo, 2 * w_lo))
    x_up = jnp.einsum("ih,jw,bchw->bcij", ah, aw, x,
                      precision=lax.Precision.HIGHEST)
    xc = jnp.concatenate([skip_x, x_up], axis=1)

    def conv(v, wt):
        return lax.conv_general_dilated(
            v.astype(jnp.bfloat16), wt.astype(jnp.bfloat16), (1, 1), "SAME",
            dimension_numbers=("NCHW", "OIHW", "NCHW"),
            preferred_element_type=jnp.float32)

    def gn(v, g, bb):
        mu = v.mean(axis=(1, 2, 3), keepdims=True)
        var = jnp.square(v - mu).mean(axis=(1, 2, 3), keepdims=True)
        return ((v - mu) * lax.rsqrt(var + 1e-5) * g.reshape(1, -1, 1, 1)
                + bb.reshape(1, -1, 1, 1))

    gelu = lambda v: jax.nn.gelu(v, approximate=False)

    hh = gelu(gn(conv(xc, p["w1"]), p["g1"], p["b1"]))
    hh = gn(conv(hh, p["w2"]), p["g2"], p["b2"])
    x1 = gelu(xc + hh)
    hh = gelu(gn(conv(x1, p["w3"]), p["g3"], p["b3"]))
    hh = gn(conv(hh, p["w4"]), p["g4"], p["b4"])
    return hh


if __name__ == "__main__":
    B = 2
    C_X, C_SKIP = 8, 8
    IN_CH = C_X + C_SKIP          # channels after concat = 16
    MID_CH = IN_CH // 2           # 8
    OUT_CH = 8
    H_LO, W_LO = 8, 8             # x is (B, 8, 8, 8); skip_x is (B, 8, 16, 16)
    H, W = 2 * H_LO, 2 * W_LO
    EMB = 32

    ks = jax.random.split(jax.random.PRNGKey(0), 16)
    x = jax.random.normal(ks[0], (B, C_X, H_LO, W_LO), jnp.float32)
    skip_x = jax.random.normal(ks[1], (B, C_SKIP, H, W), jnp.float32)
    t = jax.random.normal(ks[2], (B, EMB), jnp.float32)   # dead emb branch input (unused)

    def gn_g(key, n):
        return 1.0 + 0.1 * jax.random.normal(key, (n,), jnp.float32)

    def gn_b(key, n):
        return 0.1 * jax.random.normal(key, (n,), jnp.float32)

    params = {
        "w1": 0.2 * jax.random.normal(ks[3], (IN_CH, IN_CH, 3, 3), jnp.float32),
        "g1": gn_g(ks[7], IN_CH), "b1": gn_b(ks[8], IN_CH),
        "w2": 0.2 * jax.random.normal(ks[4], (IN_CH, IN_CH, 3, 3), jnp.float32),
        "g2": gn_g(ks[9], IN_CH), "b2": gn_b(ks[10], IN_CH),
        "w3": 0.2 * jax.random.normal(ks[5], (MID_CH, IN_CH, 3, 3), jnp.float32),
        "g3": gn_g(ks[11], MID_CH), "b3": gn_b(ks[12], MID_CH),
        "w4": 0.2 * jax.random.normal(ks[6], (OUT_CH, MID_CH, 3, 3), jnp.float32),
        "g4": gn_g(ks[13], OUT_CH), "b4": gn_b(ks[14], OUT_CH),
    }

    out = jax.block_until_ready(up_forward(x, skip_x, t, params))
    assert out.shape == (B, OUT_CH, H, W), out.shape

    ref = jax.block_until_ready(ref_forward(x, skip_x, params))
    max_err = float(jnp.max(jnp.abs(out - ref)))
    # bf16 conv operands (matched in the reference) + f32 accumulation: differences come
    # only from accumulation/reduction order and the erf polynomial -> far below 1e-2.
    assert max_err < 1e-2, f"max abs err {max_err}"

    print("KERNEL_OK")
</pallas_src>

<mosaic_0001>
module attributes {stable_mosaic.version = 11 : i64} {
  func.func @_fused_up_kernel(%arg0: i32, %arg1: memref<1x8x256xf32, #tpu.memory_space<vmem>>, %arg2: memref<1x8x64xf32, #tpu.memory_space<vmem>>, %arg3: memref<64x256xf32, #tpu.memory_space<vmem>>, %arg4: memref<16x144xbf16, #tpu.memory_space<vmem>>, %arg5: memref<16x1xf32, #tpu.memory_space<vmem>>, %arg6: memref<16x1xf32, #tpu.memory_space<vmem>>, %arg7: memref<16x144xbf16, #tpu.memory_space<vmem>>, %arg8: memref<16x1xf32, #tpu.memory_space<vmem>>, %arg9: memref<16x1xf32, #tpu.memory_space<vmem>>, %arg10: memref<8x144xbf16, #tpu.memory_space<vmem>>, %arg11: memref<8x1xf32, #tpu.memory_space<vmem>>, %arg12: memref<8x1xf32, #tpu.memory_space<vmem>>, %arg13: memref<8x72xbf16, #tpu.memory_space<vmem>>, %arg14: memref<8x1xf32, #tpu.memory_space<vmem>>, %arg15: memref<8x1xf32, #tpu.memory_space<vmem>>, %arg16: memref<1x8x256xf32, #tpu.memory_space<vmem>>, %arg17: memref<16x256xf32, #tpu.memory_space<vmem>>, %arg18: memref<16x290xf32, #tpu.memory_space<vmem>>, %arg19: memref<144x256xbf16, #tpu.memory_space<vmem>>) attributes {dimension_semantics = [#tpu.dimension_semantics<parallel>], iteration_bounds = array<i64: 2>, scalar_prefetch = 0 : i64, scratch_operands = 3 : i64, tpu.core_type = #tpu.core_type<tc>, window_params = [{transform_indices = @transform_0, window_bounds = array<i64: 1, 8, 256>}, {transform_indices = @transform_1, window_bounds = array<i64: 1, 8, 64>}, {pipeline_mode = #tpu.pipeline_mode<synchronous>, transform_indices = @transform_2, window_bounds = array<i64: 64, 256>}, {pipeline_mode = #tpu.pipeline_mode<synchronous>, transform_indices = @transform_3, window_bounds = array<i64: 16, 144>}, {pipeline_mode = #tpu.pipeline_mode<synchronous>, transform_indices = @transform_4, window_bounds = array<i64: 16, 1>}, {pipeline_mode = #tpu.pipeline_mode<synchronous>, transform_indices = @transform_5, window_bounds = array<i64: 16, 1>}, {pipeline_mode = #tpu.pipeline_mode<synchronous>, transform_indices = @transform_6, window_bounds = array<i64: 16, 144>}, {pipeline_mode = #tpu.pipeline_mode<synchronous>, transform_indices = @transform_7, window_bounds = array<i64: 16, 1>}, {pipeline_mode = #tpu.pipeline_mode<synchronous>, transform_indices = @transform_8, window_bounds = array<i64: 16, 1>}, {pipeline_mode = #tpu.pipeline_mode<synchronous>, transform_indices = @transform_9, window_bounds = array<i64: 8, 144>}, {pipeline_mode = #tpu.pipeline_mode<synchronous>, transform_indices = @transform_10, window_bounds = array<i64: 8, 1>}, {pipeline_mode = #tpu.pipeline_mode<synchronous>, transform_indices = @transform_11, window_bounds = array<i64: 8, 1>}, {pipeline_mode = #tpu.pipeline_mode<synchronous>, transform_indices = @transform_12, window_bounds = array<i64: 8, 72>}, {pipeline_mode = #tpu.pipeline_mode<synchronous>, transform_indices = @transform_13, window_bounds = array<i64: 8, 1>}, {pipeline_mode = #tpu.pipeline_mode<synchronous>, transform_indices = @transform_14, window_bounds = array<i64: 8, 1>}, {transform_indices = @transform_15, window_bounds = array<i64: 1, 8, 256>}]} {
    %c0 = arith.constant 0 : index
    %c0_0 = arith.constant 0 : index
    %c0_1 = arith.constant 0 : index
    %0 = vector.load %arg1[%c0, %c0_0, %c0_1] : memref<1x8x256xf32, #tpu.memory_space<vmem>>, vector<1x8x256xf32>
    %1 = vector.shape_cast %0 : vector<1x8x256xf32> to vector<8x256xf32>
    %c0_2 = arith.constant 0 : index
    %c0_3 = arith.constant 0 : index
    %2 = vector.load %arg17[%c0_2, %c0_3] : memref<16x256xf32, #tpu.memory_space<vmem>>, vector<8x256xf32>
    tpu.vector_store %arg17[%c0_2, %c0_3], %1 {strides = array<i32>} : memref<16x256xf32, #tpu.memory_space<vmem>>, vector<8x256xf32>,
    %c0_4 = arith.constant 0 : index
    %c0_5 = arith.constant 0 : index
    %c0_6 = arith.constant 0 : index
    %3 = vector.load %arg2[%c0_4, %c0_5, %c0_6] : memref<1x8x64xf32, #tpu.memory_space<vmem>>, vector<1x8x64xf32>
    %4 = vector.shape_cast %3 : vector<1x8x64xf32> to vector<8x64xf32>
    %c0_7 = arith.constant 0 : index
    %c0_8 = arith.constant 0 : index
    %5 = vector.load %arg3[%c0_7, %c0_8] : memref<64x256xf32, #tpu.memory_space<vmem>>, vector<64x256xf32>
    %cst = arith.constant dense<0.000000e+00> : vector<8x256xf32>
    %6 = tpu.matmul %4, %5, %cst {dimension_numbers = #tpu.dot_dimension_numbers<[1], [0], [0], [1], [0, 0, 1, 1], [], []>} : vector<8x64xf32>, vector<64x256xf32>, vector<8x256xf32> -> vector<8x256xf32>
    %c8 = arith.constant 8 : index
    %c0_9 = arith.constant 0 : index
    %7 = vector.load %arg17[%c8, %c0_9] : memref<16x256xf32, #tpu.memory_space<vmem>>, vector<8x256xf32>
    tpu.vector_store %arg17[%c8, %c0_9], %6 {strides = array<i32>} : memref<16x256xf32, #tpu.memory_space<vmem>>, vector<8x256xf32>,
    %c0_10 = arith.constant 0 : index
    %c0_11 = arith.constant 0 : index
    %8 = vector.load %arg17[%c0_10, %c0_11] : memref<16x256xf32, #tpu.memory_space<vmem>>, vector<16x256xf32>
    %cst_12 = arith.constant 0.000000e+00 : f32
    %9 = vector.broadcast %cst_12 : f32 to vector<16x17xf32>
    %c0_13 = arith.constant 0 : index
    %c0_14 = arith.constant 0 : index
    %10 = vector.load %arg18[%c0_13, %c0_14] : memref<16x290xf32, #tpu.memory_space<vmem>>, vector<16x17xf32>
    tpu.vector_store %arg18[%c0_13, %c0_14], %9 {strides = array<i32>} : memref<16x290xf32, #tpu.memory_space<vmem>>, vector<16x17xf32>,
    %c0_15 = arith.constant 0 : index
    %c273 = arith.constant 273 : index
    %11 = vector.load %arg18[%c0_15, %c273] : memref<16x290xf32, #tpu.memory_space<vmem>>, vector<16x17xf32>
    tpu.vector_store %arg18[%c0_15, %c273], %9 {strides = array<i32>} : memref<16x290xf32, #tpu.memory_space<vmem>>, vector<16x17xf32>,
    %12 = tpu.iota {dimensions = array<i32: 1>} : vector<1x256xi32>
    %c16_i32 = arith.constant 16 : i32
    %c0_i32 = arith.constant 0 : i32
    %13 = arith.cmpi eq, %c16_i32, %c0_i32 : i32
    %c1_i32 = arith.constant 1 : i32
    %14 = arith.select %13, %c1_i32, %c16_i32 : i32
    %15 = vector.broadcast %14 : i32 to vector<1x256xi32>
    %16 = arith.remsi %12, %15 : vector<1x256xi32>
    %c0_i32_16 = arith.constant 0 : i32
    %17 = vector.broadcast %c0_i32_16 : i32 to vector<1x256xi32>
    %18 = arith.cmpi ne, %16, %17 : vector<1x256xi32>
    %c0_i32_17 = arith.constant 0 : i32
    %19 = vector.broadcast %c0_i32_17 : i32 to vector<1x256xi32>
    %20 = arith.cmpi slt, %16, %19 : vector<1x256xi32>
    %c0_i32_18 = arith.constant 0 : i32
    %21 = arith.cmpi slt, %14, %c0_i32_18 : i32
    %22 = vector.broadcast %21 : i1 to vector<1x256xi1>
    %23 = vector.broadcast %22 : vector<1x256xi1> to vector<1x256xi1>
    %24 = arith.xori %20, %23 : vector<1x256xi1>
    %25 = arith.andi %24, %18 : vector<1x256xi1>
    %26 = vector.broadcast %14 : i32 to vector<1x256xi32>
    %27 = arith.addi %16, %26 : vector<1x256xi32>
    %28 = arith.select %25, %27, %16 : vector<1x256xi1>, vector<1x256xi32>
    %c1_i32_19 = arith.constant 1 : i32
    %29 = vector.broadcast %c1_i32_19 : i32 to vector<1x256xi32>
    %30 = arith.cmpi sge, %28, %29 : vector<1x256xi32>
    %c14_i32 = arith.constant 14 : i32
    %31 = vector.broadcast %c14_i32 : i32 to vector<1x256xi32>
    %32 = arith.cmpi sle, %28, %31 : vector<1x256xi32>
    %c0_20 = arith.constant 0 : index
    %c17 = arith.constant 17 : index
    %33 = vector.load %arg18[%c0_20, %c17] : memref<16x290xf32, #tpu.memory_space<vmem>>, vector<16x256xf32>
    tpu.vector_store %arg18[%c0_20, %c17], %8 {strides = array<i32>} : memref<16x290xf32, #tpu.memory_space<vmem>>, vector<16x256xf32>,
    %c0_21 = arith.constant 0 : index
    %c0_22 = arith.constant 0 : index
    %34 = vector.load %arg18[%c0_21, %c0_22] : memref<16x290xf32, #tpu.memory_space<vmem>>, vector<16x256xf32>
    %cst_23 = arith.constant 0.000000e+00 : f32
    %35 = vector.shape_cast %30 : vector<1x256xi1> to vector<1x256xi1>
    %36 = vector.broadcast %35 : vector<1x256xi1> to vector<16x256xi1>
    %37 = vector.broadcast %cst_23 : f32 to vector<16x256xf32>
    %38 = arith.select %36, %34, %37 : vector<16x256xi1>, vector<16x256xf32>
    %39 = arith.truncf %38 : vector<16x256xf32> to vector<16x256xbf16>
    %c0_24 = arith.constant 0 : index
    %c0_25 = arith.constant 0 : index
    %40 = vector.load %arg19[%c0_24, %c0_25] : memref<144x256xbf16, #tpu.memory_space<vmem>>, vector<16x256xbf16>
    tpu.vector_store %arg19[%c0_24, %c0_25], %39 {strides = array<i32>} : memref<144x256xbf16, #tpu.memory_space<vmem>>, vector<16x256xbf16>,
    %c0_26 = arith.constant 0 : index
    %c1 = arith.constant 1 : index
    %41 = vector.load %arg18[%c0_26, %c1] : memref<16x290xf32, #tpu.memory_space<vmem>>, vector<16x256xf32>
    %42 = arith.truncf %41 : vector<16x256xf32> to vector<16x256xbf16>
    %c16 = arith.constant 16 : index
    %c0_27 = arith.constant 0 : index
    %43 = vector.load %arg19[%c16, %c0_27] : memref<144x256xbf16, #tpu.memory_space<vmem>>, vector<16x256xbf16>
    tpu.vector_store %arg19[%c16, %c0_27], %42 {strides = array<i32>} : memref<144x256xbf16, #tpu.memory_space<vmem>>, vector<16x256xbf16>,
    %c0_28 = arith.constant 0 : index
    %c2 = arith.constant 2 : index
    %44 = vector.load %arg18[%c0_28, %c2] : memref<16x290xf32, #tpu.memory_space<vmem>>, vector<16x256xf32>
    %cst_29 = arith.constant 0.000000e+00 : f32
    %45 = vector.shape_cast %32 : vector<1x256xi1> to vector<1x256xi1>
    %46 = vector.broadcast %45 : vector<1x256xi1> to vector<16x256xi1>
    %47 = vector.broadcast %cst_29 : f32 to vector<16x256xf32>
    %48 = arith.select %46, %44, %47 : vector<16x256xi1>, vector<16x256xf32>
    %49 = arith.truncf %48 : vector<16x256xf32> to vector<16x256xbf16>
    %c32 = arith.constant 32 : index
    %c0_30 = arith.constant 0 : index
    %50 = vector.load %arg19[%c32, %c0_30] : memref<144x256xbf16, #tpu.memory_space<vmem>>, vector<16x256xbf16>
    tpu.vector_store %arg19[%c32, %c0_30], %49 {strides = array<i32>} : memref<144x256xbf16, #tpu.memory_space<vmem>>, vector<16x256xbf16>,
    %c0_31 = arith.constant 0 : index
    %c16_32 = arith.constant 16 : index
    %51 = vector.load %arg18[%c0_31, %c16_32] : memref<16x290xf32, #tpu.memory_space<vmem>>, vector<16x256xf32>
    %cst_33 = arith.constant 0.000000e+00 : f32
    %52 = vector.shape_cast %30 : vector<1x256xi1> to vector<1x256xi1>
    %53 = vector.broadcast %52 : vector<1x256xi1> to vector<16x256xi1>
    %54 = vector.broadcast %cst_33 : f32 to vector<16x256xf32>
    %55 = arith.select %53, %51, %54 : vector<16x256xi1>, vector<16x256xf32>
    %56 = arith.truncf %55 : vector<16x256xf32> to vector<16x256xbf16>
    %c48 = arith.constant 48 : index
    %c0_34 = arith.constant 0 : index
    %57 = vector.load %arg19[%c48, %c0_34] : memref<144x256xbf16, #tpu.memory_space<vmem>>, vector<16x256xbf16>
    tpu.vector_store %arg19[%c48, %c0_34], %56 {strides = array<i32>} : memref<144x256xbf16, #tpu.memory_space<vmem>>, vector<16x256xbf16>,
    %c0_35 = arith.constant 0 : index
    %c17_36 = arith.constant 17 : index
    %58 = vector.load %arg18[%c0_35, %c17_36] : memref<16x290xf32, #tpu.memory_space<vmem>>, vector<16x256xf32>
    %59 = arith.truncf %58 : vector<16x256xf32> to vector<16x256xbf16>
    %c64 = arith.constant 64 : index
    %c0_37 = arith.constant 0 : index
    %60 = vector.load %arg19[%c64, %c0_37] : memref<144x256xbf16, #tpu.memory_space<vmem>>, vector<16x256xbf16>
    tpu.vector_store %arg19[%c64, %c0_37], %59 {strides = array<i32>} : memref<144x256xbf16, #tpu.memory_space<vmem>>, vector<16x256xbf16>,
    %c0_38 = arith.constant 0 : index
    %c18 = arith.constant 18 : index
    %61 = vector.load %arg18[%c0_38, %c18] : memref<16x290xf32, #tpu.memory_space<vmem>>, vector<16x256xf32>
    %cst_39 = arith.constant 0.000000e+00 : f32
    %62 = vector.shape_cast %32 : vector<1x256xi1> to vector<1x256xi1>
    %63 = vector.broadcast %62 : vector<1x256xi1> to vector<16x256xi1>
    %64 = vector.broadcast %cst_39 : f32 to vector<16x256xf32>
    %65 = arith.select %63, %61, %64 : vector<16x256xi1>, vector<16x256xf32>
    %66 = arith.truncf %65 : vector<16x256xf32> to vector<16x256xbf16>
    %c80 = arith.constant 80 : index
    %c0_40 = arith.constant 0 : index
    %67 = vector.load %arg19[%c80, %c0_40] : memref<144x256xbf16, #tpu.memory_space<vmem>>, vector<16x256xbf16>
    tpu.vector_store %arg19[%c80, %c0_40], %66 {strides = array<i32>} : memref<144x256xbf16, #tpu.memory_space<vmem>>, vector<16x256xbf16>,
    %c0_41 = arith.constant 0 : index
    %c32_42 = arith.constant 32 : index
    %68 = vector.load %arg18[%c0_41, %c32_42] : memref<16x290xf32, #tpu.memory_space<vmem>>, vector<16x256xf32>
    %cst_43 = arith.constant 0.000000e+00 : f32
    %69 = vector.shape_cast %30 : vector<1x256xi1> to vector<1x256xi1>
    %70 = vector.broadcast %69 : vector<1x256xi1> to vector<16x256xi1>
    %71 = vector.broadcast %cst_43 : f32 to vector<16x256xf32>
    %72 = arith.select %70, %68, %71 : vector<16x256xi1>, vector<16x256xf32>
    %73 = arith.truncf %72 : vector<16x256xf32> to vector<16x256xbf16>
    %c96 = arith.constant 96 : index
    %c0_44 = arith.constant 0 : index
    %74 = vector.load %arg19[%c96, %c0_44] : memref<144x256xbf16, #tpu.memory_space<vmem>>, vector<16x256xbf16>
    tpu.vector_store %arg19[%c96, %c0_44], %73 {strides = array<i32>} : memref<144x256xbf16, #tpu.memory_space<vmem>>, vector<16x256xbf16>,
    %c0_45 = arith.constant 0 : index
    %c33 = arith.constant 33 : index
    %75 = vector.load %arg18[%c0_45, %c33] : memref<16x290xf32, #tpu.memory_space<vmem>>, vector<16x256xf32>
    %76 = arith.truncf %75 : vector<16x256xf32> to vector<16x256xbf16>
    %c112 = arith.constant 112 : index
    %c0_46 = arith.constant 0 : index
    %77 = vector.load %arg19[%c112, %c0_46] : memref<144x256xbf16, #tpu.memory_space<vmem>>, vector<16x256xbf16>
    tpu.vector_store %arg19[%c112, %c0_46], %76 {strides = array<i32>} : memref<144x256xbf16, #tpu.memory_space<vmem>>, vector<16x256xbf16>,
    %c0_47 = arith.constant 0 : index
    %c34 = arith.constant 34 : index
    %78 = vector.load %arg18[%c0_47, %c34] : memref<16x290xf32, #tpu.memory_space<vmem>>, vector<16x256xf32>
    %cst_48 = arith.constant 0.000000e+00 : f32
    %79 = vector.shape_cast %32 : vector<1x256xi1> to vector<1x256xi1>
    %80 = vector.broadcast %79 : vector<1x256xi1> to vector<16x256xi1>
    %81 = vector.broadcast %cst_48 : f32 to vector<16x256xf32>
    %82 = arith.select %80, %78, %81 : vector<16x256xi1>, vector<16x256xf32>
    %83 = arith.truncf %82 : vector<16x256xf32> to vector<16x256xbf16>
    %c128 = arith.constant 128 : index
    %c0_49 = arith.constant 0 : index
    %84 = vector.load %arg19[%c128, %c0_49] : memref<144x256xbf16, #tpu.memory_space<vmem>>, vector<16x256xbf16>
    tpu.vector_store %arg19[%c128, %c0_49], %83 {strides = array<i32>} : memref<144x256xbf16, #tpu.memory_space<vmem>>, vector<16x256xbf16>,
    %c0_50 = arith.constant 0 : index
    %c0_51 = arith.constant 0 : index
    %85 = vector.load %arg4[%c0_50, %c0_51] : memref<16x144xbf16, #tpu.memory_space<vmem>>, vector<16x144xbf16>
    %c0_52 = arith.constant 0 : index
    %c0_53 = arith.constant 0 : index
    %86 = vector.load %arg19[%c0_52, %c0_53] : memref<144x256xbf16, #tpu.memory_space<vmem>>, vector<144x256xbf16>
    %cst_54 = arith.constant dense<0.000000e+00> : vector<16x256xf32>
    %87 = tpu.matmul %85, %86, %cst_54 {dimension_numbers = #tpu.dot_dimension_numbers<[1], [0], [0], [1], [0, 0, 1, 1], [], []>} : vector<16x144xbf16>, vector<144x256xbf16>, vector<16x256xf32> -> vector<16x256xf32>
    %88 = vector.shape_cast %87 : vector<16x256xf32> to vector<1x16x256xf32>
    %cst_55 = arith.constant dense<0.000000e+00> : vector<1xf32>
    %89 = vector.multi_reduction <add>, %88, %cst_55 [1, 2] : vector<1x16x256xf32> to vector<1xf32>
    %90 = vector.shape_cast %89 : vector<1xf32> to vector<1x1x1xf32>
    %91 = vector.extract %90[0, 0, 0] : f32 from vector<1x1x1xf32>
    %cst_56 = arith.constant 4.096000e+03 : f32
    %92 = arith.divf %91, %cst_56 : f32
    %93 = vector.broadcast %92 : f32 to vector<16x256xf32>
    %94 = arith.subf %87, %93 : vector<16x256xf32>
    %95 = arith.mulf %94, %94 : vector<16x256xf32>
    %96 = vector.shape_cast %95 : vector<16x256xf32> to vector<1x16x256xf32>
    %cst_57 = arith.constant dense<0.000000e+00> : vector<1xf32>
    %97 = vector.multi_reduction <add>, %96, %cst_57 [1, 2] : vector<1x16x256xf32> to vector<1xf32>
    %98 = vector.shape_cast %97 : vector<1xf32> to vector<1x1x1xf32>
    %99 = vector.extract %98[0, 0, 0] : f32 from vector<1x1x1xf32>
    %cst_58 = arith.constant 4.096000e+03 : f32
    %100 = arith.divf %99, %cst_58 : f32
    %cst_59 = arith.constant 9.99999974E-6 : f32
    %101 = arith.addf %100, %cst_59 : f32
    %102 = math.rsqrt %101 : f32
    %103 = vector.broadcast %102 : f32 to vector<16x256xf32>
    %104 = arith.mulf %94, %103 : vector<16x256xf32>
    %c0_60 = arith.constant 0 : index
    %c0_61 = arith.constant 0 : index
    %105 = vector.load %arg5[%c0_60, %c0_61] : memref<16x1xf32, #tpu.memory_space<vmem>>, vector<16x1xf32>
    %106 = vector.broadcast %105 : vector<16x1xf32> to vector<16x256xf32>
    %107 = arith.mulf %104, %106 : vector<16x256xf32>
    %c0_62 = arith.constant 0 : index
    %c0_63 = arith.constant 0 : index
    %108 = vector.load %arg6[%c0_62, %c0_63] : memref<16x1xf32, #tpu.memory_space<vmem>>, vector<16x1xf32>
    %109 = vector.broadcast %108 : vector<16x1xf32> to vector<16x256xf32>
    %110 = arith.addf %107, %109 : vector<16x256xf32>
    %cst_64 = arith.constant 5.000000e-01 : f32
    %111 = vector.broadcast %cst_64 : f32 to vector<16x256xf32>
    %112 = arith.mulf %111, %110 : vector<16x256xf32>
    %cst_65 = arith.constant 0.707106769 : f32
    %113 = vector.broadcast %cst_65 : f32 to vector<16x256xf32>
    %114 = arith.mulf %110, %113 : vector<16x256xf32>
    %115 = math.absf %114 : vector<16x256xf32>
    %cst_66 = arith.constant 0.327591091 : f32
    %116 = vector.broadcast %cst_66 : f32 to vector<16x256xf32>
    %117 = arith.mulf %116, %115 : vector<16x256xf32>
    %cst_67 = arith.constant 1.000000e+00 : f32
    %118 = vector.broadcast %cst_67 : f32 to vector<16x256xf32>
    %119 = arith.addf %118, %117 : vector<16x256xf32>
    %cst_68 = arith.constant 1.000000e+00 : f32
    %120 = vector.broadcast %cst_68 : f32 to vector<16x256xf32>
    %121 = arith.divf %120, %119 : vector<16x256xf32>
    %cst_69 = arith.constant 1.06140542 : f32
    %122 = vector.broadcast %cst_69 : f32 to vector<16x256xf32>
    %123 = arith.mulf %121, %122 : vector<16x256xf32>
    %cst_70 = arith.constant -1.45315206 : f32
    %124 = vector.broadcast %cst_70 : f32 to vector<16x256xf32>
    %125 = arith.addf %124, %123 : vector<16x256xf32>
    %126 = arith.mulf %121, %125 : vector<16x256xf32>
    %cst_71 = arith.constant 1.42141378 : f32
    %127 = vector.broadcast %cst_71 : f32 to vector<16x256xf32>
    %128 = arith.addf %127, %126 : vector<16x256xf32>
    %129 = arith.mulf %121, %128 : vector<16x256xf32>
    %cst_72 = arith.constant -0.284496725 : f32
    %130 = vector.broadcast %cst_72 : f32 to vector<16x256xf32>
    %131 = arith.addf %130, %129 : vector<16x256xf32>
    %132 = arith.mulf %121, %131 : vector<16x256xf32>
    %cst_73 = arith.constant 0.254829586 : f32
    %133 = vector.broadcast %cst_73 : f32 to vector<16x256xf32>
    %134 = arith.addf %133, %132 : vector<16x256xf32>
    %135 = arith.mulf %121, %134 : vector<16x256xf32>
    %cst_74 = arith.constant 0.000000e+00 : f32
    %136 = vector.broadcast %cst_74 : f32 to vector<16x256xf32>
    %137 = arith.subf %136, %115 : vector<16x256xf32>
    %138 = arith.mulf %137, %115 : vector<16x256xf32>
    %139 = math.exp %138 : vector<16x256xf32>
    %140 = arith.mulf %135, %139 : vector<16x256xf32>
    %cst_75 = arith.constant 1.000000e+00 : f32
    %141 = vector.broadcast %cst_75 : f32 to vector<16x256xf32>
    %142 = arith.subf %141, %140 : vector<16x256xf32>
    %cst_76 = arith.constant 0.000000e+00 : f32
    %143 = vector.broadcast %cst_76 : f32 to vector<16x256xf32>
    %144 = arith.cmpf olt, %114, %143 : vector<16x256xf32>
    %cst_77 = arith.constant 0.000000e+00 : f32
    %145 = vector.broadcast %cst_77 : f32 to vector<16x256xf32>
    %146 = arith.subf %145, %142 : vector<16x256xf32>
    %147 = arith.select %144, %146, %142 : vector<16x256xi1>, vector<16x256xf32>
    %cst_78 = arith.constant 1.000000e+00 : f32
    %148 = vector.broadcast %cst_78 : f32 to vector<16x256xf32>
    %149 = arith.addf %148, %147 : vector<16x256xf32>
    %150 = arith.mulf %112, %149 : vector<16x256xf32>
    %c0_79 = arith.constant 0 : index
    %c17_80 = arith.constant 17 : index
    %151 = vector.load %arg18[%c0_79, %c17_80] : memref<16x290xf32, #tpu.memory_space<vmem>>, vector<16x256xf32>
    tpu.vector_store %arg18[%c0_79, %c17_80], %150 {strides = array<i32>} : memref<16x290xf32, #tpu.memory_space<vmem>>, vector<16x256xf32>,
    %c0_81 = arith.constant 0 : index
    %c0_82 = arith.constant 0 : index
    %152 = vector.load %arg18[%c0_81, %c0_82] : memref<16x290xf32, #tpu.memory_space<vmem>>, vector<16x256xf32>
    %cst_83 = arith.constant 0.000000e+00 : f32
    %153 = vector.shape_cast %30 : vector<1x256xi1> to vector<1x256xi1>
    %154 = vector.broadcast %153 : vector<1x256xi1> to vector<16x256xi1>
    %155 = vector.broadcast %cst_83 : f32 to vector<16x256xf32>
    %156 = arith.select %154, %152, %155 : vector<16x256xi1>, vector<16x256xf32>
    %157 = arith.truncf %156 : vector<16x256xf32> to vector<16x256xbf16>
    %c0_84 = arith.constant 0 : index
    %c0_85 = arith.constant 0 : index
    %158 = vector.load %arg19[%c0_84, %c0_85] : memref<144x256xbf16, #tpu.memory_space<vmem>>, vector<16x256xbf16>
    tpu.vector_store %arg19[%c0_84, %c0_85], %157 {strides = array<i32>} : memref<144x256xbf16, #tpu.memory_space<vmem>>, vector<16x256xbf16>,
    %c0_86 = arith.constant 0 : index
    %c1_87 = arith.constant 1 : index
    %159 = vector.load %arg18[%c0_86, %c1_87] : memref<16x290xf32, #tpu.memory_space<vmem>>, vector<16x256xf32>
    %160 = arith.truncf %159 : vector<16x256xf32> to vector<16x256xbf16>
    %c16_88 = arith.constant 16 : index
    %c0_89 = arith.constant 0 : index
    %161 = vector.load %arg19[%c16_88, %c0_89] : memref<144x256xbf16, #tpu.memory_space<vmem>>, vector<16x256xbf16>
    tpu.vector_store %arg19[%c16_88, %c0_89], %160 {strides = array<i32>} : memref<144x256xbf16, #tpu.memory_space<vmem>>, vector<16x256xbf16>,
    %c0_90 = arith.constant 0 : index
    %c2_91 = arith.constant 2 : index
    %162 = vector.load %arg18[%c0_90, %c2_91] : memref<16x290xf32, #tpu.memory_space<vmem>>, vector<16x256xf32>
    %cst_92 = arith.constant 0.000000e+00 : f32
    %163 = vector.shape_cast %32 : vector<1x256xi1> to vector<1x256xi1>
    %164 = vector.broadcast %163 : vector<1x256xi1> to vector<16x256xi1>
    %165 = vector.broadcast %cst_92 : f32 to vector<16x256xf32>
    %166 = arith.select %164, %162, %165 : vector<16x256xi1>, vector<16x256xf32>
    %167 = arith.truncf %166 : vector<16x256xf32> to vector<16x256xbf16>
    %c32_93 = arith.constant 32 : index
    %c0_94 = arith.constant 0 : index
    %168 = vector.load %arg19[%c32_93, %c0_94] : memref<144x256xbf16, #tpu.memory_space<vmem>>, vector<16x256xbf16>
    tpu.vector_store %arg19[%c32_93, %c0_94], %167 {strides = array<i32>} : memref<144x256xbf16, #tpu.memory_space<vmem>>, vector<16x256xbf16>,
    %c0_95 = arith.constant 0 : index
    %c16_96 = arith.constant 16 : index
    %169 = vector.load %arg18[%c0_95, %c16_96] : memref<16x290xf32, #tpu.memory_space<vmem>>, vector<16x256xf32>
    %cst_97 = arith.constant 0.000000e+00 : f32
    %170 = vector.shape_cast %30 : vector<1x256xi1> to vector<1x256xi1>
    %171 = vector.broadcast %170 : vector<1x256xi1> to vector<16x256xi1>
    %172 = vector.broadcast %cst_97 : f32 to vector<16x256xf32>
    %173 = arith.select %171, %169, %172 : vector<16x256xi1>, vector<16x256xf32>
    %174 = arith.truncf %173 : vector<16x256xf32> to vector<16x256xbf16>
    %c48_98 = arith.constant 48 : index
    %c0_99 = arith.constant 0 : index
    %175 = vector.load %arg19[%c48_98, %c0_99] : memref<144x256xbf16, #tpu.memory_space<vmem>>, vector<16x256xbf16>
    tpu.vector_store %arg19[%c48_98, %c0_99], %174 {strides = array<i32>} : memref<144x256xbf16, #tpu.memory_space<vmem>>, vector<16x256xbf16>,
    %c0_100 = arith.constant 0 : index
    %c17_101 = arith.constant 17 : index
    %176 = vector.load %arg18[%c0_100, %c17_101] : memref<16x290xf32, #tpu.memory_space<vmem>>, vector<16x256xf32>
    %177 = arith.truncf %176 : vector<16x256xf32> to vector<16x256xbf16>
    %c64_102 = arith.constant 64 : index
    %c0_103 = arith.constant 0 : index
    %178 = vector.load %arg19[%c64_102, %c0_103] : memref<144x256xbf16, #tpu.memory_space<vmem>>, vector<16x256xbf16>
    tpu.vector_store %arg19[%c64_102, %c0_103], %177 {strides = array<i32>} : memref<144x256xbf16, #tpu.memory_space<vmem>>, vector<16x256xbf16>,
    %c0_104 = arith.constant 0 : index
    %c18_105 = arith.constant 18 : index
    %179 = vector.load %arg18[%c0_104, %c18_105] : memref<16x290xf32, #tpu.memory_space<vmem>>, vector<16x256xf32>
    %cst_106 = arith.constant 0.000000e+00 : f32
    %180 = vector.shape_cast %32 : vector<1x256xi1> to vector<1x256xi1>
    %181 = vector.broadcast %180 : vector<1x256xi1> to vector<16x256xi1>
    %182 = vector.broadcast %cst_106 : f32 to vector<16x256xf32>
    %183 = arith.select %181, %179, %182 : vector<16x256xi1>, vector<16x256xf32>
    %184 = arith.truncf %183 : vector<16x256xf32> to vector<16x256xbf16>
    %c80_107 = arith.constant 80 : index
    %c0_108 = arith.constant 0 : index
    %185 = vector.load %arg19[%c80_107, %c0_108] : memref<144x256xbf16, #tpu.memory_space<vmem>>, vector<16x256xbf16>
    tpu.vector_store %arg19[%c80_107, %c0_108], %184 {strides = array<i32>} : memref<144x256xbf16, #tpu.memory_space<vmem>>, vector<16x256xbf16>,
    %c0_109 = arith.constant 0 : index
    %c32_110 = arith.constant 32 : index
    %186 = vector.load %arg18[%c0_109, %c32_110] : memref<16x290xf32, #tpu.memory_space<vmem>>, vector<16x256xf32>
    %cst_111 = arith.constant 0.000000e+00 : f32
    %187 = vector.shape_cast %30 : vector<1x256xi1> to vector<1x256xi1>
    %188 = vector.broadcast %187 : vector<1x256xi1> to vector<16x256xi1>
    %189 = vector.broadcast %cst_111 : f32 to vector<16x256xf32>
    %190 = arith.select %188, %186, %189 : vector<16x256xi1>, vector<16x256xf32>
    %191 = arith.truncf %190 : vector<16x256xf32> to vector<16x256xbf16>
    %c96_112 = arith.constant 96 : index
    %c0_113 = arith.constant 0 : index
    %192 = vector.load %arg19[%c96_112, %c0_113] : memref<144x256xbf16, #tpu.memory_space<vmem>>, vector<16x256xbf16>
    tpu.vector_store %arg19[%c96_112, %c0_113], %191 {strides = array<i32>} : memref<144x256xbf16, #tpu.memory_space<vmem>>, vector<16x256xbf16>,
    %c0_114 = arith.constant 0 : index
    %c33_115 = arith.constant 33 : index
    %193 = vector.load %arg18[%c0_114, %c33_115] : memref<16x290xf32, #tpu.memory_space<vmem>>, vector<16x256xf32>
    %194 = arith.truncf %193 : vector<16x256xf32> to vector<16x256xbf16>
    %c112_116 = arith.constant 112 : index
    %c0_117 = arith.constant 0 : index
    %195 = vector.load %arg19[%c112_116, %c0_117] : memref<144x256xbf16, #tpu.memory_space<vmem>>, vector<16x256xbf16>
    tpu.vector_store %arg19[%c112_116, %c0_117], %194 {strides = array<i32>} : memref<144x256xbf16, #tpu.memory_space<vmem>>, vector<16x256xbf16>,
    %c0_118 = arith.constant 0 : index
    %c34_119 = arith.constant 34 : index
    %196 = vector.load %arg18[%c0_118, %c34_119] : memref<16x290xf32, #tpu.memory_space<vmem>>, vector<16x256xf32>
    %cst_120 = arith.constant 0.000000e+00 : f32
    %197 = vector.shape_cast %32 : vector<1x256xi1> to vector<1x256xi1>
    %198 = vector.broadcast %197 : vector<1x256xi1> to vector<16x256xi1>
    %199 = vector.broadcast %cst_120 : f32 to vector<16x256xf32>
    %200 = arith.select %198, %196, %199 : vector<16x256xi1>, vector<16x256xf32>
    %201 = arith.truncf %200 : vector<16x256xf32> to vector<16x256xbf16>
    %c128_121 = arith.constant 128 : index
    %c0_122 = arith.constant 0 : index
    %202 = vector.load %arg19[%c128_121, %c0_122] : memref<144x256xbf16, #tpu.memory_space<vmem>>, vector<16x256xbf16>
    tpu.vector_store %arg19[%c128_121, %c0_122], %201 {strides = array<i32>} : memref<144x256xbf16, #tpu.memory_space<vmem>>, vector<16x256xbf16>,
    %c0_123 = arith.constant 0 : index
    %c0_124 = arith.constant 0 : index
    %203 = vector.load %arg7[%c0_123, %c0_124] : memref<16x144xbf16, #tpu.memory_space<vmem>>, vector<16x144xbf16>
    %c0_125 = arith.constant 0 : index
    %c0_126 = arith.constant 0 : index
    %204 = vector.load %arg19[%c0_125, %c0_126] : memref<144x256xbf16, #tpu.memory_space<vmem>>, vector<144x256xbf16>
    %cst_127 = arith.constant dense<0.000000e+00> : vector<16x256xf32>
    %205 = tpu.matmul %203, %204, %cst_127 {dimension_numbers = #tpu.dot_dimension_numbers<[1], [0], [0], [1], [0, 0, 1, 1], [], []>} : vector<16x144xbf16>, vector<144x256xbf16>, vector<16x256xf32> -> vector<16x256xf32>
    %206 = vector.shape_cast %205 : vector<16x256xf32> to vector<1x16x256xf32>
    %cst_128 = arith.constant dense<0.000000e+00> : vector<1xf32>
    %207 = vector.multi_reduction <add>, %206, %cst_128 [1, 2] : vector<1x16x256xf32> to vector<1xf32>
    %208 = vector.shape_cast %207 : vector<1xf32> to vector<1x1x1xf32>
    %209 = vector.extract %208[0, 0, 0] : f32 from vector<1x1x1xf32>
    %cst_129 = arith.constant 4.096000e+03 : f32
    %210 = arith.divf %209, %cst_129 : f32
    %211 = vector.broadcast %210 : f32 to vector<16x256xf32>
    %212 = arith.subf %205, %211 : vector<16x256xf32>
    %213 = arith.mulf %212, %212 : vector<16x256xf32>
    %214 = vector.shape_cast %213 : vector<16x256xf32> to vector<1x16x256xf32>
    %cst_130 = arith.constant dense<0.000000e+00> : vector<1xf32>
    %215 = vector.multi_reduction <add>, %214, %cst_130 [1, 2] : vector<1x16x256xf32> to vector<1xf32>
    %216 = vector.shape_cast %215 : vector<1xf32> to vector<1x1x1xf32>
    %217 = vector.extract %216[0, 0, 0] : f32 from vector<1x1x1xf32>
    %cst_131 = arith.constant 4.096000e+03 : f32
    %218 = arith.divf %217, %cst_131 : f32
    %cst_132 = arith.constant 9.99999974E-6 : f32
    %219 = arith.addf %218, %cst_132 : f32
    %220 = math.rsqrt %219 : f32
    %221 = vector.broadcast %220 : f32 to vector<16x256xf32>
    %222 = arith.mulf %212, %221 : vector<16x256xf32>
    %c0_133 = arith.constant 0 : index
    %c0_134 = arith.constant 0 : index
    %223 = vector.load %arg8[%c0_133, %c0_134] : memref<16x1xf32, #tpu.memory_space<vmem>>, vector<16x1xf32>
    %224 = vector.broadcast %223 : vector<16x1xf32> to vector<16x256xf32>
    %225 = arith.mulf %222, %224 : vector<16x256xf32>
    %c0_135 = arith.constant 0 : index
    %c0_136 = arith.constant 0 : index
    %226 = vector.load %arg9[%c0_135, %c0_136] : memref<16x1xf32, #tpu.memory_space<vmem>>, vector<16x1xf32>
    %227 = vector.broadcast %226 : vector<16x1xf32> to vector<16x256xf32>
    %228 = arith.addf %225, %227 : vector<16x256xf32>
    %229 = arith.addf %8, %228 : vector<16x256xf32>
    %cst_137 = arith.constant 5.000000e-01 : f32
    %230 = vector.broadcast %cst_137 : f32 to vector<16x256xf32>
    %231 = arith.mulf %230, %229 : vector<16x256xf32>
    %cst_138 = arith.constant 0.707106769 : f32
    %232 = vector.broadcast %cst_138 : f32 to vector<16x256xf32>
    %233 = arith.mulf %229, %232 : vector<16x256xf32>
    %234 = math.absf %233 : vector<16x256xf32>
    %cst_139 = arith.constant 0.327591091 : f32
    %235 = vector.broadcast %cst_139 : f32 to vector<16x256xf32>
    %236 = arith.mulf %235, %234 : vector<16x256xf32>
    %cst_140 = arith.constant 1.000000e+00 : f32
    %237 = vector.broadcast %cst_140 : f32 to vector<16x256xf32>
    %238 = arith.addf %237, %236 : vector<16x256xf32>
    %cst_141 = arith.constant 1.000000e+00 : f32
    %239 = vector.broadcast %cst_141 : f32 to vector<16x256xf32>
    %240 = arith.divf %239, %238 : vector<16x256xf32>
    %cst_142 = arith.constant 1.06140542 : f32
    %241 = vector.broadcast %cst_142 : f32 to vector<16x256xf32>
    %242 = arith.mulf %240, %241 : vector<16x256xf32>
    %cst_143 = arith.constant -1.45315206 : f32
    %243 = vector.broadcast %cst_143 : f32 to vector<16x256xf32>
    %244 = arith.addf %243, %242 : vector<16x256xf32>
    %245 = arith.mulf %240, %244 : vector<16x256xf32>
    %cst_144 = arith.constant 1.42141378 : f32
    %246 = vector.broadcast %cst_144 : f32 to vector<16x256xf32>
    %247 = arith.addf %246, %245 : vector<16x256xf32>
    %248 = arith.mulf %240, %247 : vector<16x256xf32>
    %cst_145 = arith.constant -0.284496725 : f32
    %249 = vector.broadcast %cst_145 : f32 to vector<16x256xf32>
    %250 = arith.addf %249, %248 : vector<16x256xf32>
    %251 = arith.mulf %240, %250 : vector<16x256xf32>
    %cst_146 = arith.constant 0.254829586 : f32
    %252 = vector.broadcast %cst_146 : f32 to vector<16x256xf32>
    %253 = arith.addf %252, %251 : vector<16x256xf32>
    %254 = arith.mulf %240, %253 : vector<16x256xf32>
    %cst_147 = arith.constant 0.000000e+00 : f32
    %255 = vector.broadcast %cst_147 : f32 to vector<16x256xf32>
    %256 = arith.subf %255, %234 : vector<16x256xf32>
    %257 = arith.mulf %256, %234 : vector<16x256xf32>
    %258 = math.exp %257 : vector<16x256xf32>
    %259 = arith.mulf %254, %258 : vector<16x256xf32>
    %cst_148 = arith.constant 1.000000e+00 : f32
    %260 = vector.broadcast %cst_148 : f32 to vector<16x256xf32>
    %261 = arith.subf %260, %259 : vector<16x256xf32>
    %cst_149 = arith.constant 0.000000e+00 : f32
    %262 = vector.broadcast %cst_149 : f32 to vector<16x256xf32>
    %263 = arith.cmpf olt, %233, %262 : vector<16x256xf32>
    %cst_150 = arith.constant 0.000000e+00 : f32
    %264 = vector.broadcast %cst_150 : f32 to vector<16x256xf32>
    %265 = arith.subf %264, %261 : vector<16x256xf32>
    %266 = arith.select %263, %265, %261 : vector<16x256xi1>, vector<16x256xf32>
    %cst_151 = arith.constant 1.000000e+00 : f32
    %267 = vector.broadcast %cst_151 : f32 to vector<16x256xf32>
    %268 = arith.addf %267, %266 : vector<16x256xf32>
    %269 = arith.mulf %231, %268 : vector<16x256xf32>
    %c0_152 = arith.constant 0 : index
    %c17_153 = arith.constant 17 : index
    %270 = vector.load %arg18[%c0_152, %c17_153] : memref<16x290xf32, #tpu.memory_space<vmem>>, vector<16x256xf32>
    tpu.vector_store %arg18[%c0_152, %c17_153], %269 {strides = array<i32>} : memref<16x290xf32, #tpu.memory_space<vmem>>, vector<16x256xf32>,
    %c0_154 = arith.constant 0 : index
    %c0_155 = arith.constant 0 : index
    %271 = vector.load %arg18[%c0_154, %c0_155] : memref<16x290xf32, #tpu.memory_space<vmem>>, vector<16x256xf32>
    %cst_156 = arith.constant 0.000000e+00 : f32
    %272 = vector.shape_cast %30 : vector<1x256xi1> to vector<1x256xi1>
    %273 = vector.broadcast %272 : vector<1x256xi1> to vector<16x256xi1>
    %274 = vector.broadcast %cst_156 : f32 to vector<16x256xf32>
    %275 = arith.select %273, %271, %274 : vector<16x256xi1>, vector<16x256xf32>
    %276 = arith.truncf %275 : vector<16x256xf32> to vector<16x256xbf16>
    %c0_157 = arith.constant 0 : index
    %c0_158 = arith.constant 0 : index
    %277 = vector.load %arg19[%c0_157, %c0_158] : memref<144x256xbf16, #tpu.memory_space<vmem>>, vector<16x256xbf16>
    tpu.vector_store %arg19[%c0_157, %c0_158], %276 {strides = array<i32>} : memref<144x256xbf16, #tpu.memory_space<vmem>>, vector<16x256xbf16>,
    %c0_159 = arith.constant 0 : index
    %c1_160 = arith.constant 1 : index
    %278 = vector.load %arg18[%c0_159, %c1_160] : memref<16x290xf32, #tpu.memory_space<vmem>>, vector<16x256xf32>
    %279 = arith.truncf %278 : vector<16x256xf32> to vector<16x256xbf16>
    %c16_161 = arith.constant 16 : index
    %c0_162 = arith.constant 0 : index
    %280 = vector.load %arg19[%c16_161, %c0_162] : memref<144x256xbf16, #tpu.memory_space<vmem>>, vector<16x256xbf16>
    tpu.vector_store %arg19[%c16_161, %c0_162], %279 {strides = array<i32>} : memref<144x256xbf16, #tpu.memory_space<vmem>>, vector<16x256xbf16>,
    %c0_163 = arith.constant 0 : index
    %c2_164 = arith.constant 2 : index
    %281 = vector.load %arg18[%c0_163, %c2_164] : memref<16x290xf32, #tpu.memory_space<vmem>>, vector<16x256xf32>
    %cst_165 = arith.constant 0.000000e+00 : f32
    %282 = vector.shape_cast %32 : vector<1x256xi1> to vector<1x256xi1>
    %283 = vector.broadcast %282 : vector<1x256xi1> to vector<16x256xi1>
    %284 = vector.broadcast %cst_165 : f32 to vector<16x256xf32>
    %285 = arith.select %283, %281, %284 : vector<16x256xi1>, vector<16x256xf32>
    %286 = arith.truncf %285 : vector<16x256xf32> to vector<16x256xbf16>
    %c32_166 = arith.constant 32 : index
    %c0_167 = arith.constant 0 : index
    %287 = vector.load %arg19[%c32_166, %c0_167] : memref<144x256xbf16, #tpu.memory_space<vmem>>, vector<16x256xbf16>
    tpu.vector_store %arg19[%c32_166, %c0_167], %286 {strides = array<i32>} : memref<144x256xbf16, #tpu.memory_space<vmem>>, vector<16x256xbf16>,
    %c0_168 = arith.constant 0 : index
    %c16_169 = arith.constant 16 : index
    %288 = vector.load %arg18[%c0_168, %c16_169] : memref<16x290xf32, #tpu.memory_space<vmem>>, vector<16x256xf32>
    %cst_170 = arith.constant 0.000000e+00 : f32
    %289 = vector.shape_cast %30 : vector<1x256xi1> to vector<1x256xi1>
    %290 = vector.broadcast %289 : vector<1x256xi1> to vector<16x256xi1>
    %291 = vector.broadcast %cst_170 : f32 to vector<16x256xf32>
    %292 = arith.select %290, %288, %291 : vector<16x256xi1>, vector<16x256xf32>
    %293 = arith.truncf %292 : vector<16x256xf32> to vector<16x256xbf16>
    %c48_171 = arith.constant 48 : index
    %c0_172 = arith.constant 0 : index
    %294 = vector.load %arg19[%c48_171, %c0_172] : memref<144x256xbf16, #tpu.memory_space<vmem>>, vector<16x256xbf16>
    tpu.vector_store %arg19[%c48_171, %c0_172], %293 {strides = array<i32>} : memref<144x256xbf16, #tpu.memory_space<vmem>>, vector<16x256xbf16>,
    %c0_173 = arith.constant 0 : index
    %c17_174 = arith.constant 17 : index
    %295 = vector.load %arg18[%c0_173, %c17_174] : memref<16x290xf32, #tpu.memory_space<vmem>>, vector<16x256xf32>
    %296 = arith.truncf %295 : vector<16x256xf32> to vector<16x256xbf16>
    %c64_175 = arith.constant 64 : index
    %c0_176 = arith.constant 0 : index
    %297 = vector.load %arg19[%c64_175, %c0_176] : memref<144x256xbf16, #tpu.memory_space<vmem>>, vector<16x256xbf16>
    tpu.vector_store %arg19[%c64_175, %c0_176], %296 {strides = array<i32>} : memref<144x256xbf16, #tpu.memory_space<vmem>>, vector<16x256xbf16>,
    %c0_177 = arith.constant 0 : index
    %c18_178 = arith.constant 18 : index
    %298 = vector.load %arg18[%c0_177, %c18_178] : memref<16x290xf32, #tpu.memory_space<vmem>>, vector<16x256xf32>
    %cst_179 = arith.constant 0.000000e+00 : f32
    %299 = vector.shape_cast %32 : vector<1x256xi1> to vector<1x256xi1>
    %300 = vector.broadcast %299 : vector<1x256xi1> to vector<16x256xi1>
    %301 = vector.broadcast %cst_179 : f32 to vector<16x256xf32>
    %302 = arith.select %300, %298, %301 : vector<16x256xi1>, vector<16x256xf32>
    %303 = arith.truncf %302 : vector<16x256xf32> to vector<16x256xbf16>
    %c80_180 = arith.constant 80 : index
    %c0_181 = arith.constant 0 : index
    %304 = vector.load %arg19[%c80_180, %c0_181] : memref<144x256xbf16, #tpu.memory_space<vmem>>, vector<16x256xbf16>
    tpu.vector_store %arg19[%c80_180, %c0_181], %303 {strides = array<i32>} : memref<144x256xbf16, #tpu.memory_space<vmem>>, vector<16x256xbf16>,
    %c0_182 = arith.constant 0 : index
    %c32_183 = arith.constant 32 : index
    %305 = vector.load %arg18[%c0_182, %c32_183] : memref<16x290xf32, #tpu.memory_space<vmem>>, vector<16x256xf32>
    %cst_184 = arith.constant 0.000000e+00 : f32
    %306 = vector.shape_cast %30 : vector<1x256xi1> to vector<1x256xi1>
    %307 = vector.broadcast %306 : vector<1x256xi1> to vector<16x256xi1>
    %308 = vector.broadcast %cst_184 : f32 to vector<16x256xf32>
    %309 = arith.select %307, %305, %308 : vector<16x256xi1>, vector<16x256xf32>
    %310 = arith.truncf %309 : vector<16x256xf32> to vector<16x256xbf16>
    %c96_185 = arith.constant 96 : index
    %c0_186 = arith.constant 0 : index
    %311 = vector.load %arg19[%c96_185, %c0_186] : memref<144x256xbf16, #tpu.memory_space<vmem>>, vector<16x256xbf16>
    tpu.vector_store %arg19[%c96_185, %c0_186], %310 {strides = array<i32>} : memref<144x256xbf16, #tpu.memory_space<vmem>>, vector<16x256xbf16>,
    %c0_187 = arith.constant 0 : index
    %c33_188 = arith.constant 33 : index
    %312 = vector.load %arg18[%c0_187, %c33_188] : memref<16x290xf32, #tpu.memory_space<vmem>>, vector<16x256xf32>
    %313 = arith.truncf %312 : vector<16x256xf32> to vector<16x256xbf16>
    %c112_189 = arith.constant 112 : index
    %c0_190 = arith.constant 0 : index
    %314 = vector.load %arg19[%c112_189, %c0_190] : memref<144x256xbf16, #tpu.memory_space<vmem>>, vector<16x256xbf16>
    tpu.vector_store %arg19[%c112_189, %c0_190], %313 {strides = array<i32>} : memref<144x256xbf16, #tpu.memory_space<vmem>>, vector<16x256xbf16>,
    %c0_191 = arith.constant 0 : index
    %c34_192 = arith.constant 34 : index
    %315 = vector.load %arg18[%c0_191, %c34_192] : memref<16x290xf32, #tpu.memory_space<vmem>>, vector<16x256xf32>
    %cst_193 = arith.constant 0.000000e+00 : f32
    %316 = vector.shape_cast %32 : vector<1x256xi1> to vector<1x256xi1>
    %317 = vector.broadcast %316 : vector<1x256xi1> to vector<16x256xi1>
    %318 = vector.broadcast %cst_193 : f32 to vector<16x256xf32>
    %319 = arith.select %317, %315, %318 : vector<16x256xi1>, vector<16x256xf32>
    %320 = arith.truncf %319 : vector<16x256xf32> to vector<16x256xbf16>
    %c128_194 = arith.constant 128 : index
    %c0_195 = arith.constant 0 : index
    %321 = vector.load %arg19[%c128_194, %c0_195] : memref<144x256xbf16, #tpu.memory_space<vmem>>, vector<16x256xbf16>
    tpu.vector_store %arg19[%c128_194, %c0_195], %320 {strides = array<i32>} : memref<144x256xbf16, #tpu.memory_space<vmem>>, vector<16x256xbf16>,
    %c0_196 = arith.constant 0 : index
    %c0_197 = arith.constant 0 : index
    %322 = vector.load %arg10[%c0_196, %c0_197] : memref<8x144xbf16, #tpu.memory_space<vmem>>, vector<8x144xbf16>
    %c0_198 = arith.constant 0 : index
    %c0_199 = arith.constant 0 : index
    %323 = vector.load %arg19[%c0_198, %c0_199] : memref<144x256xbf16, #tpu.memory_space<vmem>>, vector<144x256xbf16>
    %cst_200 = arith.constant dense<0.000000e+00> : vector<8x256xf32>
    %324 = tpu.matmul %322, %323, %cst_200 {dimension_numbers = #tpu.dot_dimension_numbers<[1], [0], [0], [1], [0, 0, 1, 1], [], []>} : vector<8x144xbf16>, vector<144x256xbf16>, vector<8x256xf32> -> vector<8x256xf32>
    %325 = vector.shape_cast %324 : vector<8x256xf32> to vector<1x8x256xf32>
    %cst_201 = arith.constant dense<0.000000e+00> : vector<1xf32>
    %326 = vector.multi_reduction <add>, %325, %cst_201 [1, 2] : vector<1x8x256xf32> to vector<1xf32>
    %327 = vector.shape_cast %326 : vector<1xf32> to vector<1x1x1xf32>
    %328 = vector.extract %327[0, 0, 0] : f32 from vector<1x1x1xf32>
    %cst_202 = arith.constant 2.048000e+03 : f32
    %329 = arith.divf %328, %cst_202 : f32
    %330 = vector.broadcast %329 : f32 to vector<8x256xf32>
    %331 = arith.subf %324, %330 : vector<8x256xf32>
    %332 = arith.mulf %331, %331 : vector<8x256xf32>
    %333 = vector.shape_cast %332 : vector<8x256xf32> to vector<1x8x256xf32>
    %cst_203 = arith.constant dense<0.000000e+00> : vector<1xf32>
    %334 = vector.multi_reduction <add>, %333, %cst_203 [1, 2] : vector<1x8x256xf32> to vector<1xf32>
    %335 = vector.shape_cast %334 : vector<1xf32> to vector<1x1x1xf32>
    %336 = vector.extract %335[0, 0, 0] : f32 from vector<1x1x1xf32>
    %cst_204 = arith.constant 2.048000e+03 : f32
    %337 = arith.divf %336, %cst_204 : f32
    %cst_205 = arith.constant 9.99999974E-6 : f32
    %338 = arith.addf %337, %cst_205 : f32
    %339 = math.rsqrt %338 : f32
    %340 = vector.broadcast %339 : f32 to vector<8x256xf32>
    %341 = arith.mulf %331, %340 : vector<8x256xf32>
    %c0_206 = arith.constant 0 : index
    %c0_207 = arith.constant 0 : index
    %342 = vector.load %arg11[%c0_206, %c0_207] : memref<8x1xf32, #tpu.memory_space<vmem>>, vector<8x1xf32>
    %343 = vector.broadcast %342 : vector<8x1xf32> to vector<8x256xf32>
    %344 = arith.mulf %341, %343 : vector<8x256xf32>
    %c0_208 = arith.constant 0 : index
    %c0_209 = arith.constant 0 : index
    %345 = vector.load %arg12[%c0_208, %c0_209] : memref<8x1xf32, #tpu.memory_space<vmem>>, vector<8x1xf32>
    %346 = vector.broadcast %345 : vector<8x1xf32> to vector<8x256xf32>
    %347 = arith.addf %344, %346 : vector<8x256xf32>
    %cst_210 = arith.constant 5.000000e-01 : f32
    %348 = vector.broadcast %cst_210 : f32 to vector<8x256xf32>
    %349 = arith.mulf %348, %347 : vector<8x256xf32>
    %cst_211 = arith.constant 0.707106769 : f32
    %350 = vector.broadcast %cst_211 : f32 to vector<8x256xf32>
    %351 = arith.mulf %347, %350 : vector<8x256xf32>
    %352 = math.absf %351 : vector<8x256xf32>
    %cst_212 = arith.constant 0.327591091 : f32
    %353 = vector.broadcast %cst_212 : f32 to vector<8x256xf32>
    %354 = arith.mulf %353, %352 : vector<8x256xf32>
    %cst_213 = arith.constant 1.000000e+00 : f32
    %355 = vector.broadcast %cst_213 : f32 to vector<8x256xf32>
    %356 = arith.addf %355, %354 : vector<8x256xf32>
    %cst_214 = arith.constant 1.000000e+00 : f32
    %357 = vector.broadcast %cst_214 : f32 to vector<8x256xf32>
    %358 = arith.divf %357, %356 : vector<8x256xf32>
    %cst_215 = arith.constant 1.06140542 : f32
    %359 = vector.broadcast %cst_215 : f32 to vector<8x256xf32>
    %360 = arith.mulf %358, %359 : vector<8x256xf32>
    %cst_216 = arith.constant -1.45315206 : f32
    %361 = vector.broadcast %cst_216 : f32 to vector<8x256xf32>
    %362 = arith.addf %361, %360 : vector<8x256xf32>
    %363 = arith.mulf %358, %362 : vector<8x256xf32>
    %cst_217 = arith.constant 1.42141378 : f32
    %364 = vector.broadcast %cst_217 : f32 to vector<8x256xf32>
    %365 = arith.addf %364, %363 : vector<8x256xf32>
    %366 = arith.mulf %358, %365 : vector<8x256xf32>
    %cst_218 = arith.constant -0.284496725 : f32
    %367 = vector.broadcast %cst_218 : f32 to vector<8x256xf32>
    %368 = arith.addf %367, %366 : vector<8x256xf32>
    %369 = arith.mulf %358, %368 : vector<8x256xf32>
    %cst_219 = arith.constant 0.254829586 : f32
    %370 = vector.broadcast %cst_219 : f32 to vector<8x256xf32>
    %371 = arith.addf %370, %369 : vector<8x256xf32>
    %372 = arith.mulf %358, %371 : vector<8x256xf32>
    %cst_220 = arith.constant 0.000000e+00 : f32
    %373 = vector.broadcast %cst_220 : f32 to vector<8x256xf32>
    %374 = arith.subf %373, %352 : vector<8x256xf32>
    %375 = arith.mulf %374, %352 : vector<8x256xf32>
    %376 = math.exp %375 : vector<8x256xf32>
    %377 = arith.mulf %372, %376 : vector<8x256xf32>
    %cst_221 = arith.constant 1.000000e+00 : f32
    %378 = vector.broadcast %cst_221 : f32 to vector<8x256xf32>
    %379 = arith.subf %378, %377 : vector<8x256xf32>
    %cst_222 = arith.constant 0.000000e+00 : f32
    %380 = vector.broadcast %cst_222 : f32 to vector<8x256xf32>
    %381 = arith.cmpf olt, %351, %380 : vector<8x256xf32>
    %cst_223 = arith.constant 0.000000e+00 : f32
    %382 = vector.broadcast %cst_223 : f32 to vector<8x256xf32>
    %383 = arith.subf %382, %379 : vector<8x256xf32>
    %384 = arith.select %381, %383, %379 : vector<8x256xi1>, vector<8x256xf32>
    %cst_224 = arith.constant 1.000000e+00 : f32
    %385 = vector.broadcast %cst_224 : f32 to vector<8x256xf32>
    %386 = arith.addf %385, %384 : vector<8x256xf32>
    %387 = arith.mulf %349, %386 : vector<8x256xf32>
    %c0_225 = arith.constant 0 : index
    %c17_226 = arith.constant 17 : index
    %388 = vector.load %arg18[%c0_225, %c17_226] : memref<16x290xf32, #tpu.memory_space<vmem>>, vector<8x256xf32>
    tpu.vector_store %arg18[%c0_225, %c17_226], %387 {strides = array<i32>} : memref<16x290xf32, #tpu.memory_space<vmem>>, vector<8x256xf32>,
    %c0_227 = arith.constant 0 : index
    %c0_228 = arith.constant 0 : index
    %389 = vector.load %arg18[%c0_227, %c0_228] : memref<16x290xf32, #tpu.memory_space<vmem>>, vector<8x256xf32>
    %cst_229 = arith.constant 0.000000e+00 : f32
    %390 = vector.shape_cast %30 : vector<1x256xi1> to vector<1x256xi1>
    %391 = vector.broadcast %390 : vector<1x256xi1> to vector<8x256xi1>
    %392 = vector.broadcast %cst_229 : f32 to vector<8x256xf32>
    %393 = arith.select %391, %389, %392 : vector<8x256xi1>, vector<8x256xf32>
    %394 = arith.truncf %393 : vector<8x256xf32> to vector<8x256xbf16>
    %c0_230 = arith.constant 0 : index
    %c0_231 = arith.constant 0 : index
    %395 = vector.load %arg19[%c0_230, %c0_231] : memref<144x256xbf16, #tpu.memory_space<vmem>>, vector<8x256xbf16>
    tpu.vector_store %arg19[%c0_230, %c0_231], %394 {strides = array<i32>} : memref<144x256xbf16, #tpu.memory_space<vmem>>, vector<8x256xbf16>,
    %c0_232 = arith.constant 0 : index
    %c1_233 = arith.constant 1 : index
    %396 = vector.load %arg18[%c0_232, %c1_233] : memref<16x290xf32, #tpu.memory_space<vmem>>, vector<8x256xf32>
    %397 = arith.truncf %396 : vector<8x256xf32> to vector<8x256xbf16>
    %c8_234 = arith.constant 8 : index
    %c0_235 = arith.constant 0 : index
    %398 = vector.load %arg19[%c8_234, %c0_235] : memref<144x256xbf16, #tpu.memory_space<vmem>>, vector<8x256xbf16>
    tpu.vector_store %arg19[%c8_234, %c0_235], %397 {strides = array<i32>} : memref<144x256xbf16, #tpu.memory_space<vmem>>, vector<8x256xbf16>,
    %c0_236 = arith.constant 0 : index
    %c2_237 = arith.constant 2 : index
    %399 = vector.load %arg18[%c0_236, %c2_237] : memref<16x290xf32, #tpu.memory_space<vmem>>, vector<8x256xf32>
    %cst_238 = arith.constant 0.000000e+00 : f32
    %400 = vector.shape_cast %32 : vector<1x256xi1> to vector<1x256xi1>
    %401 = vector.broadcast %400 : vector<1x256xi1> to vector<8x256xi1>
    %402 = vector.broadcast %cst_238 : f32 to vector<8x256xf32>
    %403 = arith.select %401, %399, %402 : vector<8x256xi1>, vector<8x256xf32>
    %404 = arith.truncf %403 : vector<8x256xf32> to vector<8x256xbf16>
    %c16_239 = arith.constant 16 : index
    %c0_240 = arith.constant 0 : index
    %405 = vector.load %arg19[%c16_239, %c0_240] : memref<144x256xbf16, #tpu.memory_space<vmem>>, vector<8x256xbf16>
    tpu.vector_store %arg19[%c16_239, %c0_240], %404 {strides = array<i32>} : memref<144x256xbf16, #tpu.memory_space<vmem>>, vector<8x256xbf16>,
    %c0_241 = arith.constant 0 : index
    %c16_242 = arith.constant 16 : index
    %406 = vector.load %arg18[%c0_241, %c16_242] : memref<16x290xf32, #tpu.memory_space<vmem>>, vector<8x256xf32>
    %cst_243 = arith.constant 0.000000e+00 : f32
    %407 = vector.shape_cast %30 : vector<1x256xi1> to vector<1x256xi1>
    %408 = vector.broadcast %407 : vector<1x256xi1> to vector<8x256xi1>
    %409 = vector.broadcast %cst_243 : f32 to vector<8x256xf32>
    %410 = arith.select %408, %406, %409 : vector<8x256xi1>, vector<8x256xf32>
    %411 = arith.truncf %410 : vector<8x256xf32> to vector<8x256xbf16>
    %c24 = arith.constant 24 : index
    %c0_244 = arith.constant 0 : index
    %412 = vector.load %arg19[%c24, %c0_244] : memref<144x256xbf16, #tpu.memory_space<vmem>>, vector<8x256xbf16>
    tpu.vector_store %arg19[%c24, %c0_244], %411 {strides = array<i32>} : memref<144x256xbf16, #tpu.memory_space<vmem>>, vector<8x256xbf16>,
    %c0_245 = arith.constant 0 : index
    %c17_246 = arith.constant 17 : index
    %413 = vector.load %arg18[%c0_245, %c17_246] : memref<16x290xf32, #tpu.memory_space<vmem>>, vector<8x256xf32>
    %414 = arith.truncf %413 : vector<8x256xf32> to vector<8x256xbf16>
    %c32_247 = arith.constant 32 : index
    %c0_248 = arith.constant 0 : index
    %415 = vector.load %arg19[%c32_247, %c0_248] : memref<144x256xbf16, #tpu.memory_space<vmem>>, vector<8x256xbf16>
    tpu.vector_store %arg19[%c32_247, %c0_248], %414 {strides = array<i32>} : memref<144x256xbf16, #tpu.memory_space<vmem>>, vector<8x256xbf16>,
    %c0_249 = arith.constant 0 : index
    %c18_250 = arith.constant 18 : index
    %416 = vector.load %arg18[%c0_249, %c18_250] : memref<16x290xf32, #tpu.memory_space<vmem>>, vector<8x256xf32>
    %cst_251 = arith.constant 0.000000e+00 : f32
    %417 = vector.shape_cast %32 : vector<1x256xi1> to vector<1x256xi1>
    %418 = vector.broadcast %417 : vector<1x256xi1> to vector<8x256xi1>
    %419 = vector.broadcast %cst_251 : f32 to vector<8x256xf32>
    %420 = arith.select %418, %416, %419 : vector<8x256xi1>, vector<8x256xf32>
    %421 = arith.truncf %420 : vector<8x256xf32> to vector<8x256xbf16>
    %c40 = arith.constant 40 : index
    %c0_252 = arith.constant 0 : index
    %422 = vector.load %arg19[%c40, %c0_252] : memref<144x256xbf16, #tpu.memory_space<vmem>>, vector<8x256xbf16>
    tpu.vector_store %arg19[%c40, %c0_252], %421 {strides = array<i32>} : memref<144x256xbf16, #tpu.memory_space<vmem>>, vector<8x256xbf16>,
    %c0_253 = arith.constant 0 : index
    %c32_254 = arith.constant 32 : index
    %423 = vector.load %arg18[%c0_253, %c32_254] : memref<16x290xf32, #tpu.memory_space<vmem>>, vector<8x256xf32>
    %cst_255 = arith.constant 0.000000e+00 : f32
    %424 = vector.shape_cast %30 : vector<1x256xi1> to vector<1x256xi1>
    %425 = vector.broadcast %424 : vector<1x256xi1> to vector<8x256xi1>
    %426 = vector.broadcast %cst_255 : f32 to vector<8x256xf32>
    %427 = arith.select %425, %423, %426 : vector<8x256xi1>, vector<8x256xf32>
    %428 = arith.truncf %427 : vector<8x256xf32> to vector<8x256xbf16>
    %c48_256 = arith.constant 48 : index
    %c0_257 = arith.constant 0 : index
    %429 = vector.load %arg19[%c48_256, %c0_257] : memref<144x256xbf16, #tpu.memory_space<vmem>>, vector<8x256xbf16>
    tpu.vector_store %arg19[%c48_256, %c0_257], %428 {strides = array<i32>} : memref<144x256xbf16, #tpu.memory_space<vmem>>, vector<8x256xbf16>,
    %c0_258 = arith.constant 0 : index
    %c33_259 = arith.constant 33 : index
    %430 = vector.load %arg18[%c0_258, %c33_259] : memref<16x290xf32, #tpu.memory_space<vmem>>, vector<8x256xf32>
    %431 = arith.truncf %430 : vector<8x256xf32> to vector<8x256xbf16>
    %c56 = arith.constant 56 : index
    %c0_260 = arith.constant 0 : index
    %432 = vector.load %arg19[%c56, %c0_260] : memref<144x256xbf16, #tpu.memory_space<vmem>>, vector<8x256xbf16>
    tpu.vector_store %arg19[%c56, %c0_260], %431 {strides = array<i32>} : memref<144x256xbf16, #tpu.memory_space<vmem>>, vector<8x256xbf16>,
    %c0_261 = arith.constant 0 : index
    %c34_262 = arith.constant 34 : index
    %433 = vector.load %arg18[%c0_261, %c34_262] : memref<16x290xf32, #tpu.memory_space<vmem>>, vector<8x256xf32>
    %cst_263 = arith.constant 0.000000e+00 : f32
    %434 = vector.shape_cast %32 : vector<1x256xi1> to vector<1x256xi1>
    %435 = vector.broadcast %434 : vector<1x256xi1> to vector<8x256xi1>
    %436 = vector.broadcast %cst_263 : f32 to vector<8x256xf32>
    %437 = arith.select %435, %433, %436 : vector<8x256xi1>, vector<8x256xf32>
    %438 = arith.truncf %437 : vector<8x256xf32> to vector<8x256xbf16>
    %c64_264 = arith.constant 64 : index
    %c0_265 = arith.constant 0 : index
    %439 = vector.load %arg19[%c64_264, %c0_265] : memref<144x256xbf16, #tpu.memory_space<vmem>>, vector<8x256xbf16>
    tpu.vector_store %arg19[%c64_264, %c0_265], %438 {strides = array<i32>} : memref<144x256xbf16, #tpu.memory_space<vmem>>, vector<8x256xbf16>,
    %c0_266 = arith.constant 0 : index
    %c0_267 = arith.constant 0 : index
    %440 = vector.load %arg13[%c0_266, %c0_267] : memref<8x72xbf16, #tpu.memory_space<vmem>>, vector<8x72xbf16>
    %c0_268 = arith.constant 0 : index
    %c0_269 = arith.constant 0 : index
    %441 = vector.load %arg19[%c0_268, %c0_269] : memref<144x256xbf16, #tpu.memory_space<vmem>>, vector<72x256xbf16>
    %cst_270 = arith.constant dense<0.000000e+00> : vector<8x256xf32>
    %442 = tpu.matmul %440, %441, %cst_270 {dimension_numbers = #tpu.dot_dimension_numbers<[1], [0], [0], [1], [0, 0, 1, 1], [], []>} : vector<8x72xbf16>, vector<72x256xbf16>, vector<8x256xf32> -> vector<8x256xf32>
    %443 = vector.shape_cast %442 : vector<8x256xf32> to vector<1x8x256xf32>
    %cst_271 = arith.constant dense<0.000000e+00> : vector<1xf32>
    %444 = vector.multi_reduction <add>, %443, %cst_271 [1, 2] : vector<1x8x256xf32> to vector<1xf32>
    %445 = vector.shape_cast %444 : vector<1xf32> to vector<1x1x1xf32>
    %446 = vector.extract %445[0, 0, 0] : f32 from vector<1x1x1xf32>
    %cst_272 = arith.constant 2.048000e+03 : f32
    %447 = arith.divf %446, %cst_272 : f32
    %448 = vector.broadcast %447 : f32 to vector<8x256xf32>
    %449 = arith.subf %442, %448 : vector<8x256xf32>
    %450 = arith.mulf %449, %449 : vector<8x256xf32>
    %451 = vector.shape_cast %450 : vector<8x256xf32> to vector<1x8x256xf32>
    %cst_273 = arith.constant dense<0.000000e+00> : vector<1xf32>
    %452 = vector.multi_reduction <add>, %451, %cst_273 [1, 2] : vector<1x8x256xf32> to vector<1xf32>
    %453 = vector.shape_cast %452 : vector<1xf32> to vector<1x1x1xf32>
    %454 = vector.extract %453[0, 0, 0] : f32 from vector<1x1x1xf32>
    %cst_274 = arith.constant 2.048000e+03 : f32
    %455 = arith.divf %454, %cst_274 : f32
    %cst_275 = arith.constant 9.99999974E-6 : f32
    %456 = arith.addf %455, %cst_275 : f32
    %457 = math.rsqrt %456 : f32
    %458 = vector.broadcast %457 : f32 to vector<8x256xf32>
    %459 = arith.mulf %449, %458 : vector<8x256xf32>
    %c0_276 = arith.constant 0 : index
    %c0_277 = arith.constant 0 : index
    %460 = vector.load %arg14[%c0_276, %c0_277] : memref<8x1xf32, #tpu.memory_space<vmem>>, vector<8x1xf32>
    %461 = vector.broadcast %460 : vector<8x1xf32> to vector<8x256xf32>
    %462 = arith.mulf %459, %461 : vector<8x256xf32>
    %c0_278 = arith.constant 0 : index
    %c0_279 = arith.constant 0 : index
    %463 = vector.load %arg15[%c0_278, %c0_279] : memref<8x1xf32, #tpu.memory_space<vmem>>, vector<8x1xf32>
    %464 = vector.broadcast %463 : vector<8x1xf32> to vector<8x256xf32>
    %465 = arith.addf %462, %464 : vector<8x256xf32>
    %c0_280 = arith.constant 0 : index
    %c0_281 = arith.constant 0 : index
    %c0_282 = arith.constant 0 : index
    %466 = vector.load %arg16[%c0_280, %c0_281, %c0_282] : memref<1x8x256xf32, #tpu.memory_space<vmem>>, vector<1x8x256xf32>
    %467 = vector.shape_cast %466 : vector<1x8x256xf32> to vector<8x256xf32>
    %468 = vector.shape_cast %465 : vector<8x256xf32> to vector<1x8x256xf32>
    tpu.vector_store %arg16[%c0_280, %c0_281, %c0_282], %468 {strides = array<i32>} : memref<1x8x256xf32, #tpu.memory_space<vmem>>, vector<1x8x256xf32>,
    return
  }
  func.func @transform_0(%arg0: i32) -> (i32, i32, i32) {
    %c0_i32 = arith.constant 0 : i32
    %c0_i32_0 = arith.constant 0 : i32
    %c0_i32_1 = arith.constant 0 : i32
    return %arg0, %c0_i32, %c0_i32_0 : i32, i32, i32
  }
  func.func @transform_1(%arg0: i32) -> (i32, i32, i32) {
    %c0_i32 = arith.constant 0 : i32
    %c0_i32_0 = arith.constant 0 : i32
    %c0_i32_1 = arith.constant 0 : i32
    return %arg0, %c0_i32, %c0_i32_0 : i32, i32, i32
  }
  func.func @transform_2(%arg0: i32) -> (i32, i32) {
    %c0_i32 = arith.constant 0 : i32
    %c0_i32_0 = arith.constant 0 : i32
    %c0_i32_1 = arith.constant 0 : i32
    return %c0_i32, %c0_i32_0 : i32, i32
  }
  func.func @transform_3(%arg0: i32) -> (i32, i32) {
    %c0_i32 = arith.constant 0 : i32
    %c0_i32_0 = arith.constant 0 : i32
    %c0_i32_1 = arith.constant 0 : i32
    return %c0_i32, %c0_i32_0 : i32, i32
  }
  func.func @transform_4(%arg0: i32) -> (i32, i32) {
    %c0_i32 = arith.constant 0 : i32
    %c0_i32_0 = arith.constant 0 : i32
    %c0_i32_1 = arith.constant 0 : i32
    return %c0_i32, %c0_i32_0 : i32, i32
  }
  func.func @transform_5(%arg0: i32) -> (i32, i32) {
    %c0_i32 = arith.constant 0 : i32
    %c0_i32_0 = arith.constant 0 : i32
    %c0_i32_1 = arith.constant 0 : i32
    return %c0_i32, %c0_i32_0 : i32, i32
  }
  func.func @transform_6(%arg0: i32) -> (i32, i32) {
    %c0_i32 = arith.constant 0 : i32
    %c0_i32_0 = arith.constant 0 : i32
    %c0_i32_1 = arith.constant 0 : i32
    return %c0_i32, %c0_i32_0 : i32, i32
  }
  func.func @transform_7(%arg0: i32) -> (i32, i32) {
    %c0_i32 = arith.constant 0 : i32
    %c0_i32_0 = arith.constant 0 : i32
    %c0_i32_1 = arith.constant 0 : i32
    return %c0_i32, %c0_i32_0 : i32, i32
  }
  func.func @transform_8(%arg0: i32) -> (i32, i32) {
    %c0_i32 = arith.constant 0 : i32
    %c0_i32_0 = arith.constant 0 : i32
    %c0_i32_1 = arith.constant 0 : i32
    return %c0_i32, %c0_i32_0 : i32, i32
  }
  func.func @transform_9(%arg0: i32) -> (i32, i32) {
    %c0_i32 = arith.constant 0 : i32
    %c0_i32_0 = arith.constant 0 : i32
    %c0_i32_1 = arith.constant 0 : i32
    return %c0_i32, %c0_i32_0 : i32, i32
  }
  func.func @transform_10(%arg0: i32) -> (i32, i32) {
    %c0_i32 = arith.constant 0 : i32
    %c0_i32_0 = arith.constant 0 : i32
    %c0_i32_1 = arith.constant 0 : i32
    return %c0_i32, %c0_i32_0 : i32, i32
  }
  func.func @transform_11(%arg0: i32) -> (i32, i32) {
    %c0_i32 = arith.constant 0 : i32
    %c0_i32_0 = arith.constant 0 : i32
    %c0_i32_1 = arith.constant 0 : i32
    return %c0_i32, %c0_i32_0 : i32, i32
  }
  func.func @transform_12(%arg0: i32) -> (i32, i32) {
    %c0_i32 = arith.constant 0 : i32
    %c0_i32_0 = arith.constant 0 : i32
    %c0_i32_1 = arith.constant 0 : i32
    return %c0_i32, %c0_i32_0 : i32, i32
  }
  func.func @transform_13(%arg0: i32) -> (i32, i32) {
    %c0_i32 = arith.constant 0 : i32
    %c0_i32_0 = arith.constant 0 : i32
    %c0_i32_1 = arith.constant 0 : i32
    return %c0_i32, %c0_i32_0 : i32, i32
  }
  func.func @transform_14(%arg0: i32) -> (i32, i32) {
    %c0_i32 = arith.constant 0 : i32
    %c0_i32_0 = arith.constant 0 : i32
    %c0_i32_1 = arith.constant 0 : i32
    return %c0_i32, %c0_i32_0 : i32, i32
  }
  func.func @transform_15(%arg0: i32) -> (i32, i32, i32) {
    %c0_i32 = arith.constant 0 : i32
    %c0_i32_0 = arith.constant 0 : i32
    %c0_i32_1 = arith.constant 0 : i32
    return %arg0, %c0_i32, %c0_i32_0 : i32, i32, i32
  }
}

</mosaic_0001>

<llo_original>
// kernel: tpu_custom_call.1
$region0: #{tpu_custom_call.1}
  #allocation0 [shape = 'u32[]', space=smem, size = 0x4, offset = 0x4, fixed_abs, tag = 'smem constant byte address 0x4 - core index']
  #allocation1 [shape = 'u32[144,128]{1,0:T(1,128)}', space=vmem, size = 0x12000, scoped, tag = 'internal scratch']
  #allocation2 [shape = 'f32[16,256]{1,0:T(8,128)}', space=vmem, size = 0x4000, scoped, tag = 'scratch operand']
  #allocation3 [shape = 'f32[16,290]{1,0:T(8,128)}', space=vmem, size = 0x6000, scoped, tag = 'scratch operand']
  #allocation4 [shape = 'bf16[144,256]{1,0:T(16,128)(2,1)}', space=vmem, size = 0x12000, scoped, tag = 'scratch operand']
  %s0 = inlined_call_operand.vmem [shape: f32[2,8,256], index: 0, kind: input, shape index: {}]
  %s1 = inlined_call_operand.vmem [shape: f32[2,8,64], index: 1, kind: input, shape index: {}]
  %s2 = inlined_call_operand.hbm [shape: f32[64,256], index: 2, kind: input, shape index: {}]
  %s3 = inlined_call_operand.vmem [shape: bf16[16,144], index: 3, kind: input, shape index: {}]
  %s4 = inlined_call_operand.vmem [shape: f32[16,1], index: 4, kind: input, shape index: {}]
  %s5 = inlined_call_operand.vmem [shape: f32[16,1], index: 5, kind: input, shape index: {}]
  %s6 = inlined_call_operand.vmem [shape: bf16[16,144], index: 6, kind: input, shape index: {}]
  %s7 = inlined_call_operand.vmem [shape: f32[16,1], index: 7, kind: input, shape index: {}]
  %s8 = inlined_call_operand.vmem [shape: f32[16,1], index: 8, kind: input, shape index: {}]
  %s9 = inlined_call_operand.vmem [shape: bf16[8,144], index: 9, kind: input, shape index: {}]
  %s10 = inlined_call_operand.vmem [shape: f32[8,1], index: 10, kind: input, shape index: {}]
  %s11 = inlined_call_operand.vmem [shape: f32[8,1], index: 11, kind: input, shape index: {}]
  %s12 = inlined_call_operand.vmem [shape: bf16[8,72], index: 12, kind: input, shape index: {}]
  %s13 = inlined_call_operand.vmem [shape: f32[8,1], index: 13, kind: input, shape index: {}]
  %s14 = inlined_call_operand.vmem [shape: f32[8,1], index: 14, kind: input, shape index: {}]
  %s15 = inlined_call_operand.hbm [shape: f32[2,8,256], index: 15, kind: output, shape index: {}]
  %s16 = sld [smem:[#allocation0]]
  $region97: #{tpu_custom_call.1} parent=0
    _
  %s18 = ssub.s32 1, %s16
  %s19 = scalar_select 0, %s18, %s16
  $region1: #{tpu_custom_call.1} parent=0
    #allocation5 [shape = 'u8[65536]{0}', space=vmem, size = 0x10000, scoped, tag = 'input window, operand 2, single buffered']
    #allocation6 [shape = 's32[2]{0}', space=sflag, size = 0x8, scoped, tag = 'scoped memory for tpu_custom_call.1']
    #allocation7 [shape = 's32[2]{0}', space=sflag, size = 0x8, scoped, tag = 'scoped memory for tpu_custom_call.1']
    #allocation8 [shape = 'u8[16384]{0}', space=vmem, size = 0x4000, scoped, tag = 'output window, operand 0']
    %20 = vsyncpa [#allocation6], 0
    %21 = vsyncpa [#allocation7], 0
    %s22 = scalar_lea.sflag [#allocation7], 1
    %23 = vsyncpa %s22, 0
    loop: start=0, step=1, limit=4
    $region2: #{tpu_custom_call.1} parent=1 // loop_pre_header
      _
    $region3: #{tpu_custom_call.1} parent=1 // loop_header
      %s25 = sphi 0, %s29
      %p26 = scmp.ge.s32.totalorder %s25, 4
      %s35 = sphi 0, %s37
      %s38 = sphi 0, %s35
      %s39 = sphi 0, %s38
      %s55 = sphi 0, %s39
      %s61 = sphi 0, %s63
      %s64 = sphi 0, %s61
      %s65 = sphi 0, %s64
      %s81 = sphi 0, %s65
      %s85 = sphi 0, %s85
      %s87 = sphi 0, %s85
      %s88 = sphi 0, %s87
      %s102 = sphi 0, %s88
      %s106 = sphi 0, %s106
      %s108 = sphi 0, %s106
      %s109 = sphi 0, %s108
      %s123 = sphi 0, %s109
      %s127 = sphi 0, %s127
      %s129 = sphi 0, %s127
      %s130 = sphi 0, %s129
      %s144 = sphi 0, %s130
      %s148 = sphi 0, %s148
      %s150 = sphi 0, %s148
      %s151 = sphi 0, %s150
      %s165 = sphi 0, %s151
      %s169 = sphi 0, %s169
      %s171 = sphi 0, %s169
      %s172 = sphi 0, %s171
      %s186 = sphi 0, %s172
      %s190 = sphi 0, %s190
      %s192 = sphi 0, %s190
      %s193 = sphi 0, %s192
      %s207 = sphi 0, %s193
      %s211 = sphi 0, %s211
      %s213 = sphi 0, %s211
      %s214 = sphi 0, %s213
      %s228 = sphi 0, %s214
      %s232 = sphi 0, %s232
      %s234 = sphi 0, %s232
      %s235 = sphi 0, %s234
      %s249 = sphi 0, %s235
      %s253 = sphi 0, %s253
      %s255 = sphi 0, %s253
      %s256 = sphi 0, %s255
      %s270 = sphi 0, %s256
      %s274 = sphi 0, %s274
      %s276 = sphi 0, %s274
      %s277 = sphi 0, %s276
      %s291 = sphi 0, %s277
      %s295 = sphi 0, %s295
      %s297 = sphi 0, %s295
      %s298 = sphi 0, %s297
      %s312 = sphi 0, %s298
      %s316 = sphi 0, %s316
      %s318 = sphi 0, %s316
      %s319 = sphi 0, %s318
      %s333 = sphi 0, %s319
      %s337 = sphi 0, %s337
      %s339 = sphi 0, %s337
      %s340 = sphi 0, %s339
      %s354 = sphi 0, %s340
      %s360 = sphi 0, %s362
      %s363 = sphi 0, %s360
      %s364 = sphi 0, %s363
      %s380 = sphi 0, %s364
    $region4: #{tpu_custom_call.1} parent=1 // loop_header_branch
      %28 = sbr.rel (%p26) target = $region8
    $region5: #{tpu_custom_call.1} parent=1 // loop_body
      %s30 = ssub.s32 %s25, 1
      %s31 = ssub.s32 %s25, 2
      %s32 = sadd.s32 %s25, 1
      %s33 = ssub.s32 %s25, %s32
      %p34 = scmp.eq.s32.totalorder %s33, 0
      %s36 = sadd.s32 %s35, 1
      %s37 = scalar_select %p34, %s35, %s36
      %p40 = pneg %p34
      %p41 = scmp.eq.s32.totalorder %s25, 1
      %p42 = por %p40, %p41
      %p43 = scmp.ne.s32.totalorder %s35, %s38
      %p44 = scmp.eq.s32.totalorder %s25, 0
      %p45 = por %p43, %p44
      %p46 = scmp.ne.s32.totalorder %s35, %s38
      %p47 = scmp.eq.s32.totalorder %s30, 1
      %p48 = por %p46, %p47
      %p49 = scmp.ne.s32.totalorder %s38, %s39
      %p50 = scmp.eq.s32.totalorder %s30, 0
      %p51 = por %p49, %p50
      %p52 = scmp.ne.s32.totalorder %s38, %s39
      %p53 = scmp.eq.s32.totalorder %s31, 1
      %p54 = por %p52, %p53
      %p56 = scmp.ne.s32.totalorder %s39, %s55
      %p57 = scmp.eq.s32.totalorder %s31, 0
      %p58 = por %p56, %p57
      %s59 = ssub.s32 %s25, %s32
      %p60 = scmp.eq.s32.totalorder %s59, 0
      %s62 = sadd.s32 %s61, 1
      %s63 = scalar_select %p60, %s61, %s62
      %p66 = pneg %p60
      %p67 = scmp.eq.s32.totalorder %s25, 1
      %p68 = por %p66, %p67
      %p69 = scmp.ne.s32.totalorder %s61, %s64
      %p70 = scmp.eq.s32.totalorder %s25, 0
      %p71 = por %p69, %p70
      %p72 = scmp.ne.s32.totalorder %s61, %s64
      %p73 = scmp.eq.s32.totalorder %s30, 1
      %p74 = por %p72, %p73
      %p75 = scmp.ne.s32.totalorder %s64, %s65
      %p76 = scmp.eq.s32.totalorder %s30, 0
      %p77 = por %p75, %p76
      %p78 = scmp.ne.s32.totalorder %s64, %s65
      %p79 = scmp.eq.s32.totalorder %s31, 1
      %p80 = por %p78, %p79
      %p82 = scmp.ne.s32.totalorder %s65, %s81
      %p83 = scmp.eq.s32.totalorder %s31, 0
      %p84 = por %p82, %p83
      %s86 = sadd.s32 %s85, 1
      %p89 = scmp.eq.s32.totalorder %s25, 1
      %p90 = scmp.ne.s32.totalorder %s85, %s87
      %p91 = scmp.eq.s32.totalorder %s25, 0
      %p92 = por %p90, %p91
      %p93 = scmp.ne.s32.totalorder %s85, %s87
      %p94 = scmp.eq.s32.totalorder %s30, 1
      %p95 = por %p93, %p94
      %p96 = scmp.ne.s32.totalorder %s87, %s88
      %p97 = scmp.eq.s32.totalorder %s30, 0
      %p98 = por %p96, %p97
      %p99 = scmp.ne.s32.totalorder %s87, %s88
      %p100 = scmp.eq.s32.totalorder %s31, 1
      %p101 = por %p99, %p100
      %p103 = scmp.ne.s32.totalorder %s88, %s102
      %p104 = scmp.eq.s32.totalorder %s31, 0
      %p105 = por %p103, %p104
      %s107 = sadd.s32 %s106, 1
      %p110 = scmp.eq.s32.totalorder %s25, 1
      %p111 = scmp.ne.s32.totalorder %s106, %s108
      %p112 = scmp.eq.s32.totalorder %s25, 0
      %p113 = por %p111, %p112
      %p114 = scmp.ne.s32.totalorder %s106, %s108
      %p115 = scmp.eq.s32.totalorder %s30, 1
      %p116 = por %p114, %p115
      %p117 = scmp.ne.s32.totalorder %s108, %s109
      %p118 = scmp.eq.s32.totalorder %s30, 0
      %p119 = por %p117, %p118
      %p120 = scmp.ne.s32.totalorder %s108, %s109
      %p121 = scmp.eq.s32.totalorder %s31, 1
      %p122 = por %p120, %p121
      %p124 = scmp.ne.s32.totalorder %s109, %s123
      %p125 = scmp.eq.s32.totalorder %s31, 0
      %p126 = por %p124, %p125
      %s128 = sadd.s32 %s127, 1
      %p131 = scmp.eq.s32.totalorder %s25, 1
      %p132 = scmp.ne.s32.totalorder %s127, %s129
      %p133 = scmp.eq.s32.totalorder %s25, 0
      %p134 = por %p132, %p133
      %p135 = scmp.ne.s32.totalorder %s127, %s129
      %p136 = scmp.eq.s32.totalorder %s30, 1
      %p137 = por %p135, %p136
      %p138 = scmp.ne.s32.totalorder %s129, %s130
      %p139 = scmp.eq.s32.totalorder %s30, 0
      %p140 = por %p138, %p139
      %p141 = scmp.ne.s32.totalorder %s129, %s130
      %p142 = scmp.eq.s32.totalorder %s31, 1
      %p143 = por %p141, %p142
      %p145 = scmp.ne.s32.totalorder %s130, %s144
      %p146 = scmp.eq.s32.totalorder %s31, 0
      %p147 = por %p145, %p146
      %s149 = sadd.s32 %s148, 1
      %p152 = scmp.eq.s32.totalorder %s25, 1
      %p153 = scmp.ne.s32.totalorder %s148, %s150
      %p154 = scmp.eq.s32.totalorder %s25, 0
      %p155 = por %p153, %p154
      %p156 = scmp.ne.s32.totalorder %s148, %s150
      %p157 = scmp.eq.s32.totalorder %s30, 1
      %p158 = por %p156, %p157
      %p159 = scmp.ne.s32.totalorder %s150, %s151
      %p160 = scmp.eq.s32.totalorder %s30, 0
      %p161 = por %p159, %p160
      %p162 = scmp.ne.s32.totalorder %s150, %s151
      %p163 = scmp.eq.s32.totalorder %s31, 1
      %p164 = por %p162, %p163
      %p166 = scmp.ne.s32.totalorder %s151, %s165
      %p167 = scmp.eq.s32.totalorder %s31, 0
      %p168 = por %p166, %p167
      %s170 = sadd.s32 %s169, 1
      %p173 = scmp.eq.s32.totalorder %s25, 1
      %p174 = scmp.ne.s32.totalorder %s169, %s171
      %p175 = scmp.eq.s32.totalorder %s25, 0
      %p176 = por %p174, %p175
      %p177 = scmp.ne.s32.totalorder %s169, %s171
      %p178 = scmp.eq.s32.totalorder %s30, 1
      %p179 = por %p177, %p178
      %p180 = scmp.ne.s32.totalorder %s171, %s172
      %p181 = scmp.eq.s32.totalorder %s30, 0
      %p182 = por %p180, %p181
      %p183 = scmp.ne.s32.totalorder %s171, %s172
      %p184 = scmp.eq.s32.totalorder %s31, 1
      %p185 = por %p183, %p184
      %p187 = scmp.ne.s32.totalorder %s172, %s186
      %p188 = scmp.eq.s32.totalorder %s31, 0
      %p189 = por %p187, %p188
      %s191 = sadd.s32 %s190, 1
      %p194 = scmp.eq.s32.totalorder %s25, 1
      %p195 = scmp.ne.s32.totalorder %s190, %s192
      %p196 = scmp.eq.s32.totalorder %s25, 0
      %p197 = por %p195, %p196
      %p198 = scmp.ne.s32.totalorder %s190, %s192
      %p199 = scmp.eq.s32.totalorder %s30, 1
      %p200 = por %p198, %p199
      %p201 = scmp.ne.s32.totalorder %s192, %s193
      %p202 = scmp.eq.s32.totalorder %s30, 0
      %p203 = por %p201, %p202
      %p204 = scmp.ne.s32.totalorder %s192, %s193
      %p205 = scmp.eq.s32.totalorder %s31, 1
      %p206 = por %p204, %p205
      %p208 = scmp.ne.s32.totalorder %s193, %s207
      %p209 = scmp.eq.s32.totalorder %s31, 0
      %p210 = por %p208, %p209
      %s212 = sadd.s32 %s211, 1
      %p215 = scmp.eq.s32.totalorder %s25, 1
      %p216 = scmp.ne.s32.totalorder %s211, %s213
      %p217 = scmp.eq.s32.totalorder %s25, 0
      %p218 = por %p216, %p217
      %p219 = scmp.ne.s32.totalorder %s211, %s213
      %p220 = scmp.eq.s32.totalorder %s30, 1
      %p221 = por %p219, %p220
      %p222 = scmp.ne.s32.totalorder %s213, %s214
      %p223 = scmp.eq.s32.totalorder %s30, 0
      %p224 = por %p222, %p223
      %p225 = scmp.ne.s32.totalorder %s213, %s214
      %p226 = scmp.eq.s32.totalorder %s31, 1
      %p227 = por %p225, %p226
      %p229 = scmp.ne.s32.totalorder %s214, %s228
      %p230 = scmp.eq.s32.totalorder %s31, 0
      %p231 = por %p229, %p230
      %s233 = sadd.s32 %s232, 1
      %p236 = scmp.eq.s32.totalorder %s25, 1
      %p237 = scmp.ne.s32.totalorder %s232, %s234
      %p238 = scmp.eq.s32.totalorder %s25, 0
      %p239 = por %p237, %p238
      %p240 = scmp.ne.s32.totalorder %s232, %s234
      %p241 = scmp.eq.s32.totalorder %s30, 1
      %p242 = por %p240, %p241
      %p243 = scmp.ne.s32.totalorder %s234, %s235
      %p244 = scmp.eq.s32.totalorder %s30, 0
      %p245 = por %p243, %p244
      %p246 = scmp.ne.s32.totalorder %s234, %s235
      %p247 = scmp.eq.s32.totalorder %s31, 1
      %p248 = por %p246, %p247
      %p250 = scmp.ne.s32.totalorder %s235, %s249
      %p251 = scmp.eq.s32.totalorder %s31, 0
      %p252 = por %p250, %p251
      %s254 = sadd.s32 %s253, 1
      %p257 = scmp.eq.s32.totalorder %s25, 1
      %p258 = scmp.ne.s32.totalorder %s253, %s255
      %p259 = scmp.eq.s32.totalorder %s25, 0
      %p260 = por %p258, %p259
      %p261 = scmp.ne.s32.totalorder %s253, %s255
      %p262 = scmp.eq.s32.totalorder %s30, 1
      %p263 = por %p261, %p262
      %p264 = scmp.ne.s32.totalorder %s255, %s256
      %p265 = scmp.eq.s32.totalorder %s30, 0
      %p266 = por %p264, %p265
      %p267 = scmp.ne.s32.totalorder %s255, %s256
      %p268 = scmp.eq.s32.totalorder %s31, 1
      %p269 = por %p267, %p268
      %p271 = scmp.ne.s32.totalorder %s256, %s270
      %p272 = scmp.eq.s32.totalorder %s31, 0
      %p273 = por %p271, %p272
      %s275 = sadd.s32 %s274, 1
      %p278 = scmp.eq.s32.totalorder %s25, 1
      %p279 = scmp.ne.s32.totalorder %s274, %s276
      %p280 = scmp.eq.s32.totalorder %s25, 0
      %p281 = por %p279, %p280
      %p282 = scmp.ne.s32.totalorder %s274, %s276
      %p283 = scmp.eq.s32.totalorder %s30, 1
      %p284 = por %p282, %p283
      %p285 = scmp.ne.s32.totalorder %s276, %s277
      %p286 = scmp.eq.s32.totalorder %s30, 0
      %p287 = por %p285, %p286
      %p288 = scmp.ne.s32.totalorder %s276, %s277
      %p289 = scmp.eq.s32.totalorder %s31, 1
      %p290 = por %p288, %p289
      %p292 = scmp.ne.s32.totalorder %s277, %s291
      %p293 = scmp.eq.s32.totalorder %s31, 0
      %p294 = por %p292, %p293
      %s296 = sadd.s32 %s295, 1
      %p299 = scmp.eq.s32.totalorder %s25, 1
      %p300 = scmp.ne.s32.totalorder %s295, %s297
      %p301 = scmp.eq.s32.totalorder %s25, 0
      %p302 = por %p300, %p301
      %p303 = scmp.ne.s32.totalorder %s295, %s297
      %p304 = scmp.eq.s32.totalorder %s30, 1
      %p305 = por %p303, %p304
      %p306 = scmp.ne.s32.totalorder %s297, %s298
      %p307 = scmp.eq.s32.totalorder %s30, 0
      %p308 = por %p306, %p307
      %p309 = scmp.ne.s32.totalorder %s297, %s298
      %p310 = scmp.eq.s32.totalorder %s31, 1
      %p311 = por %p309, %p310
      %p313 = scmp.ne.s32.totalorder %s298, %s312
      %p314 = scmp.eq.s32.totalorder %s31, 0
      %p315 = por %p313, %p314
      %s317 = sadd.s32 %s316, 1
      %p320 = scmp.eq.s32.totalorder %s25, 1
      %p321 = scmp.ne.s32.totalorder %s316, %s318
      %p322 = scmp.eq.s32.totalorder %s25, 0
      %p323 = por %p321, %p322
      %p324 = scmp.ne.s32.totalorder %s316, %s318
      %p325 = scmp.eq.s32.totalorder %s30, 1
      %p326 = por %p324, %p325
      %p327 = scmp.ne.s32.totalorder %s318, %s319
      %p328 = scmp.eq.s32.totalorder %s30, 0
      %p329 = por %p327, %p328
      %p330 = scmp.ne.s32.totalorder %s318, %s319
      %p331 = scmp.eq.s32.totalorder %s31, 1
      %p332 = por %p330, %p331
      %p334 = scmp.ne.s32.totalorder %s319, %s333
      %p335 = scmp.eq.s32.totalorder %s31, 0
      %p336 = por %p334, %p335
      %s338 = sadd.s32 %s337, 1
      %p341 = scmp.eq.s32.totalorder %s25, 1
      %p342 = scmp.ne.s32.totalorder %s337, %s339
      %p343 = scmp.eq.s32.totalorder %s25, 0
      %p344 = por %p342, %p343
      %p345 = scmp.ne.s32.totalorder %s337, %s339
      %p346 = scmp.eq.s32.totalorder %s30, 1
      %p347 = por %p345, %p346
      %p348 = scmp.ne.s32.totalorder %s339, %s340
      %p349 = scmp.eq.s32.totalorder %s30, 0
      %p350 = por %p348, %p349
      %p351 = scmp.ne.s32.totalorder %s339, %s340
      %p352 = scmp.eq.s32.totalorder %s31, 1
      %p353 = por %p351, %p352
      %p355 = scmp.ne.s32.totalorder %s340, %s354
      %p356 = scmp.eq.s32.totalorder %s31, 0
      %p357 = por %p355, %p356
      %s358 = ssub.s32 %s25, %s32
      %p359 = scmp.eq.s32.totalorder %s358, 0
      %s361 = sadd.s32 %s360, 1
      %s362 = scalar_select %p359, %s360, %s361
      %p365 = pneg %p359
      %p366 = scmp.eq.s32.totalorder %s25, 1
      %p367 = por %p365, %p366
      %p368 = scmp.ne.s32.totalorder %s360, %s363
      %p369 = scmp.eq.s32.totalorder %s25, 0
      %p370 = por %p368, %p369
      %p371 = scmp.ne.s32.totalorder %s360, %s363
      %p372 = scmp.eq.s32.totalorder %s30, 1
      %p373 = por %p371, %p372
      %p374 = scmp.ne.s32.totalorder %s363, %s364
      %p375 = scmp.eq.s32.totalorder %s30, 0
      %p376 = por %p374, %p375
      %p377 = scmp.ne.s32.totalorder %s363, %s364
      %p378 = scmp.eq.s32.totalorder %s31, 1
      %p379 = por %p377, %p378
      %p381 = scmp.ne.s32.totalorder %s364, %s380
      %p382 = scmp.eq.s32.totalorder %s31, 0
      %p383 = por %p381, %p382
      %p384 = scmp.le.s32.totalorder 1, %s25
      %p385 = scmp.lt.s32.totalorder %s25, 3
      %p386 = pnand %p384, %p385
      %p387 = pneg %p386
      // Predicated region
      $region9: #{tpu_custom_call.1} parent=5 // pred_check
        _
      $region10: #{tpu_custom_call.1} parent=5 // pred_check_branch
        %389 = sbr.rel (%p386) target = $region12
      $region11: #{tpu_custom_call.1} parent=5 // pred_region
        %s390 = ssub.s32 %s25, 1
        // Predicated region
        $region13: #{tpu_custom_call.1} parent=11 // pred_check
          %p391 = pneg %p98
        $region14: #{tpu_custom_call.1} parent=11 // pred_check_branch
          %393 = sbr.rel (%p391) target = $region16
        $region15: #{tpu_custom_call.1} parent=11 // pred_region
          %s395 = ssub.s32 2048, 2048
          %396 = vsyncadd [#allocation6], %s395
          %s397 = sshll.u32 [#allocation5], 4
          %s398 = int_to_ptr.vmem [resolvable:$true] %s397
          %403 = dma.hbm_to_vmem [thread:$0]  %s2, 2048, %s398, [#allocation6], 256, 256, 16
        $region16: #{tpu_custom_call.1} parent=11 // pred_fallthru
          _
        // Predicated region
        $region17: #{tpu_custom_call.1} parent=11 // pred_check
          %p404 = pneg %p119
        $region18: #{tpu_custom_call.1} parent=11 // pred_check_branch
          %406 = sbr.rel (%p404) target = $region20
        $region19: #{tpu_custom_call.1} parent=11 // pred_region
          _
        $region20: #{tpu_custom_call.1} parent=11 // pred_fallthru
          _
        // Predicated region
        $region21: #{tpu_custom_call.1} parent=11 // pred_check
          %p407 = pneg %p140
        $region22: #{tpu_custom_call.1} parent=11 // pred_check_branch
          %409 = sbr.rel (%p407) target = $region24
        $region23: #{tpu_custom_call.1} parent=11 // pred_region
          _
        $region24: #{tpu_custom_call.1} parent=11 // pred_fallthru
          _
        // Predicated region
        $region25: #{tpu_custom_call.1} parent=11 // pred_check
          %p410 = pneg %p161
        $region26: #{tpu_custom_call.1} parent=11 // pred_check_branch
          %412 = sbr.rel (%p410) target = $region28
        $region27: #{tpu_custom_call.1} parent=11 // pred_region
          _
        $region28: #{tpu_custom_call.1} parent=11 // pred_fallthru
          _
        // Predicated region
        $region29: #{tpu_custom_call.1} parent=11 // pred_check
          %p413 = pneg %p182
        $region30: #{tpu_custom_call.1} parent=11 // pred_check_branch
          %415 = sbr.rel (%p413) target = $region32
        $region31: #{tpu_custom_call.1} parent=11 // pred_region
          _
        $region32: #{tpu_custom_call.1} parent=11 // pred_fallthru
          _
        // Predicated region
        $region33: #{tpu_custom_call.1} parent=11 // pred_check
          %p416 = pneg %p203
        $region34: #{tpu_custom_call.1} parent=11 // pred_check_branch
          %418 = sbr.rel (%p416) target = $region36
        $region35: #{tpu_custom_call.1} parent=11 // pred_region
          _
        $region36: #{tpu_custom_call.1} parent=11 // pred_fallthru
          _
        // Predicated region
        $region37: #{tpu_custom_call.1} parent=11 // pred_check
          %p419 = pneg %p224
        $region38: #{tpu_custom_call.1} parent=11 // pred_check_branch
          %421 = sbr.rel (%p419) target = $region40
        $region39: #{tpu_custom_call.1} parent=11 // pred_region
          _
        $region40: #{tpu_custom_call.1} parent=11 // pred_fallthru
          _
        // Predicated region
        $region41: #{tpu_custom_call.1} parent=11 // pred_check
          %p422 = pneg %p245
        $region42: #{tpu_custom_call.1} parent=11 // pred_check_branch
          %424 = sbr.rel (%p422) target = $region44
        $region43: #{tpu_custom_call.1} parent=11 // pred_region
          _
        $region44: #{tpu_custom_call.1} parent=11 // pred_fallthru
          _
        // Predicated region
        $region45: #{tpu_custom_call.1} parent=11 // pred_check
          %p425 = pneg %p266
        $region46: #{tpu_custom_call.1} parent=11 // pred_check_branch
          %427 = sbr.rel (%p425) target = $region48
        $region47: #{tpu_custom_call.1} parent=11 // pred_region
          _
        $region48: #{tpu_custom_call.1} parent=11 // pred_fallthru
          _
        // Predicated region
        $region49: #{tpu_custom_call.1} parent=11 // pred_check
          %p428 = pneg %p287
        $region50: #{tpu_custom_call.1} parent=11 // pred_check_branch
          %430 = sbr.rel (%p428) target = $region52
        $region51: #{tpu_custom_call.1} parent=11 // pred_region
          _
        $region52: #{tpu_custom_call.1} parent=11 // pred_fallthru
          _
        // Predicated region
        $region53: #{tpu_custom_call.1} parent=11 // pred_check
          %p431 = pneg %p308
        $region54: #{tpu_custom_call.1} parent=11 // pred_check_branch
          %433 = sbr.rel (%p431) target = $region56
        $region55: #{tpu_custom_call.1} parent=11 // pred_region
          _
        $region56: #{tpu_custom_call.1} parent=11 // pred_fallthru
          _
        // Predicated region
        $region57: #{tpu_custom_call.1} parent=11 // pred_check
          %p434 = pneg %p329
        $region58: #{tpu_custom_call.1} parent=11 // pred_check_branch
          %436 = sbr.rel (%p434) target = $region60
        $region59: #{tpu_custom_call.1} parent=11 // pred_region
          _
        $region60: #{tpu_custom_call.1} parent=11 // pred_fallthru
          _
        // Predicated region
        $region61: #{tpu_custom_call.1} parent=11 // pred_check
          %p437 = pneg %p350
        $region62: #{tpu_custom_call.1} parent=11 // pred_check_branch
          %439 = sbr.rel (%p437) target = $region64
        $region63: #{tpu_custom_call.1} parent=11 // pred_region
          _
        $region64: #{tpu_custom_call.1} parent=11 // pred_fallthru
          _
      $region12: #{tpu_custom_call.1} parent=5 // pred_fallthru
        _
      %p440 = scmp.lt.s32.totalorder %s25, 2
      // Predicated region
      $region65: #{tpu_custom_call.1} parent=5 // pred_check
        %p441 = pneg %p440
      $region66: #{tpu_custom_call.1} parent=5 // pred_check_branch
        %443 = sbr.rel (%p441) target = $region68
      $region67: #{tpu_custom_call.1} parent=5 // pred_region
        // Predicated region
        $region69: #{tpu_custom_call.1} parent=67 // pred_check
          %p444 = pneg %p45
        $region70: #{tpu_custom_call.1} parent=67 // pred_check_branch
          %446 = sbr.rel (%p444) target = $region72
        $region71: #{tpu_custom_call.1} parent=67 // pred_region
          %p447 = scmp.lt.s32.totalorder %s25, 1
          %s448 = scalar_select %p447, %s25, 1
          %s449 = smul.addr %s448, 2
          %s450 = smul.addr %s449, 8
          %s451 = scalar_lea.vmem %s0, %s450
        $region72: #{tpu_custom_call.1} parent=67 // pred_fallthru
          _
        // Predicated region
        $region73: #{tpu_custom_call.1} parent=67 // pred_check
          %p452 = pneg %p71
        $region74: #{tpu_custom_call.1} parent=67 // pred_check_branch
          %454 = sbr.rel (%p452) target = $region76
        $region75: #{tpu_custom_call.1} parent=67 // pred_region
          %p455 = scmp.lt.s32.totalorder %s25, 1
          %s456 = scalar_select %p455, %s25, 1
          %s457 = smul.addr %s456, 8
          %s458 = scalar_lea.vmem %s1, %s457
        $region76: #{tpu_custom_call.1} parent=67 // pred_fallthru
          _
      $region68: #{tpu_custom_call.1} parent=5 // pred_fallthru
        _
      %p459 = scmp.le.s32.totalorder 1, %s25
      %p460 = scmp.lt.s32.totalorder %s25, 3
      %p461 = pnand %p459, %p460
      %p462 = pneg %p461
      // Predicated region
      $region77: #{tpu_custom_call.1} parent=5 // pred_check
        _
      $region78: #{tpu_custom_call.1} parent=5 // pred_check_branch
        %464 = sbr.rel (%p461) target = $region80
      $region79: #{tpu_custom_call.1} parent=5 // pred_region
        %s465 = ssub.s32 %s25, 1
        // Predicated region
        $region81: #{tpu_custom_call.1} parent=79 // pred_check
          %p466 = pneg %p98
        $region82: #{tpu_custom_call.1} parent=79 // pred_check_branch
          %468 = sbr.rel (%p466) target = $region84
        $region83: #{tpu_custom_call.1} parent=79 // pred_region
          %469 = dma.done [#allocation6], 2048
        $region84: #{tpu_custom_call.1} parent=79 // pred_fallthru
          _
        %p470 = scmp.lt.s32.totalorder %s30, 1
        %s471 = scalar_select %p470, %s30, 1
        %s472 = smul.addr %s471, 2
        %s473 = smul.addr %s472, 8
        %s474 = scalar_lea.vmem %s0, %s473
        %p475 = pneg %p51
        %p476 = pneg %p48
        %p477 = scmp.lt.s32.totalorder %s30, 1
        %s478 = scalar_select %p477, %s30, 1
        %s479 = smul.addr %s478, 8
        %s480 = scalar_lea.vmem %s1, %s479
        %p481 = pneg %p77
        %p482 = pneg %p74
        %p483 = pneg %p98
        %p484 = pneg %p95
        %p485 = pneg %p119
        %p486 = pneg %p116
        %p487 = pneg %p140
        %p488 = pneg %p137
        %p489 = pneg %p161
        %p490 = pneg %p158
        %p491 = pneg %p182
        %p492 = pneg %p179
        %p493 = pneg %p203
        %p494 = pneg %p200
        %p495 = pneg %p224
        %p496 = pneg %p221
        %p497 = pneg %p245
        %p498 = pneg %p242
        %p499 = pneg %p266
        %p500 = pneg %p263
        %p501 = pneg %p287
        %p502 = pneg %p284
        %p503 = pneg %p308
        %p504 = pneg %p305
        %p505 = pneg %p329
        %p506 = pneg %p326
        %p507 = pneg %p350
        %p508 = pneg %p347
        %p509 = pneg %p376
        %p510 = pneg %p373
        %s511 = sand.u32 %s363, 1
        %s512 = scalar_lea.sflag [#allocation7], %s511
        %s513 = sand.u32 %s363, 1
        %s514 = smul.addr %s513, 16
        %s515 = scalar_lea.vmem [#allocation8], %s514
        %p516 = scmp.lt.s32.totalorder %s30, 1
        %s517 = scalar_select %p516, %s30, 1
        %s518 = smul.addr %s517, 2
        %s519 = smul.addr %s518, 8
        %s520 = scalar_lea.vmem %s0, %s519
        %p521 = scmp.lt.s32.totalorder %s30, 1
        %s522 = scalar_select %p521, %s30, 1
        %s523 = smul.addr %s522, 8
        %s524 = scalar_lea.vmem %s1, %s523
        %v526 = vld [vmem:[%s520] sm:$0xff]
        %v527 = vld [vmem:[%s520 + $0x8] sm:$0xff]
        %528 = vst [vmem:[#allocation2] sm:$0xff] %v526
        %529 = vst [vmem:[#allocation2 + $0x8] sm:$0xff] %v527
        %v530 = vld [vmem:[%s524] sm:$0xff]
        %v531 = vld [vmem:[#allocation5] sm:$0xff]
        %v532 = vld [vmem:[#allocation5 + $0x8] sm:$0xff]
        %v533 = vld [vmem:[#allocation5 + $0x10] sm:$0xff]
        %v534 = vld [vmem:[#allocation5 + $0x18] sm:$0xff]
        %v535 = vld [vmem:[#allocation5 + $0x20] sm:$0xff]
        %v536 = vld [vmem:[#allocation5 + $0x28] sm:$0xff]
        %v537 = vld [vmem:[#allocation5 + $0x30] sm:$0xff]
        %v538 = vld [vmem:[#allocation5 + $0x38] sm:$0xff]
        %v539 = vld [vmem:[#allocation5 + $0x40] sm:$0xff]
        %v540 = vld [vmem:[#allocation5 + $0x48] sm:$0xff]
        %v541 = vld [vmem:[#allocation5 + $0x50] sm:$0xff]
        %v542 = vld [vmem:[#allocation5 + $0x58] sm:$0xff]
        %v543 = vld [vmem:[#allocation5 + $0x60] sm:$0xff]
        %v544 = vld [vmem:[#allocation5 + $0x68] sm:$0xff]
        %v545 = vld [vmem:[#allocation5 + $0x70] sm:$0xff]
        %v546 = vld [vmem:[#allocation5 + $0x78] sm:$0xff]
        %vm547 = vcmask 523264
        %v549 = vsel %vm547, %v530, 0
        %551 = vmatprep.subr.mxu0 %v532
        %552 = vmatpush1.msra.mxu0 %v531
        %553 = vmatprep.subr.mxu0 %v534
        %554 = vmatpush1.msra.mxu0 %v533
        %555 = vmatprep.subr.mxu0 %v536
        %556 = vmatpush1.msra.mxu0 %v535
        %557 = vmatprep.subr.mxu0 %v538
        %558 = vmatpush1.msra.mxu0 %v537
        %559 = vmatprep.subr.mxu0 %v540
        %560 = vmatpush1.msra.mxu0 %v539
        %561 = vmatprep.subr.mxu0 %v542
        %562 = vmatpush1.msra.mxu0 %v541
        %563 = vmatprep.subr.mxu0 %v544
        %564 = vmatpush1.msra.mxu0 %v543
        %565 = vmatprep.subr.mxu0 %v546
        %566 = vmatpush1.msra.mxu0 %v545
        %567 = vmatprep.subr.mxu0 0.0
        %568 = vmatpush1.msra.mxu0 0.0
        %569 = vmatprep.subr.mxu0 0.0
        %570 = vmatpush1.msra.mxu0 0.0
        %571 = vmatprep.subr.mxu0 0.0
        %572 = vmatpush1.msra.mxu0 0.0
        %573 = vmatprep.subr.mxu0 0.0
        %574 = vmatpush1.msra.mxu0 0.0
        %575 = vmatprep.subr.mxu0 0.0
        %576 = vmatpush1.msra.mxu0 0.0
        %577 = vmatprep.subr.mxu0 0.0
        %578 = vmatpush1.msra.mxu0 0.0
        %579 = vmatprep.subr.mxu0 0.0
        %580 = vmatpush1.msra.mxu0 0.0
        %581 = vmatprep.subr.mxu0 0.0
        %582 = vmatpush1.msra.mxu0 0.0
        %583 = vmatprep.subr.mxu0 0.0
        %584 = vmatpush1.msra.mxu0 0.0
        %585 = vmatprep.subr.mxu0 0.0
        %586 = vmatpush1.msra.mxu0 0.0
        %587 = vmatprep.subr.mxu0 0.0
        %588 = vmatpush1.msra.mxu0 0.0
        %589 = vmatprep.subr.mxu0 0.0
        %590 = vmatpush1.msra.mxu0 0.0
        %591 = vmatprep.subr.mxu0 0.0
        %592 = vmatpush1.msra.mxu0 0.0
        %593 = vmatprep.subr.mxu0 0.0
        %594 = vmatpush1.msra.mxu0 0.0
        %595 = vmatprep.subr.mxu0 0.0
        %596 = vmatpush1.msra.mxu0 0.0
        %597 = vmatprep.subr.mxu0 0.0
        %598 = vmatpush1.msra.mxu0 0.0
        %599 = vmatprep.subr.mxu0 0.0
        %600 = vmatpush1.msra.mxu0 0.0
        %601 = vmatprep.subr.mxu0 0.0
        %602 = vmatpush1.msra.mxu0 0.0
        %603 = vmatprep.subr.mxu0 0.0
        %604 = vmatpush1.msra.mxu0 0.0
        %605 = vmatprep.subr.mxu0 0.0
        %606 = vmatpush1.msra.mxu0 0.0
        %607 = vmatprep.subr.mxu0 0.0
        %608 = vmatpush1.msra.mxu0 0.0
        %609 = vmatprep.subr.mxu0 0.0
        %610 = vmatpush1.msra.mxu0 0.0
        %611 = vmatprep.subr.mxu0 0.0
        %612 = vmatpush1.msra.mxu0 0.0
        %613 = vmatprep.subr.mxu0 0.0
        %614 = vmatpush1.msra.mxu0 0.0
        %615 = vmatprep.mubr.f32.mxu0 0.0
        %616 = vmatmul.mubr.f32.gmra.mrb[0].mxu0 %v549
        %v617 = vpop.f32.mrb[0].mxu0
        %v618 = vadd.f32 0.0, %v617
        %v619 = vpop.f32.mrb[0].mxu0
        %v620 = vadd.f32 0.0, %v619
        %621 = vdwg.mxu0
        %622 = vst [vmem:[#allocation2 + $0x10] sm:$0xff] %v618
        %623 = vst [vmem:[#allocation2 + $0x18] sm:$0xff] %v620
        %v624 = vld [vmem:[#allocation2] sm:$0xff]
        %v625 = vld [vmem:[#allocation2 + $0x8] sm:$0xff]
        %v626 = vld [vmem:[#allocation2 + $0x10] sm:$0xff]
        %v627 = vld [vmem:[#allocation2 + $0x18] sm:$0xff]
        %vm628 = vcmask 138240
        %629 = vst.msk [vmem:[#allocation3] sm:$0xff] %vm628, 0.0
        %630 = vst.msk [vmem:[#allocation3 + $0x18] sm:$0xff] %vm628, 0.0
        %vm631 = vcmask 277640
        %632 = vst.msk [vmem:[#allocation3 + $0x10] sm:$0xff] %vm631, 0.0
        %633 = vst.msk [vmem:[#allocation3 + $0x28] sm:$0xff] %vm631, 0.0
        %v634 = vlaneseq
        %v635 = vand.u32 %v634, 127
        %v636 = vadd.s32 %v635, 128
        %vm637 = vcmp.lt.s32.totalorder %v635, 0
        %v638 = vsub.s32 0, %v635
        %v639 = vsel %vm637, %v638, %v635
        %v640 = vshrl.u32 %v639, 4
        %v641 = vand.u32 %v639, 15
        %v642 = vsub.s32 0, %v641
        %v643 = vsel %vm637, %v642, %v641
        %vm644 = vcmp.lt.s32.totalorder %v636, 0
        %v645 = vsub.s32 0, %v636
        %v646 = vsel %vm644, %v645, %v636
        %v647 = vshrl.u32 %v646, 4
        %v648 = vand.u32 %v646, 15
        %v649 = vsub.s32 0, %v648
        %v650 = vsel %vm644, %v649, %v648
        %vm651 = vcmp.ne.s32.totalorder %v643, 0
        %vm652 = vcmp.ne.s32.totalorder %v650, 0
        %vm653 = vcmp.lt.s32.totalorder %v643, 0
        %vm654 = vcmp.lt.s32.totalorder %v650, 0
        %vm655 = vmand %vm653, %vm651
        %vm656 = vmand %vm654, %vm652
        %v657 = vadd.s32 %v643, 16
        %v658 = vadd.s32 %v650, 16
        %v659 = vsel %vm655, %v657, %v643
        %v660 = vsel %vm656, %v658, %v650
        %vm661 = vcmp.ge.s32.totalorder %v659, 1
        %vm662 = vcmp.ge.s32.totalorder %v660, 1
        %vm663 = vcmp.le.s32.totalorder %v659, 14
        %vm664 = vcmp.le.s32.totalorder %v660, 14
        %669 = vrot.lane.b32.xlu0 %v624, 17
        %v670 = vpop.permute.xlu0 %669
        %671 = vrot.lane.b32.xlu0 %v625, 17
        %v672 = vpop.permute.xlu0 %671
        %673 = vrot.lane.b32.xlu0 %v626, 17
        %v674 = vpop.permute.xlu0 %673
        %675 = vrot.lane.b32.xlu0 %v627, 17
        %v676 = vpop.permute.xlu0 %675
        %v677 = vsel %vm628, %v670, %v672
        %v678 = vsel %vm628, %v674, %v676
        %vm685 = vcmask 1047688
        %686 = vst.msk [vmem:[#allocation3] sm:$0xff] %vm685, %v670
        %687 = vst [vmem:[#allocation3 + $0x8] sm:$0xff] %v677
        %688 = vst.msk [vmem:[#allocation3 + $0x10] sm:$0xff] %vm628, %v672
        %689 = vst.msk [vmem:[#allocation3 + $0x18] sm:$0xff] %vm685, %v674
        %690 = vst [vmem:[#allocation3 + $0x20] sm:$0xff] %v678
        %691 = vst.msk [vmem:[#allocation3 + $0x28] sm:$0xff] %vm628, %v676
        %v692 = vld [vmem:[#allocation3] sm:$0xff]
        %v693 = vld [vmem:[#allocation3 + $0x8] sm:$0xff]
        %v694 = vld [vmem:[#allocation3 + $0x18] sm:$0xff]
        %v695 = vld [vmem:[#allocation3 + $0x20] sm:$0xff]
        %v696 = vsel %vm661, 1, 0
        %v697 = vsel %vm662, 1, 0
        %vm698 = vcmp.eq.s32.totalorder %v696, 1
        %vm699 = vcmp.eq.s32.totalorder %v697, 1
        %v700 = vsel %vm698, %v692, 0.0
        %v701 = vsel %vm699, %v693, 0.0
        %v702 = vsel %vm698, %v694, 0.0
        %v703 = vsel %vm699, %v695, 0.0
        %v704 = vpack.c.bf16 %v702, %v700
        %v705 = vpack.c.bf16 %v703, %v701
        %706 = vst [vmem:[#allocation4] sm:$0xff] %v704
        %707 = vst [vmem:[#allocation4 + $0x8] sm:$0xff] %v705
        %v708 = vld [vmem:[#allocation3] sm:$0xff]
        %v709 = vld [vmem:[#allocation3 + $0x8] sm:$0xff]
        %v710 = vld [vmem:[#allocation3 + $0x10] sm:$0xff]
        %v711 = vld [vmem:[#allocation3 + $0x18] sm:$0xff]
        %v712 = vld [vmem:[#allocation3 + $0x20] sm:$0xff]
        %v713 = vld [vmem:[#allocation3 + $0x28] sm:$0xff]
        %v714 = vpack.c.bf16 %v711, %v708
        %v715 = vpack.c.bf16 %v712, %v709
        %v716 = vpack.c.bf16 %v713, %v710
        %720 = vrot.lane.b32.xlu0 %v714, 127
        %v721 = vpop.permute.xlu0 %720
        %722 = vrot.lane.b32.xlu0 %v715, 127
        %v723 = vpop.permute.xlu0 %722
        %724 = vrot.lane.b32.xlu0 %v716, 127
        %v725 = vpop.permute.xlu0 %724
        %vm726 = vcmask 1039360
        %v727 = vsel %vm726, %v721, %v723
        %v728 = vsel %vm726, %v723, %v725
        %731 = vst [vmem:[#allocation4 + $0x10] sm:$0xff] %v727
        %732 = vst [vmem:[#allocation4 + $0x18] sm:$0xff] %v728
        %v733 = vld [vmem:[#allocation3] sm:$0xff]
        %v734 = vld [vmem:[#allocation3 + $0x8] sm:$0xff]
        %v735 = vld [vmem:[#allocation3 + $0x10] sm:$0xff]
        %v736 = vld [vmem:[#allocation3 + $0x18] sm:$0xff]
        %v737 = vld [vmem:[#allocation3 + $0x20] sm:$0xff]
        %v738 = vld [vmem:[#allocation3 + $0x28] sm:$0xff]
        %v739 = vsel %vm663, 1, 0
        %v740 = vsel %vm664, 1, 0
        %vm741 = vcmp.eq.s32.totalorder %v739, 1
        %vm742 = vcmp.eq.s32.totalorder %v740, 1
        %749 = vrot.lane.b32.xlu0 %v733, 126
        %v750 = vpop.permute.xlu0 %749
        %751 = vrot.lane.b32.xlu0 %v734, 126
        %v752 = vpop.permute.xlu0 %751
        %753 = vrot.lane.b32.xlu0 %v735, 126
        %v754 = vpop.permute.xlu0 %753
        %755 = vrot.lane.b32.xlu0 %v736, 126
        %v756 = vpop.permute.xlu0 %755
        %757 = vrot.lane.b32.xlu0 %v737, 126
        %v758 = vpop.permute.xlu0 %757
        %759 = vrot.lane.b32.xlu0 %v738, 126
        %v760 = vpop.permute.xlu0 %759
        %vm761 = vcmask 1031168
        %v762 = vsel %vm761, %v750, %v752
        %v763 = vsel %vm761, %v752, %v754
        %v764 = vsel %vm761, %v756, %v758
        %v765 = vsel %vm761, %v758, %v760
        %v770 = vsel %vm741, %v762, 0.0
        %v771 = vsel %vm742, %v763, 0.0
        %v772 = vsel %vm741, %v764, 0.0
        %v773 = vsel %vm742, %v765, 0.0
        %v774 = vpack.c.bf16 %v772, %v770
        %v775 = vpack.c.bf16 %v773, %v771
        %776 = vst [vmem:[#allocation4 + $0x20] sm:$0xff] %v774
        %777 = vst [vmem:[#allocation4 + $0x28] sm:$0xff] %v775
        %v778 = vld [vmem:[#allocation3] sm:$0xff]
        %v779 = vld [vmem:[#allocation3 + $0x8] sm:$0xff]
        %v780 = vld [vmem:[#allocation3 + $0x10] sm:$0xff]
        %v781 = vld [vmem:[#allocation3 + $0x18] sm:$0xff]
        %v782 = vld [vmem:[#allocation3 + $0x20] sm:$0xff]
        %v783 = vld [vmem:[#allocation3 + $0x28] sm:$0xff]
        %790 = vrot.lane.b32.xlu0 %v778, 112
        %v791 = vpop.permute.xlu0 %790
        %792 = vrot.lane.b32.xlu0 %v779, 112
        %v793 = vpop.permute.xlu0 %792
        %794 = vrot.lane.b32.xlu0 %v780, 112
        %v795 = vpop.permute.xlu0 %794
        %796 = vrot.lane.b32.xlu0 %v781, 112
        %v797 = vpop.permute.xlu0 %796
        %798 = vrot.lane.b32.xlu0 %v782, 112
        %v799 = vpop.permute.xlu0 %798
        %800 = vrot.lane.b32.xlu0 %v783, 112
        %v801 = vpop.permute.xlu0 %800
        %vm802 = vcmask 916480
        %v803 = vsel %vm802, %v791, %v793
        %v804 = vsel %vm802, %v793, %v795
        %v805 = vsel %vm802, %v797, %v799
        %v806 = vsel %vm802, %v799, %v801
        %v811 = vsel %vm698, %v803, 0.0
        %v812 = vsel %vm699, %v804, 0.0
        %v813 = vsel %vm698, %v805, 0.0
        %v814 = vsel %vm699, %v806, 0.0
        %v815 = vpack.c.bf16 %v813, %v811
        %v816 = vpack.c.bf16 %v814, %v812
        %817 = vst [vmem:[#allocation4 + $0x30] sm:$0xff] %v815
        %818 = vst [vmem:[#allocation4 + $0x38] sm:$0xff] %v816
        %v819 = vld [vmem:[#allocation3] sm:$0xff]
        %v820 = vld [vmem:[#allocation3 + $0x8] sm:$0xff]
        %v821 = vld [vmem:[#allocation3 + $0x10] sm:$0xff]
        %v822 = vld [vmem:[#allocation3 + $0x18] sm:$0xff]
        %v823 = vld [vmem:[#allocation3 + $0x20] sm:$0xff]
        %v824 = vld [vmem:[#allocation3 + $0x28] sm:$0xff]
        %v825 = vpack.c.bf16 %v822, %v819
        %v826 = vpack.c.bf16 %v823, %v820
        %v827 = vpack.c.bf16 %v824, %v821
        %831 = vrot.lane.b32.xlu0 %v825, 111
        %v832 = vpop.permute.xlu0 %831
        %833 = vrot.lane.b32.xlu0 %v826, 111
        %v834 = vpop.permute.xlu0 %833
        %835 = vrot.lane.b32.xlu0 %v827, 111
        %v836 = vpop.permute.xlu0 %835
        %vm837 = vcmask 908288
        %v838 = vsel %vm837, %v832, %v834
        %v839 = vsel %vm837, %v834, %v836
        %842 = vst [vmem:[#allocation4 + $0x40] sm:$0xff] %v838
        %843 = vst [vmem:[#allocation4 + $0x48] sm:$0xff] %v839
        %v844 = vld [vmem:[#allocation3] sm:$0xff]
        %v845 = vld [vmem:[#allocation3 + $0x8] sm:$0xff]
        %v846 = vld [vmem:[#allocation3 + $0x10] sm:$0xff]
        %v847 = vld [vmem:[#allocation3 + $0x18] sm:$0xff]
        %v848 = vld [vmem:[#allocation3 + $0x20] sm:$0xff]
        %v849 = vld [vmem:[#allocation3 + $0x28] sm:$0xff]
        %856 = vrot.lane.b32.xlu0 %v844, 110
        %v857 = vpop.permute.xlu0 %856
        %858 = vrot.lane.b32.xlu0 %v845, 110
        %v859 = vpop.permute.xlu0 %858
        %860 = vrot.lane.b32.xlu0 %v846, 110
        %v861 = vpop.permute.xlu0 %860
        %862 = vrot.lane.b32.xlu0 %v847, 110
        %v863 = vpop.permute.xlu0 %862
        %864 = vrot.lane.b32.xlu0 %v848, 110
        %v865 = vpop.permute.xlu0 %864
        %866 = vrot.lane.b32.xlu0 %v849, 110
        %v867 = vpop.permute.xlu0 %866
        %vm868 = vcmask 900096
        %v869 = vsel %vm868, %v857, %v859
        %v870 = vsel %vm868, %v859, %v861
        %v871 = vsel %vm868, %v863, %v865
        %v872 = vsel %vm868, %v865, %v867
        %v877 = vsel %vm741, %v869, 0.0
        %v878 = vsel %vm742, %v870, 0.0
        %v879 = vsel %vm741, %v871, 0.0
        %v880 = vsel %vm742, %v872, 0.0
        %v881 = vpack.c.bf16 %v879, %v877
        %v882 = vpack.c.bf16 %v880, %v878
        %883 = vst [vmem:[#allocation4 + $0x50] sm:$0xff] %v881
        %884 = vst [vmem:[#allocation4 + $0x58] sm:$0xff] %v882
        %v885 = vld [vmem:[#allocation3] sm:$0xff]
        %v886 = vld [vmem:[#allocation3 + $0x8] sm:$0xff]
        %v887 = vld [vmem:[#allocation3 + $0x10] sm:$0xff]
        %v888 = vld [vmem:[#allocation3 + $0x18] sm:$0xff]
        %v889 = vld [vmem:[#allocation3 + $0x20] sm:$0xff]
        %v890 = vld [vmem:[#allocation3 + $0x28] sm:$0xff]
        %897 = vrot.lane.b32.xlu0 %v885, 96
        %v898 = vpop.permute.xlu0 %897
        %899 = vrot.lane.b32.xlu0 %v886, 96
        %v900 = vpop.permute.xlu0 %899
        %901 = vrot.lane.b32.xlu0 %v887, 96
        %v902 = vpop.permute.xlu0 %901
        %903 = vrot.lane.b32.xlu0 %v888, 96
        %v904 = vpop.permute.xlu0 %903
        %905 = vrot.lane.b32.xlu0 %v889, 96
        %v906 = vpop.permute.xlu0 %905
        %907 = vrot.lane.b32.xlu0 %v890, 96
        %v908 = vpop.permute.xlu0 %907
        %vm909 = vcmask 785408
        %v910 = vsel %vm909, %v898, %v900
        %v911 = vsel %vm909, %v900, %v902
        %v912 = vsel %vm909, %v904, %v906
        %v913 = vsel %vm909, %v906, %v908
        %v918 = vsel %vm698, %v910, 0.0
        %v919 = vsel %vm699, %v911, 0.0
        %v920 = vsel %vm698, %v912, 0.0
        %v921 = vsel %vm699, %v913, 0.0
        %v922 = vpack.c.bf16 %v920, %v918
        %v923 = vpack.c.bf16 %v921, %v919
        %924 = vst [vmem:[#allocation4 + $0x60] sm:$0xff] %v922
        %925 = vst [vmem:[#allocation4 + $0x68] sm:$0xff] %v923
        %v926 = vld [vmem:[#allocation3] sm:$0xff]
        %v927 = vld [vmem:[#allocation3 + $0x8] sm:$0xff]
        %v928 = vld [vmem:[#allocation3 + $0x10] sm:$0xff]
        %v929 = vld [vmem:[#allocation3 + $0x18] sm:$0xff]
        %v930 = vld [vmem:[#allocation3 + $0x20] sm:$0xff]
        %v931 = vld [vmem:[#allocation3 + $0x28] sm:$0xff]
        %v932 = vpack.c.bf16 %v929, %v926
        %v933 = vpack.c.bf16 %v930, %v927
        %v934 = vpack.c.bf16 %v931, %v928
        %938 = vrot.lane.b32.xlu0 %v932, 95
        %v939 = vpop.permute.xlu0 %938
        %940 = vrot.lane.b32.xlu0 %v933, 95
        %v941 = vpop.permute.xlu0 %940
        %942 = vrot.lane.b32.xlu0 %v934, 95
        %v943 = vpop.permute.xlu0 %942
        %vm944 = vcmask 777216
        %v945 = vsel %vm944, %v939, %v941
        %v946 = vsel %vm944, %v941, %v943
        %949 = vst [vmem:[#allocation4 + $0x70] sm:$0xff] %v945
        %950 = vst [vmem:[#allocation4 + $0x78] sm:$0xff] %v946
        %v951 = vld [vmem:[#allocation3] sm:$0xff]
        %v952 = vld [vmem:[#allocation3 + $0x8] sm:$0xff]
        %v953 = vld [vmem:[#allocation3 + $0x10] sm:$0xff]
        %v954 = vld [vmem:[#allocation3 + $0x18] sm:$0xff]
        %v955 = vld [vmem:[#allocation3 + $0x20] sm:$0xff]
        %v956 = vld [vmem:[#allocation3 + $0x28] sm:$0xff]
        %963 = vrot.lane.b32.xlu0 %v951, 94
        %v964 = vpop.permute.xlu0 %963
        %965 = vrot.lane.b32.xlu0 %v952, 94
        %v966 = vpop.permute.xlu0 %965
        %967 = vrot.lane.b32.xlu0 %v953, 94
        %v968 = vpop.permute.xlu0 %967
        %969 = vrot.lane.b32.xlu0 %v954, 94
        %v970 = vpop.permute.xlu0 %969
        %971 = vrot.lane.b32.xlu0 %v955, 94
        %v972 = vpop.permute.xlu0 %971
        %973 = vrot.lane.b32.xlu0 %v956, 94
        %v974 = vpop.permute.xlu0 %973
        %vm975 = vcmask 769024
        %v976 = vsel %vm975, %v964, %v966
        %v977 = vsel %vm975, %v966, %v968
        %v978 = vsel %vm975, %v970, %v972
        %v979 = vsel %vm975, %v972, %v974
        %v984 = vsel %vm741, %v976, 0.0
        %v985 = vsel %vm742, %v977, 0.0
        %v986 = vsel %vm741, %v978, 0.0
        %v987 = vsel %vm742, %v979, 0.0
        %v988 = vpack.c.bf16 %v986, %v984
        %v989 = vpack.c.bf16 %v987, %v985
        %990 = vst [vmem:[#allocation4 + $0x80] sm:$0xff] %v988
        %991 = vst [vmem:[#allocation4 + $0x88] sm:$0xff] %v989
        %v992 = vld [vmem:[%s3] sm:$0xff]
        %v993 = vld [vmem:[%s3 + $0x8] sm:$0xff]
        %v994 = vld [vmem:[#allocation4] sm:$0xff]
        %v995 = vld [vmem:[#allocation4 + $0x8] sm:$0xff]
        %v996 = vld [vmem:[#allocation4 + $0x10] sm:$0xff]
        %v997 = vld [vmem:[#allocation4 + $0x18] sm:$0xff]
        %v998 = vld [vmem:[#allocation4 + $0x20] sm:$0xff]
        %v999 = vld [vmem:[#allocation4 + $0x28] sm:$0xff]
        %v1000 = vld [vmem:[#allocation4 + $0x30] sm:$0xff]
        %v1001 = vld [vmem:[#allocation4 + $0x38] sm:$0xff]
        %v1002 = vld [vmem:[#allocation4 + $0x40] sm:$0xff]
        %v1003 = vld [vmem:[#allocation4 + $0x48] sm:$0xff]
        %v1004 = vld [vmem:[#allocation4 + $0x50] sm:$0xff]
        %v1005 = vld [vmem:[#allocation4 + $0x58] sm:$0xff]
        %v1006 = vld [vmem:[#allocation4 + $0x60] sm:$0xff]
        %v1007 = vld [vmem:[#allocation4 + $0x68] sm:$0xff]
        %v1008 = vld [vmem:[#allocation4 + $0x70] sm:$0xff]
        %v1009 = vld [vmem:[#allocation4 + $0x78] sm:$0xff]
        %v1010 = vld [vmem:[#allocation4 + $0x80] sm:$0xff]
        %v1011 = vld [vmem:[#allocation4 + $0x88] sm:$0xff]
        %v1014 = vunpack.c.l.b16 %v992
        %v1015 = vunpack.c.h.b16 %v992
        %v1016 = vunpack.c.l.b16 %v993
        %v1017 = vunpack.c.h.b16 %v993
        %v1018 = vpack.c.b16 %v1016, %v1014
        %v1019 = vpack.c.b16 %v1017, %v1015
        %vm1021 = vcmask 130048
        %v1023 = vsel %vm1021, %v1019, 0
        %1025 = vmatprep.subr.bf16.mxu0 %v995
        %1026 = vmatpush1.bf16.msra.mxu0 %v994
        %1027 = vmatprep.subr.bf16.mxu0 %v997
        %1028 = vmatpush1.bf16.msra.mxu0 %v996
        %1029 = vmatprep.subr.bf16.mxu0 %v999
        %1030 = vmatpush1.bf16.msra.mxu0 %v998
        %1031 = vmatprep.subr.bf16.mxu0 %v1001
        %1032 = vmatpush1.bf16.msra.mxu0 %v1000
        %1033 = vmatprep.subr.bf16.mxu0 %v1003
        %1034 = vmatpush1.bf16.msra.mxu0 %v1002
        %1035 = vmatprep.subr.bf16.mxu0 %v1005
        %1036 = vmatpush1.bf16.msra.mxu0 %v1004
        %1037 = vmatprep.subr.bf16.mxu0 %v1007
        %1038 = vmatpush1.bf16.msra.mxu0 %v1006
        %1039 = vmatprep.subr.bf16.mxu0 %v1009
        %1040 = vmatpush1.bf16.msra.mxu0 %v1008
        %1041 = vmatprep.subr.bf16.mxu0 %v1011
        %1042 = vmatpush1.bf16.msra.mxu0 %v1010
        %1043 = vmatprep.subr.bf16.mxu0 0
        %1044 = vmatpush1.bf16.msra.mxu0 0
        %1045 = vmatprep.subr.bf16.mxu0 0
        %1046 = vmatpush1.bf16.msra.mxu0 0
        %1047 = vmatprep.subr.bf16.mxu0 0
        %1048 = vmatpush1.bf16.msra.mxu0 0
        %1049 = vmatprep.subr.bf16.mxu0 0
        %1050 = vmatpush1.bf16.msra.mxu0 0
        %1051 = vmatprep.subr.bf16.mxu0 0
        %1052 = vmatpush1.bf16.msra.mxu0 0
        %1053 = vmatprep.subr.bf16.mxu0 0
        %1054 = vmatpush1.bf16.msra.mxu0 0
        %1055 = vmatprep.subr.bf16.mxu0 0
        %1056 = vmatpush1.bf16.msra.mxu0 0
        %1057 = vmatprep.mubr.bf16.mxu0 %v1023
        %1058 = vmatmul.mubr.bf16.gmra.mrb[0].mxu0 %v1018
        %v1059 = vpop.f32.mrb[0].mxu0
        %v1060 = vadd.f32 0.0, %v1059
        %v1061 = vpop.f32.mrb[0].mxu0
        %v1062 = vadd.f32 0.0, %v1061
        %v1063 = vpop.f32.mrb[0].mxu0
        %v1064 = vadd.f32 0.0, %v1063
        %v1065 = vpop.f32.mrb[0].mxu0
        %v1066 = vadd.f32 0.0, %v1065
        %1067 = vdwg.mxu0
        %v1068 = vadd.f32 %v1060, %v1062
        %v1069 = vadd.f32 %v1068, %v1064
        %v1070 = vadd.f32 %v1069, %v1066
        %1071 = vadd.xlane.f32.xlu0 %v1070
        %v1072 = vpop.xlane.xlu0 %1071
        %v1073 = vrot.slane %v1072, 4
        %v1074 = vadd.f32 %v1072, %v1073
        %v1075 = vrot.slane %v1074, 2
        %v1076 = vadd.f32 %v1074, %v1075
        %v1077 = vrot.slane %v1076, 1
        %v1078 = vadd.f32 %v1076, %v1077
        %s1079 = vtos %v1078
        %v1080 = vrcp.pop 4096.0
        %s1081 = vtos %v1080
        %s1082 = smul.f32 %s1079, %s1081
        %v1083 = vstv %s1082
        %v1084 = vsub.f32 %v1060, %v1083
        %v1085 = vsub.f32 %v1062, %v1083
        %v1086 = vsub.f32 %v1064, %v1083
        %v1087 = vsub.f32 %v1066, %v1083
        %v1088 = vmul.f32 %v1084, %v1084
        %v1089 = vmul.f32 %v1085, %v1085
        %v1090 = vmul.f32 %v1086, %v1086
        %v1091 = vmul.f32 %v1087, %v1087
        %v1092 = vadd.f32 %v1088, %v1089
        %v1093 = vadd.f32 %v1092, %v1090
        %v1094 = vadd.f32 %v1093, %v1091
        %1095 = vadd.xlane.f32.xlu0 %v1094
        %v1096 = vpop.xlane.xlu0 %1095
        %v1097 = vrot.slane %v1096, 4
        %v1098 = vadd.f32 %v1096, %v1097
        %v1099 = vrot.slane %v1098, 2
        %v1100 = vadd.f32 %v1098, %v1099
        %v1101 = vrot.slane %v1100, 1
        %v1102 = vadd.f32 %v1100, %v1101
        %s1103 = vtos %v1102
        %v1104 = vrcp.pop 4096.0
        %s1105 = vtos %v1104
        %s1106 = smul.f32 %s1103, %s1105
        %s1107 = sadd.f32 %s1106, 1e-05
        %v1108 = vstv %s1107
        %v1109 = vrsqrt.pop %v1108
        %s1110 = vtos %v1109
        %v1111 = vstv %s1110
        %v1112 = vmul.f32 %v1084, %v1111
        %v1113 = vmul.f32 %v1085, %v1111
        %v1114 = vmul.f32 %v1086, %v1111
        %v1115 = vmul.f32 %v1087, %v1111
        %v1116 = vld [vmem:[%s4] sm:$0xff]
        %v1117 = vld [vmem:[%s4 + $0x8] sm:$0xff]
        %1119 = vset.pattern.permute.xlu0 0
        %1120 = vperm.xlu0 %1119, %v1116
        %v1121 = vpop.permute.xlu0 %1120
        %1124 = vset.pattern.permute.xlu0 0
        %1125 = vperm.xlu0 %1124, %v1117
        %v1126 = vpop.permute.xlu0 %1125
        %v1128 = vmul.f32 %v1112, %v1121
        %v1129 = vmul.f32 %v1113, %v1121
        %v1130 = vmul.f32 %v1114, %v1126
        %v1131 = vmul.f32 %v1115, %v1126
        %v1132 = vld [vmem:[%s5] sm:$0xff]
        %v1133 = vld [vmem:[%s5 + $0x8] sm:$0xff]
        %1135 = vset.pattern.permute.xlu0 0
        %1136 = vperm.xlu0 %1135, %v1132
        %v1137 = vpop.permute.xlu0 %1136
        %1140 = vset.pattern.permute.xlu0 0
        %1141 = vperm.xlu0 %1140, %v1133
        %v1142 = vpop.permute.xlu0 %1141
        %v1144 = vadd.f32 %v1128, %v1137
        %v1145 = vadd.f32 %v1129, %v1137
        %v1146 = vadd.f32 %v1130, %v1142
        %v1147 = vadd.f32 %v1131, %v1142
        %v1148 = vmul.f32 %v1144, 0.5
        %v1149 = vmul.f32 %v1145, 0.5
        %v1150 = vmul.f32 %v1146, 0.5
        %v1151 = vmul.f32 %v1147, 0.5
        %v1152 = vmul.f32 %v1144, 0.70710677
        %v1153 = vmul.f32 %v1145, 0.70710677
        %v1154 = vmul.f32 %v1146, 0.70710677
        %v1155 = vmul.f32 %v1147, 0.70710677
        %v1156 = vand.u32 2147483647, %v1152
        %v1157 = vand.u32 2147483647, %v1153
        %v1158 = vand.u32 2147483647, %v1154
        %v1159 = vand.u32 2147483647, %v1155
        %v1160 = vmul.f32 %v1156, 0.3275911
        %v1161 = vmul.f32 %v1157, 0.3275911
        %v1162 = vmul.f32 %v1158, 0.3275911
        %v1163 = vmul.f32 %v1159, 0.3275911
        %v1164 = vadd.f32 %v1160, 1.0
        %v1165 = vadd.f32 %v1161, 1.0
        %v1166 = vadd.f32 %v1162, 1.0
        %v1167 = vadd.f32 %v1163, 1.0
        %v1168 = vrcp.pop %v1164
        %v1169 = vmul.f32 1.0, %v1168
        %v1170 = vrcp.pop %v1165
        %v1171 = vmul.f32 1.0, %v1170
        %v1172 = vrcp.pop %v1166
        %v1173 = vmul.f32 1.0, %v1172
        %v1174 = vrcp.pop %v1167
        %v1175 = vmul.f32 1.0, %v1174
        %v1176 = vmul.f32 %v1169, 1.0614054
        %v1177 = vmul.f32 %v1171, 1.0614054
        %v1178 = vmul.f32 %v1173, 1.0614054
        %v1179 = vmul.f32 %v1175, 1.0614054
        %v1180 = vadd.f32 %v1176, -1.4531521
        %v1181 = vadd.f32 %v1177, -1.4531521
        %v1182 = vadd.f32 %v1178, -1.4531521
        %v1183 = vadd.f32 %v1179, -1.4531521
        %v1184 = vmul.f32 %v1169, %v1180
        %v1185 = vmul.f32 %v1171, %v1181
        %v1186 = vmul.f32 %v1173, %v1182
        %v1187 = vmul.f32 %v1175, %v1183
        %v1188 = vadd.f32 %v1184, 1.4214138
        %v1189 = vadd.f32 %v1185, 1.4214138
        %v1190 = vadd.f32 %v1186, 1.4214138
        %v1191 = vadd.f32 %v1187, 1.4214138
        %v1192 = vmul.f32 %v1169, %v1188
        %v1193 = vmul.f32 %v1171, %v1189
        %v1194 = vmul.f32 %v1173, %v1190
        %v1195 = vmul.f32 %v1175, %v1191
        %v1196 = vadd.f32 %v1192, -0.28449672
        %v1197 = vadd.f32 %v1193, -0.28449672
        %v1198 = vadd.f32 %v1194, -0.28449672
        %v1199 = vadd.f32 %v1195, -0.28449672
        %v1200 = vmul.f32 %v1169, %v1196
        %v1201 = vmul.f32 %v1171, %v1197
        %v1202 = vmul.f32 %v1173, %v1198
        %v1203 = vmul.f32 %v1175, %v1199
        %v1204 = vadd.f32 %v1200, 0.2548296
        %v1205 = vadd.f32 %v1201, 0.2548296
        %v1206 = vadd.f32 %v1202, 0.2548296
        %v1207 = vadd.f32 %v1203, 0.2548296
        %v1208 = vmul.f32 %v1169, %v1204
        %v1209 = vmul.f32 %v1171, %v1205
        %v1210 = vmul.f32 %v1173, %v1206
        %v1211 = vmul.f32 %v1175, %v1207
        %v1212 = vsub.f32 0.0, %v1156
        %v1213 = vsub.f32 0.0, %v1157
        %v1214 = vsub.f32 0.0, %v1158
        %v1215 = vsub.f32 0.0, %v1159
        %v1216 = vmul.f32 %v1212, %v1156
        %v1217 = vmul.f32 %v1213, %v1157
        %v1218 = vmul.f32 %v1214, %v1158
        %v1219 = vmul.f32 %v1215, %v1159
        %v1220 = vmul.f32 %v1216, 1.442695
        %v1221 = vpow.pop %v1220
        %v1222 = vmul.f32 %v1217, 1.442695
        %v1223 = vpow.pop %v1222
        %v1224 = vmul.f32 %v1218, 1.442695
        %v1225 = vpow.pop %v1224
        %v1226 = vmul.f32 %v1219, 1.442695
        %v1227 = vpow.pop %v1226
        %v1228 = vmul.f32 %v1208, %v1221
        %v1229 = vmul.f32 %v1209, %v1223
        %v1230 = vmul.f32 %v1210, %v1225
        %v1231 = vmul.f32 %v1211, %v1227
        %v1232 = vsub.f32 1.0, %v1228
        %v1233 = vsub.f32 1.0, %v1229
        %v1234 = vsub.f32 1.0, %v1230
        %v1235 = vsub.f32 1.0, %v1231
        %vm1236 = vcmp.lt.f32.partialorder %v1152, 0.0
        %vm1237 = vcmp.lt.f32.partialorder %v1153, 0.0
        %vm1238 = vcmp.lt.f32.partialorder %v1154, 0.0
        %vm1239 = vcmp.lt.f32.partialorder %v1155, 0.0
        %v1240 = vsub.f32 0.0, %v1232
        %v1241 = vsub.f32 0.0, %v1233
        %v1242 = vsub.f32 0.0, %v1234
        %v1243 = vsub.f32 0.0, %v1235
        %v1244 = vsel %vm1236, %v1240, %v1232
        %v1245 = vsel %vm1237, %v1241, %v1233
        %v1246 = vsel %vm1238, %v1242, %v1234
        %v1247 = vsel %vm1239, %v1243, %v1235
        %v1248 = vadd.f32 %v1244, 1.0
        %v1249 = vadd.f32 %v1245, 1.0
        %v1250 = vadd.f32 %v1246, 1.0
        %v1251 = vadd.f32 %v1247, 1.0
        %v1252 = vmul.f32 %v1148, %v1248
        %v1253 = vmul.f32 %v1149, %v1249
        %v1254 = vmul.f32 %v1150, %v1250
        %v1255 = vmul.f32 %v1151, %v1251
        %1260 = vrot.lane.b32.xlu0 %v1252, 17
        %v1261 = vpop.permute.xlu0 %1260
        %1262 = vrot.lane.b32.xlu0 %v1253, 17
        %v1263 = vpop.permute.xlu0 %1262
        %1264 = vrot.lane.b32.xlu0 %v1254, 17
        %v1265 = vpop.permute.xlu0 %1264
        %1266 = vrot.lane.b32.xlu0 %v1255, 17
        %v1267 = vpop.permute.xlu0 %1266
        %v1268 = vsel %vm628, %v1261, %v1263
        %v1269 = vsel %vm628, %v1265, %v1267
        %1276 = vst.msk [vmem:[#allocation3] sm:$0xff] %vm685, %v1261
        %1277 = vst [vmem:[#allocation3 + $0x8] sm:$0xff] %v1268
        %1278 = vst.msk [vmem:[#allocation3 + $0x10] sm:$0xff] %vm628, %v1263
        %1279 = vst.msk [vmem:[#allocation3 + $0x18] sm:$0xff] %vm685, %v1265
        %1280 = vst [vmem:[#allocation3 + $0x20] sm:$0xff] %v1269
        %1281 = vst.msk [vmem:[#allocation3 + $0x28] sm:$0xff] %vm628, %v1267
        %v1282 = vld [vmem:[#allocation3] sm:$0xff]
        %v1283 = vld [vmem:[#allocation3 + $0x8] sm:$0xff]
        %v1284 = vld [vmem:[#allocation3 + $0x18] sm:$0xff]
        %v1285 = vld [vmem:[#allocation3 + $0x20] sm:$0xff]
        %v1286 = vsel %vm698, %v1282, 0.0
        %v1287 = vsel %vm699, %v1283, 0.0
        %v1288 = vsel %vm698, %v1284, 0.0
        %v1289 = vsel %vm699, %v1285, 0.0
        %v1290 = vpack.c.bf16 %v1288, %v1286
        %v1291 = vpack.c.bf16 %v1289, %v1287
        %1292 = vst [vmem:[#allocation4] sm:$0xff] %v1290
        %1293 = vst [vmem:[#allocation4 + $0x8] sm:$0xff] %v1291
        %v1294 = vld [vmem:[#allocation3] sm:$0xff]
        %v1295 = vld [vmem:[#allocation3 + $0x8] sm:$0xff]
        %v1296 = vld [vmem:[#allocation3 + $0x10] sm:$0xff]
        %v1297 = vld [vmem:[#allocation3 + $0x18] sm:$0xff]
        %v1298 = vld [vmem:[#allocation3 + $0x20] sm:$0xff]
        %v1299 = vld [vmem:[#allocation3 + $0x28] sm:$0xff]
        %v1300 = vpack.c.bf16 %v1297, %v1294
        %v1301 = vpack.c.bf16 %v1298, %v1295
        %v1302 = vpack.c.bf16 %v1299, %v1296
        %1306 = vrot.lane.b32.xlu0 %v1300, 127
        %v1307 = vpop.permute.xlu0 %1306
        %1308 = vrot.lane.b32.xlu0 %v1301, 127
        %v1309 = vpop.permute.xlu0 %1308
        %1310 = vrot.lane.b32.xlu0 %v1302, 127
        %v1311 = vpop.permute.xlu0 %1310
        %v1312 = vsel %vm726, %v1307, %v1309
        %v1313 = vsel %vm726, %v1309, %v1311
        %1316 = vst [vmem:[#allocation4 + $0x10] sm:$0xff] %v1312
        %1317 = vst [vmem:[#allocation4 + $0x18] sm:$0xff] %v1313
        %v1318 = vld [vmem:[#allocation3] sm:$0xff]
        %v1319 = vld [vmem:[#allocation3 + $0x8] sm:$0xff]
        %v1320 = vld [vmem:[#allocation3 + $0x10] sm:$0xff]
        %v1321 = vld [vmem:[#allocation3 + $0x18] sm:$0xff]
        %v1322 = vld [vmem:[#allocation3 + $0x20] sm:$0xff]
        %v1323 = vld [vmem:[#allocation3 + $0x28] sm:$0xff]
        %1330 = vrot.lane.b32.xlu0 %v1318, 126
        %v1331 = vpop.permute.xlu0 %1330
        %1332 = vrot.lane.b32.xlu0 %v1319, 126
        %v1333 = vpop.permute.xlu0 %1332
        %1334 = vrot.lane.b32.xlu0 %v1320, 126
        %v1335 = vpop.permute.xlu0 %1334
        %1336 = vrot.lane.b32.xlu0 %v1321, 126
        %v1337 = vpop.permute.xlu0 %1336
        %1338 = vrot.lane.b32.xlu0 %v1322, 126
        %v1339 = vpop.permute.xlu0 %1338
        %1340 = vrot.lane.b32.xlu0 %v1323, 126
        %v1341 = vpop.permute.xlu0 %1340
        %v1342 = vsel %vm761, %v1331, %v1333
        %v1343 = vsel %vm761, %v1333, %v1335
        %v1344 = vsel %vm761, %v1337, %v1339
        %v1345 = vsel %vm761, %v1339, %v1341
        %v1350 = vsel %vm741, %v1342, 0.0
        %v1351 = vsel %vm742, %v1343, 0.0
        %v1352 = vsel %vm741, %v1344, 0.0
        %v1353 = vsel %vm742, %v1345, 0.0
        %v1354 = vpack.c.bf16 %v1352, %v1350
        %v1355 = vpack.c.bf16 %v1353, %v1351
        %1356 = vst [vmem:[#allocation4 + $0x20] sm:$0xff] %v1354
        %1357 = vst [vmem:[#allocation4 + $0x28] sm:$0xff] %v1355
        %v1358 = vld [vmem:[#allocation3] sm:$0xff]
        %v1359 = vld [vmem:[#allocation3 + $0x8] sm:$0xff]
        %v1360 = vld [vmem:[#allocation3 + $0x10] sm:$0xff]
        %v1361 = vld [vmem:[#allocation3 + $0x18] sm:$0xff]
        %v1362 = vld [vmem:[#allocation3 + $0x20] sm:$0xff]
        %v1363 = vld [vmem:[#allocation3 + $0x28] sm:$0xff]
        %1370 = vrot.lane.b32.xlu0 %v1358, 112
        %v1371 = vpop.permute.xlu0 %1370
        %1372 = vrot.lane.b32.xlu0 %v1359, 112
        %v1373 = vpop.permute.xlu0 %1372
        %1374 = vrot.lane.b32.xlu0 %v1360, 112
        %v1375 = vpop.permute.xlu0 %1374
        %1376 = vrot.lane.b32.xlu0 %v1361, 112
        %v1377 = vpop.permute.xlu0 %1376
        %1378 = vrot.lane.b32.xlu0 %v1362, 112
        %v1379 = vpop.permute.xlu0 %1378
        %1380 = vrot.lane.b32.xlu0 %v1363, 112
        %v1381 = vpop.permute.xlu0 %1380
        %v1382 = vsel %vm802, %v1371, %v1373
        %v1383 = vsel %vm802, %v1373, %v1375
        %v1384 = vsel %vm802, %v1377, %v1379
        %v1385 = vsel %vm802, %v1379, %v1381
        %v1390 = vsel %vm698, %v1382, 0.0
        %v1391 = vsel %vm699, %v1383, 0.0
        %v1392 = vsel %vm698, %v1384, 0.0
        %v1393 = vsel %vm699, %v1385, 0.0
        %v1394 = vpack.c.bf16 %v1392, %v1390
        %v1395 = vpack.c.bf16 %v1393, %v1391
        %1396 = vst [vmem:[#allocation4 + $0x30] sm:$0xff] %v1394
        %1397 = vst [vmem:[#allocation4 + $0x38] sm:$0xff] %v1395
        %v1398 = vld [vmem:[#allocation3] sm:$0xff]
        %v1399 = vld [vmem:[#allocation3 + $0x8] sm:$0xff]
        %v1400 = vld [vmem:[#allocation3 + $0x10] sm:$0xff]
        %v1401 = vld [vmem:[#allocation3 + $0x18] sm:$0xff]
        %v1402 = vld [vmem:[#allocation3 + $0x20] sm:$0xff]
        %v1403 = vld [vmem:[#allocation3 + $0x28] sm:$0xff]
        %v1404 = vpack.c.bf16 %v1401, %v1398
        %v1405 = vpack.c.bf16 %v1402, %v1399
        %v1406 = vpack.c.bf16 %v1403, %v1400
        %1410 = vrot.lane.b32.xlu0 %v1404, 111
        %v1411 = vpop.permute.xlu0 %1410
        %1412 = vrot.lane.b32.xlu0 %v1405, 111
        %v1413 = vpop.permute.xlu0 %1412
        %1414 = vrot.lane.b32.xlu0 %v1406, 111
        %v1415 = vpop.permute.xlu0 %1414
        %v1416 = vsel %vm837, %v1411, %v1413
        %v1417 = vsel %vm837, %v1413, %v1415
        %1420 = vst [vmem:[#allocation4 + $0x40] sm:$0xff] %v1416
        %1421 = vst [vmem:[#allocation4 + $0x48] sm:$0xff] %v1417
        %v1422 = vld [vmem:[#allocation3] sm:$0xff]
        %v1423 = vld [vmem:[#allocation3 + $0x8] sm:$0xff]
        %v1424 = vld [vmem:[#allocation3 + $0x10] sm:$0xff]
        %v1425 = vld [vmem:[#allocation3 + $0x18] sm:$0xff]
        %v1426 = vld [vmem:[#allocation3 + $0x20] sm:$0xff]
        %v1427 = vld [vmem:[#allocation3 + $0x28] sm:$0xff]
        %1434 = vrot.lane.b32.xlu0 %v1422, 110
        %v1435 = vpop.permute.xlu0 %1434
        %1436 = vrot.lane.b32.xlu0 %v1423, 110
        %v1437 = vpop.permute.xlu0 %1436
        %1438 = vrot.lane.b32.xlu0 %v1424, 110
        %v1439 = vpop.permute.xlu0 %1438
        %1440 = vrot.lane.b32.xlu0 %v1425, 110
        %v1441 = vpop.permute.xlu0 %1440
        %1442 = vrot.lane.b32.xlu0 %v1426, 110
        %v1443 = vpop.permute.xlu0 %1442
        %1444 = vrot.lane.b32.xlu0 %v1427, 110
        %v1445 = vpop.permute.xlu0 %1444
        %v1446 = vsel %vm868, %v1435, %v1437
        %v1447 = vsel %vm868, %v1437, %v1439
        %v1448 = vsel %vm868, %v1441, %v1443
        %v1449 = vsel %vm868, %v1443, %v1445
        %v1454 = vsel %vm741, %v1446, 0.0
        %v1455 = vsel %vm742, %v1447, 0.0
        %v1456 = vsel %vm741, %v1448, 0.0
        %v1457 = vsel %vm742, %v1449, 0.0
        %v1458 = vpack.c.bf16 %v1456, %v1454
        %v1459 = vpack.c.bf16 %v1457, %v1455
        %1460 = vst [vmem:[#allocation4 + $0x50] sm:$0xff] %v1458
        %1461 = vst [vmem:[#allocation4 + $0x58] sm:$0xff] %v1459
        %v1462 = vld [vmem:[#allocation3] sm:$0xff]
        %v1463 = vld [vmem:[#allocation3 + $0x8] sm:$0xff]
        %v1464 = vld [vmem:[#allocation3 + $0x10] sm:$0xff]
        %v1465 = vld [vmem:[#allocation3 + $0x18] sm:$0xff]
        %v1466 = vld [vmem:[#allocation3 + $0x20] sm:$0xff]
        %v1467 = vld [vmem:[#allocation3 + $0x28] sm:$0xff]
        %1474 = vrot.lane.b32.xlu0 %v1462, 96
        %v1475 = vpop.permute.xlu0 %1474
        %1476 = vrot.lane.b32.xlu0 %v1463, 96
        %v1477 = vpop.permute.xlu0 %1476
        %1478 = vrot.lane.b32.xlu0 %v1464, 96
        %v1479 = vpop.permute.xlu0 %1478
        %1480 = vrot.lane.b32.xlu0 %v1465, 96
        %v1481 = vpop.permute.xlu0 %1480
        %1482 = vrot.lane.b32.xlu0 %v1466, 96
        %v1483 = vpop.permute.xlu0 %1482
        %1484 = vrot.lane.b32.xlu0 %v1467, 96
        %v1485 = vpop.permute.xlu0 %1484
        %v1486 = vsel %vm909, %v1475, %v1477
        %v1487 = vsel %vm909, %v1477, %v1479
        %v1488 = vsel %vm909, %v1481, %v1483
        %v1489 = vsel %vm909, %v1483, %v1485
        %v1494 = vsel %vm698, %v1486, 0.0
        %v1495 = vsel %vm699, %v1487, 0.0
        %v1496 = vsel %vm698, %v1488, 0.0
        %v1497 = vsel %vm699, %v1489, 0.0
        %v1498 = vpack.c.bf16 %v1496, %v1494
        %v1499 = vpack.c.bf16 %v1497, %v1495
        %1500 = vst [vmem:[#allocation4 + $0x60] sm:$0xff] %v1498
        %1501 = vst [vmem:[#allocation4 + $0x68] sm:$0xff] %v1499
        %v1502 = vld [vmem:[#allocation3] sm:$0xff]
        %v1503 = vld [vmem:[#allocation3 + $0x8] sm:$0xff]
        %v1504 = vld [vmem:[#allocation3 + $0x10] sm:$0xff]
        %v1505 = vld [vmem:[#allocation3 + $0x18] sm:$0xff]
        %v1506 = vld [vmem:[#allocation3 + $0x20] sm:$0xff]
        %v1507 = vld [vmem:[#allocation3 + $0x28] sm:$0xff]
        %v1508 = vpack.c.bf16 %v1505, %v1502
        %v1509 = vpack.c.bf16 %v1506, %v1503
        %v1510 = vpack.c.bf16 %v1507, %v1504
        %1514 = vrot.lane.b32.xlu0 %v1508, 95
        %v1515 = vpop.permute.xlu0 %1514
        %1516 = vrot.lane.b32.xlu0 %v1509, 95
        %v1517 = vpop.permute.xlu0 %1516
        %1518 = vrot.lane.b32.xlu0 %v1510, 95
        %v1519 = vpop.permute.xlu0 %1518
        %v1520 = vsel %vm944, %v1515, %v1517
        %v1521 = vsel %vm944, %v1517, %v1519
        %1524 = vst [vmem:[#allocation4 + $0x70] sm:$0xff] %v1520
        %1525 = vst [vmem:[#allocation4 + $0x78] sm:$0xff] %v1521
        %v1526 = vld [vmem:[#allocation3] sm:$0xff]
        %v1527 = vld [vmem:[#allocation3 + $0x8] sm:$0xff]
        %v1528 = vld [vmem:[#allocation3 + $0x10] sm:$0xff]
        %v1529 = vld [vmem:[#allocation3 + $0x18] sm:$0xff]
        %v1530 = vld [vmem:[#allocation3 + $0x20] sm:$0xff]
        %v1531 = vld [vmem:[#allocation3 + $0x28] sm:$0xff]
        %1538 = vrot.lane.b32.xlu0 %v1526, 94
        %v1539 = vpop.permute.xlu0 %1538
        %1540 = vrot.lane.b32.xlu0 %v1527, 94
        %v1541 = vpop.permute.xlu0 %1540
        %1542 = vrot.lane.b32.xlu0 %v1528, 94
        %v1543 = vpop.permute.xlu0 %1542
        %1544 = vrot.lane.b32.xlu0 %v1529, 94
        %v1545 = vpop.permute.xlu0 %1544
        %1546 = vrot.lane.b32.xlu0 %v1530, 94
        %v1547 = vpop.permute.xlu0 %1546
        %1548 = vrot.lane.b32.xlu0 %v1531, 94
        %v1549 = vpop.permute.xlu0 %1548
        %v1550 = vsel %vm975, %v1539, %v1541
        %v1551 = vsel %vm975, %v1541, %v1543
        %v1552 = vsel %vm975, %v1545, %v1547
        %v1553 = vsel %vm975, %v1547, %v1549
        %v1558 = vsel %vm741, %v1550, 0.0
        %v1559 = vsel %vm742, %v1551, 0.0
        %v1560 = vsel %vm741, %v1552, 0.0
        %v1561 = vsel %vm742, %v1553, 0.0
        %v1562 = vpack.c.bf16 %v1560, %v1558
        %v1563 = vpack.c.bf16 %v1561, %v1559
        %1564 = vst [vmem:[#allocation4 + $0x80] sm:$0xff] %v1562
        %1565 = vst [vmem:[#allocation4 + $0x88] sm:$0xff] %v1563
        %v1566 = vld [vmem:[%s6] sm:$0xff]
        %v1567 = vld [vmem:[%s6 + $0x8] sm:$0xff]
        %v1568 = vld [vmem:[#allocation4] sm:$0xff]
        %v1569 = vld [vmem:[#allocation4 + $0x8] sm:$0xff]
        %v1570 = vld [vmem:[#allocation4 + $0x10] sm:$0xff]
        %v1571 = vld [vmem:[#allocation4 + $0x18] sm:$0xff]
        %v1572 = vld [vmem:[#allocation4 + $0x20] sm:$0xff]
        %v1573 = vld [vmem:[#allocation4 + $0x28] sm:$0xff]
        %v1574 = vld [vmem:[#allocation4 + $0x30] sm:$0xff]
        %v1575 = vld [vmem:[#allocation4 + $0x38] sm:$0xff]
        %v1576 = vld [vmem:[#allocation4 + $0x40] sm:$0xff]
        %v1577 = vld [vmem:[#allocation4 + $0x48] sm:$0xff]
        %v1578 = vld [vmem:[#allocation4 + $0x50] sm:$0xff]
        %v1579 = vld [vmem:[#allocation4 + $0x58] sm:$0xff]
        %v1580 = vld [vmem:[#allocation4 + $0x60] sm:$0xff]
        %v1581 = vld [vmem:[#allocation4 + $0x68] sm:$0xff]
        %v1582 = vld [vmem:[#allocation4 + $0x70] sm:$0xff]
        %v1583 = vld [vmem:[#allocation4 + $0x78] sm:$0xff]
        %v1584 = vld [vmem:[#allocation4 + $0x80] sm:$0xff]
        %v1585 = vld [vmem:[#allocation4 + $0x88] sm:$0xff]
        %v1588 = vunpack.c.l.b16 %v1566
        %v1589 = vunpack.c.h.b16 %v1566
        %v1590 = vunpack.c.l.b16 %v1567
        %v1591 = vunpack.c.h.b16 %v1567
        %v1592 = vpack.c.b16 %v1590, %v1588
        %v1593 = vpack.c.b16 %v1591, %v1589
        %v1596 = vsel %vm1021, %v1593, 0
        %1598 = vmatprep.subr.bf16.mxu0 %v1569
        %1599 = vmatpush1.bf16.msra.mxu0 %v1568
        %1600 = vmatprep.subr.bf16.mxu0 %v1571
        %1601 = vmatpush1.bf16.msra.mxu0 %v1570
        %1602 = vmatprep.subr.bf16.mxu0 %v1573
        %1603 = vmatpush1.bf16.msra.mxu0 %v1572
        %1604 = vmatprep.subr.bf16.mxu0 %v1575
        %1605 = vmatpush1.bf16.msra.mxu0 %v1574
        %1606 = vmatprep.subr.bf16.mxu0 %v1577
        %1607 = vmatpush1.bf16.msra.mxu0 %v1576
        %1608 = vmatprep.subr.bf16.mxu0 %v1579
        %1609 = vmatpush1.bf16.msra.mxu0 %v1578
        %1610 = vmatprep.subr.bf16.mxu0 %v1581
        %1611 = vmatpush1.bf16.msra.mxu0 %v1580
        %1612 = vmatprep.subr.bf16.mxu0 %v1583
        %1613 = vmatpush1.bf16.msra.mxu0 %v1582
        %1614 = vmatprep.subr.bf16.mxu0 %v1585
        %1615 = vmatpush1.bf16.msra.mxu0 %v1584
        %1616 = vmatprep.subr.bf16.mxu0 0
        %1617 = vmatpush1.bf16.msra.mxu0 0
        %1618 = vmatprep.subr.bf16.mxu0 0
        %1619 = vmatpush1.bf16.msra.mxu0 0
        %1620 = vmatprep.subr.bf16.mxu0 0
        %1621 = vmatpush1.bf16.msra.mxu0 0
        %1622 = vmatprep.subr.bf16.mxu0 0
        %1623 = vmatpush1.bf16.msra.mxu0 0
        %1624 = vmatprep.subr.bf16.mxu0 0
        %1625 = vmatpush1.bf16.msra.mxu0 0
        %1626 = vmatprep.subr.bf16.mxu0 0
        %1627 = vmatpush1.bf16.msra.mxu0 0
        %1628 = vmatprep.subr.bf16.mxu0 0
        %1629 = vmatpush1.bf16.msra.mxu0 0
        %1630 = vmatprep.mubr.bf16.mxu0 %v1596
        %1631 = vmatmul.mubr.bf16.gmra.mrb[0].mxu0 %v1592
        %v1632 = vpop.f32.mrb[0].mxu0
        %v1633 = vadd.f32 0.0, %v1632
        %v1634 = vpop.f32.mrb[0].mxu0
        %v1635 = vadd.f32 0.0, %v1634
        %v1636 = vpop.f32.mrb[0].mxu0
        %v1637 = vadd.f32 0.0, %v1636
        %v1638 = vpop.f32.mrb[0].mxu0
        %v1639 = vadd.f32 0.0, %v1638
        %1640 = vdwg.mxu0
        %v1641 = vadd.f32 %v1633, %v1635
        %v1642 = vadd.f32 %v1641, %v1637
        %v1643 = vadd.f32 %v1642, %v1639
        %1644 = vadd.xlane.f32.xlu0 %v1643
        %v1645 = vpop.xlane.xlu0 %1644
        %v1646 = vrot.slane %v1645, 4
        %v1647 = vadd.f32 %v1645, %v1646
        %v1648 = vrot.slane %v1647, 2
        %v1649 = vadd.f32 %v1647, %v1648
        %v1650 = vrot.slane %v1649, 1
        %v1651 = vadd.f32 %v1649, %v1650
        %s1652 = vtos %v1651
        %v1653 = vrcp.pop 4096.0
        %s1654 = vtos %v1653
        %s1655 = smul.f32 %s1652, %s1654
        %v1656 = vstv %s1655
        %v1657 = vsub.f32 %v1633, %v1656
        %v1658 = vsub.f32 %v1635, %v1656
        %v1659 = vsub.f32 %v1637, %v1656
        %v1660 = vsub.f32 %v1639, %v1656
        %v1661 = vmul.f32 %v1657, %v1657
        %v1662 = vmul.f32 %v1658, %v1658
        %v1663 = vmul.f32 %v1659, %v1659
        %v1664 = vmul.f32 %v1660, %v1660
        %v1665 = vadd.f32 %v1661, %v1662
        %v1666 = vadd.f32 %v1665, %v1663
        %v1667 = vadd.f32 %v1666, %v1664
        %1668 = vadd.xlane.f32.xlu0 %v1667
        %v1669 = vpop.xlane.xlu0 %1668
        %v1670 = vrot.slane %v1669, 4
        %v1671 = vadd.f32 %v1669, %v1670
        %v1672 = vrot.slane %v1671, 2
        %v1673 = vadd.f32 %v1671, %v1672
        %v1674 = vrot.slane %v1673, 1
        %v1675 = vadd.f32 %v1673, %v1674
        %s1676 = vtos %v1675
        %v1677 = vrcp.pop 4096.0
        %s1678 = vtos %v1677
        %s1679 = smul.f32 %s1676, %s1678
        %s1680 = sadd.f32 %s1679, 1e-05
        %v1681 = vstv %s1680
        %v1682 = vrsqrt.pop %v1681
        %s1683 = vtos %v1682
        %v1684 = vstv %s1683
        %v1685 = vmul.f32 %v1657, %v1684
        %v1686 = vmul.f32 %v1658, %v1684
        %v1687 = vmul.f32 %v1659, %v1684
        %v1688 = vmul.f32 %v1660, %v1684
        %v1689 = vld [vmem:[%s7] sm:$0xff]
        %v1690 = vld [vmem:[%s7 + $0x8] sm:$0xff]
        %1692 = vset.pattern.permute.xlu0 0
        %1693 = vperm.xlu0 %1692, %v1689
        %v1694 = vpop.permute.xlu0 %1693
        %1697 = vset.pattern.permute.xlu0 0
        %1698 = vperm.xlu0 %1697, %v1690
        %v1699 = vpop.permute.xlu0 %1698
        %v1701 = vmul.f32 %v1685, %v1694
        %v1702 = vmul.f32 %v1686, %v1694
        %v1703 = vmul.f32 %v1687, %v1699
        %v1704 = vmul.f32 %v1688, %v1699
        %v1705 = vld [vmem:[%s8] sm:$0xff]
        %v1706 = vld [vmem:[%s8 + $0x8] sm:$0xff]
        %1708 = vset.pattern.permute.xlu0 0
        %1709 = vperm.xlu0 %1708, %v1705
        %v1710 = vpop.permute.xlu0 %1709
        %1713 = vset.pattern.permute.xlu0 0
        %1714 = vperm.xlu0 %1713, %v1706
        %v1715 = vpop.permute.xlu0 %1714
        %v1717 = vadd.f32 %v1701, %v1710
        %v1718 = vadd.f32 %v1702, %v1710
        %v1719 = vadd.f32 %v1703, %v1715
        %v1720 = vadd.f32 %v1704, %v1715
        %v1721 = vadd.f32 %v624, %v1717
        %v1722 = vadd.f32 %v625, %v1718
        %v1723 = vadd.f32 %v626, %v1719
        %v1724 = vadd.f32 %v627, %v1720
        %v1725 = vmul.f32 %v1721, 0.5
        %v1726 = vmul.f32 %v1722, 0.5
        %v1727 = vmul.f32 %v1723, 0.5
        %v1728 = vmul.f32 %v1724, 0.5
        %v1729 = vmul.f32 %v1721, 0.70710677
        %v1730 = vmul.f32 %v1722, 0.70710677
        %v1731 = vmul.f32 %v1723, 0.70710677
        %v1732 = vmul.f32 %v1724, 0.70710677
        %v1733 = vand.u32 2147483647, %v1729
        %v1734 = vand.u32 2147483647, %v1730
        %v1735 = vand.u32 2147483647, %v1731
        %v1736 = vand.u32 2147483647, %v1732
        %v1737 = vmul.f32 %v1733, 0.3275911
        %v1738 = vmul.f32 %v1734, 0.3275911
        %v1739 = vmul.f32 %v1735, 0.3275911
        %v1740 = vmul.f32 %v1736, 0.3275911
        %v1741 = vadd.f32 %v1737, 1.0
        %v1742 = vadd.f32 %v1738, 1.0
        %v1743 = vadd.f32 %v1739, 1.0
        %v1744 = vadd.f32 %v1740, 1.0
        %v1745 = vrcp.pop %v1741
        %v1746 = vmul.f32 1.0, %v1745
        %v1747 = vrcp.pop %v1742
        %v1748 = vmul.f32 1.0, %v1747
        %v1749 = vrcp.pop %v1743
        %v1750 = vmul.f32 1.0, %v1749
        %v1751 = vrcp.pop %v1744
        %v1752 = vmul.f32 1.0, %v1751
        %v1753 = vmul.f32 %v1746, 1.0614054
        %v1754 = vmul.f32 %v1748, 1.0614054
        %v1755 = vmul.f32 %v1750, 1.0614054
        %v1756 = vmul.f32 %v1752, 1.0614054
        %v1757 = vadd.f32 %v1753, -1.4531521
        %v1758 = vadd.f32 %v1754, -1.4531521
        %v1759 = vadd.f32 %v1755, -1.4531521
        %v1760 = vadd.f32 %v1756, -1.4531521
        %v1761 = vmul.f32 %v1746, %v1757
        %v1762 = vmul.f32 %v1748, %v1758
        %v1763 = vmul.f32 %v1750, %v1759
        %v1764 = vmul.f32 %v1752, %v1760
        %v1765 = vadd.f32 %v1761, 1.4214138
        %v1766 = vadd.f32 %v1762, 1.4214138
        %v1767 = vadd.f32 %v1763, 1.4214138
        %v1768 = vadd.f32 %v1764, 1.4214138
        %v1769 = vmul.f32 %v1746, %v1765
        %v1770 = vmul.f32 %v1748, %v1766
        %v1771 = vmul.f32 %v1750, %v1767
        %v1772 = vmul.f32 %v1752, %v1768
        %v1773 = vadd.f32 %v1769, -0.28449672
        %v1774 = vadd.f32 %v1770, -0.28449672
        %v1775 = vadd.f32 %v1771, -0.28449672
        %v1776 = vadd.f32 %v1772, -0.28449672
        %v1777 = vmul.f32 %v1746, %v1773
        %v1778 = vmul.f32 %v1748, %v1774
        %v1779 = vmul.f32 %v1750, %v1775
        %v1780 = vmul.f32 %v1752, %v1776
        %v1781 = vadd.f32 %v1777, 0.2548296
        %v1782 = vadd.f32 %v1778, 0.2548296
        %v1783 = vadd.f32 %v1779, 0.2548296
        %v1784 = vadd.f32 %v1780, 0.2548296
        %v1785 = vmul.f32 %v1746, %v1781
        %v1786 = vmul.f32 %v1748, %v1782
        %v1787 = vmul.f32 %v1750, %v1783
        %v1788 = vmul.f32 %v1752, %v1784
        %v1789 = vsub.f32 0.0, %v1733
        %v1790 = vsub.f32 0.0, %v1734
        %v1791 = vsub.f32 0.0, %v1735
        %v1792 = vsub.f32 0.0, %v1736
        %v1793 = vmul.f32 %v1789, %v1733
        %v1794 = vmul.f32 %v1790, %v1734
        %v1795 = vmul.f32 %v1791, %v1735
        %v1796 = vmul.f32 %v1792, %v1736
        %v1797 = vmul.f32 %v1793, 1.442695
        %v1798 = vpow.pop %v1797
        %v1799 = vmul.f32 %v1794, 1.442695
        %v1800 = vpow.pop %v1799
        %v1801 = vmul.f32 %v1795, 1.442695
        %v1802 = vpow.pop %v1801
        %v1803 = vmul.f32 %v1796, 1.442695
        %v1804 = vpow.pop %v1803
        %v1805 = vmul.f32 %v1785, %v1798
        %v1806 = vmul.f32 %v1786, %v1800
        %v1807 = vmul.f32 %v1787, %v1802
        %v1808 = vmul.f32 %v1788, %v1804
        %v1809 = vsub.f32 1.0, %v1805
        %v1810 = vsub.f32 1.0, %v1806
        %v1811 = vsub.f32 1.0, %v1807
        %v1812 = vsub.f32 1.0, %v1808
        %vm1813 = vcmp.lt.f32.partialorder %v1729, 0.0
        %vm1814 = vcmp.lt.f32.partialorder %v1730, 0.0
        %vm1815 = vcmp.lt.f32.partialorder %v1731, 0.0
        %vm1816 = vcmp.lt.f32.partialorder %v1732, 0.0
        %v1817 = vsub.f32 0.0, %v1809
        %v1818 = vsub.f32 0.0, %v1810
        %v1819 = vsub.f32 0.0, %v1811
        %v1820 = vsub.f32 0.0, %v1812
        %v1821 = vsel %vm1813, %v1817, %v1809
        %v1822 = vsel %vm1814, %v1818, %v1810
        %v1823 = vsel %vm1815, %v1819, %v1811
        %v1824 = vsel %vm1816, %v1820, %v1812
        %v1825 = vadd.f32 %v1821, 1.0
        %v1826 = vadd.f32 %v1822, 1.0
        %v1827 = vadd.f32 %v1823, 1.0
        %v1828 = vadd.f32 %v1824, 1.0
        %v1829 = vmul.f32 %v1725, %v1825
        %v1830 = vmul.f32 %v1726, %v1826
        %v1831 = vmul.f32 %v1727, %v1827
        %v1832 = vmul.f32 %v1728, %v1828
        %1837 = vrot.lane.b32.xlu0 %v1829, 17
        %v1838 = vpop.permute.xlu0 %1837
        %1839 = vrot.lane.b32.xlu0 %v1830, 17
        %v1840 = vpop.permute.xlu0 %1839
        %1841 = vrot.lane.b32.xlu0 %v1831, 17
        %v1842 = vpop.permute.xlu0 %1841
        %1843 = vrot.lane.b32.xlu0 %v1832, 17
        %v1844 = vpop.permute.xlu0 %1843
        %v1845 = vsel %vm628, %v1838, %v1840
        %v1846 = vsel %vm628, %v1842, %v1844
        %1853 = vst.msk [vmem:[#allocation3] sm:$0xff] %vm685, %v1838
        %1854 = vst [vmem:[#allocation3 + $0x8] sm:$0xff] %v1845
        %1855 = vst.msk [vmem:[#allocation3 + $0x10] sm:$0xff] %vm628, %v1840
        %1856 = vst.msk [vmem:[#allocation3 + $0x18] sm:$0xff] %vm685, %v1842
        %1857 = vst [vmem:[#allocation3 + $0x20] sm:$0xff] %v1846
        %1858 = vst.msk [vmem:[#allocation3 + $0x28] sm:$0xff] %vm628, %v1844
        %v1859 = vld [vmem:[#allocation3] sm:$0xff]
        %v1860 = vld [vmem:[#allocation3 + $0x8] sm:$0xff]
        %v1861 = vld [vmem:[#allocation3 + $0x18] sm:$0xff]
        %v1862 = vld [vmem:[#allocation3 + $0x20] sm:$0xff]
        %v1863 = vsel %vm698, %v1859, 0.0
        %v1864 = vsel %vm699, %v1860, 0.0
        %v1865 = vsel %vm698, %v1861, 0.0
        %v1866 = vsel %vm699, %v1862, 0.0
        %v1867 = vpack.c.bf16 %v1865, %v1863
        %v1868 = vpack.c.bf16 %v1866, %v1864
        %1869 = vst [vmem:[#allocation4] sm:$0xff] %v1867
        %1870 = vst [vmem:[#allocation4 + $0x8] sm:$0xff] %v1868
        %v1871 = vld [vmem:[#allocation3] sm:$0xff]
        %v1872 = vld [vmem:[#allocation3 + $0x8] sm:$0xff]
        %v1873 = vld [vmem:[#allocation3 + $0x10] sm:$0xff]
        %v1874 = vld [vmem:[#allocation3 + $0x18] sm:$0xff]
        %v1875 = vld [vmem:[#allocation3 + $0x20] sm:$0xff]
        %v1876 = vld [vmem:[#allocation3 + $0x28] sm:$0xff]
        %v1877 = vpack.c.bf16 %v1874, %v1871
        %v1878 = vpack.c.bf16 %v1875, %v1872
        %v1879 = vpack.c.bf16 %v1876, %v1873
        %1883 = vrot.lane.b32.xlu0 %v1877, 127
        %v1884 = vpop.permute.xlu0 %1883
        %1885 = vrot.lane.b32.xlu0 %v1878, 127
        %v1886 = vpop.permute.xlu0 %1885
        %1887 = vrot.lane.b32.xlu0 %v1879, 127
        %v1888 = vpop.permute.xlu0 %1887
        %v1889 = vsel %vm726, %v1884, %v1886
        %v1890 = vsel %vm726, %v1886, %v1888
        %1893 = vst [vmem:[#allocation4 + $0x10] sm:$0xff] %v1889
        %1894 = vst [vmem:[#allocation4 + $0x18] sm:$0xff] %v1890
        %v1895 = vld [vmem:[#allocation3] sm:$0xff]
        %v1896 = vld [vmem:[#allocation3 + $0x8] sm:$0xff]
        %v1897 = vld [vmem:[#allocation3 + $0x10] sm:$0xff]
        %v1898 = vld [vmem:[#allocation3 + $0x18] sm:$0xff]
        %v1899 = vld [vmem:[#allocation3 + $0x20] sm:$0xff]
        %v1900 = vld [vmem:[#allocation3 + $0x28] sm:$0xff]
        %1907 = vrot.lane.b32.xlu0 %v1895, 126
        %v1908 = vpop.permute.xlu0 %1907
        %1909 = vrot.lane.b32.xlu0 %v1896, 126
        %v1910 = vpop.permute.xlu0 %1909
        %1911 = vrot.lane.b32.xlu0 %v1897, 126
        %v1912 = vpop.permute.xlu0 %1911
        %1913 = vrot.lane.b32.xlu0 %v1898, 126
        %v1914 = vpop.permute.xlu0 %1913
        %1915 = vrot.lane.b32.xlu0 %v1899, 126
        %v1916 = vpop.permute.xlu0 %1915
        %1917 = vrot.lane.b32.xlu0 %v1900, 126
        %v1918 = vpop.permute.xlu0 %1917
        %v1919 = vsel %vm761, %v1908, %v1910
        %v1920 = vsel %vm761, %v1910, %v1912
        %v1921 = vsel %vm761, %v1914, %v1916
        %v1922 = vsel %vm761, %v1916, %v1918
        %v1927 = vsel %vm741, %v1919, 0.0
        %v1928 = vsel %vm742, %v1920, 0.0
        %v1929 = vsel %vm741, %v1921, 0.0
        %v1930 = vsel %vm742, %v1922, 0.0
        %v1931 = vpack.c.bf16 %v1929, %v1927
        %v1932 = vpack.c.bf16 %v1930, %v1928
        %1933 = vst [vmem:[#allocation4 + $0x20] sm:$0xff] %v1931
        %1934 = vst [vmem:[#allocation4 + $0x28] sm:$0xff] %v1932
        %v1935 = vld [vmem:[#allocation3] sm:$0xff]
        %v1936 = vld [vmem:[#allocation3 + $0x8] sm:$0xff]
        %v1937 = vld [vmem:[#allocation3 + $0x10] sm:$0xff]
        %v1938 = vld [vmem:[#allocation3 + $0x18] sm:$0xff]
        %v1939 = vld [vmem:[#allocation3 + $0x20] sm:$0xff]
        %v1940 = vld [vmem:[#allocation3 + $0x28] sm:$0xff]
        %1947 = vrot.lane.b32.xlu0 %v1935, 112
        %v1948 = vpop.permute.xlu0 %1947
        %1949 = vrot.lane.b32.xlu0 %v1936, 112
        %v1950 = vpop.permute.xlu0 %1949
        %1951 = vrot.lane.b32.xlu0 %v1937, 112
        %v1952 = vpop.permute.xlu0 %1951
        %1953 = vrot.lane.b32.xlu0 %v1938, 112
        %v1954 = vpop.permute.xlu0 %1953
        %1955 = vrot.lane.b32.xlu0 %v1939, 112
        %v1956 = vpop.permute.xlu0 %1955
        %1957 = vrot.lane.b32.xlu0 %v1940, 112
        %v1958 = vpop.permute.xlu0 %1957
        %v1959 = vsel %vm802, %v1948, %v1950
        %v1960 = vsel %vm802, %v1950, %v1952
        %v1961 = vsel %vm802, %v1954, %v1956
        %v1962 = vsel %vm802, %v1956, %v1958
        %v1967 = vsel %vm698, %v1959, 0.0
        %v1968 = vsel %vm699, %v1960, 0.0
        %v1969 = vsel %vm698, %v1961, 0.0
        %v1970 = vsel %vm699, %v1962, 0.0
        %v1971 = vpack.c.bf16 %v1969, %v1967
        %v1972 = vpack.c.bf16 %v1970, %v1968
        %1973 = vst [vmem:[#allocation4 + $0x30] sm:$0xff] %v1971
        %1974 = vst [vmem:[#allocation4 + $0x38] sm:$0xff] %v1972
        %v1975 = vld [vmem:[#allocation3] sm:$0xff]
        %v1976 = vld [vmem:[#allocation3 + $0x8] sm:$0xff]
        %v1977 = vld [vmem:[#allocation3 + $0x10] sm:$0xff]
        %v1978 = vld [vmem:[#allocation3 + $0x18] sm:$0xff]
        %v1979 = vld [vmem:[#allocation3 + $0x20] sm:$0xff]
        %v1980 = vld [vmem:[#allocation3 + $0x28] sm:$0xff]
        %v1981 = vpack.c.bf16 %v1978, %v1975
        %v1982 = vpack.c.bf16 %v1979, %v1976
        %v1983 = vpack.c.bf16 %v1980, %v1977
        %1987 = vrot.lane.b32.xlu0 %v1981, 111
        %v1988 = vpop.permute.xlu0 %1987
        %1989 = vrot.lane.b32.xlu0 %v1982, 111
        %v1990 = vpop.permute.xlu0 %1989
        %1991 = vrot.lane.b32.xlu0 %v1983, 111
        %v1992 = vpop.permute.xlu0 %1991
        %v1993 = vsel %vm837, %v1988, %v1990
        %v1994 = vsel %vm837, %v1990, %v1992
        %1997 = vst [vmem:[#allocation4 + $0x40] sm:$0xff] %v1993
        %1998 = vst [vmem:[#allocation4 + $0x48] sm:$0xff] %v1994
        %v1999 = vld [vmem:[#allocation3] sm:$0xff]
        %v2000 = vld [vmem:[#allocation3 + $0x8] sm:$0xff]
        %v2001 = vld [vmem:[#allocation3 + $0x10] sm:$0xff]
        %v2002 = vld [vmem:[#allocation3 + $0x18] sm:$0xff]
        %v2003 = vld [vmem:[#allocation3 + $0x20] sm:$0xff]
        %v2004 = vld [vmem:[#allocation3 + $0x28] sm:$0xff]
        %2011 = vrot.lane.b32.xlu0 %v1999, 110
        %v2012 = vpop.permute.xlu0 %2011
        %2013 = vrot.lane.b32.xlu0 %v2000, 110
        %v2014 = vpop.permute.xlu0 %2013
        %2015 = vrot.lane.b32.xlu0 %v2001, 110
        %v2016 = vpop.permute.xlu0 %2015
        %2017 = vrot.lane.b32.xlu0 %v2002, 110
        %v2018 = vpop.permute.xlu0 %2017
        %2019 = vrot.lane.b32.xlu0 %v2003, 110
        %v2020 = vpop.permute.xlu0 %2019
        %2021 = vrot.lane.b32.xlu0 %v2004, 110
        %v2022 = vpop.permute.xlu0 %2021
        %v2023 = vsel %vm868, %v2012, %v2014
        %v2024 = vsel %vm868, %v2014, %v2016
        %v2025 = vsel %vm868, %v2018, %v2020
        %v2026 = vsel %vm868, %v2020, %v2022
        %v2031 = vsel %vm741, %v2023, 0.0
        %v2032 = vsel %vm742, %v2024, 0.0
        %v2033 = vsel %vm741, %v2025, 0.0
        %v2034 = vsel %vm742, %v2026, 0.0
        %v2035 = vpack.c.bf16 %v2033, %v2031
        %v2036 = vpack.c.bf16 %v2034, %v2032
        %2037 = vst [vmem:[#allocation4 + $0x50] sm:$0xff] %v2035
        %2038 = vst [vmem:[#allocation4 + $0x58] sm:$0xff] %v2036
        %v2039 = vld [vmem:[#allocation3] sm:$0xff]
        %v2040 = vld [vmem:[#allocation3 + $0x8] sm:$0xff]
        %v2041 = vld [vmem:[#allocation3 + $0x10] sm:$0xff]
        %v2042 = vld [vmem:[#allocation3 + $0x18] sm:$0xff]
        %v2043 = vld [vmem:[#allocation3 + $0x20] sm:$0xff]
        %v2044 = vld [vmem:[#allocation3 + $0x28] sm:$0xff]
        %2051 = vrot.lane.b32.xlu0 %v2039, 96
        %v2052 = vpop.permute.xlu0 %2051
        %2053 = vrot.lane.b32.xlu0 %v2040, 96
        %v2054 = vpop.permute.xlu0 %2053
        %2055 = vrot.lane.b32.xlu0 %v2041, 96
        %v2056 = vpop.permute.xlu0 %2055
        %2057 = vrot.lane.b32.xlu0 %v2042, 96
        %v2058 = vpop.permute.xlu0 %2057
        %2059 = vrot.lane.b32.xlu0 %v2043, 96
        %v2060 = vpop.permute.xlu0 %2059
        %2061 = vrot.lane.b32.xlu0 %v2044, 96
        %v2062 = vpop.permute.xlu0 %2061
        %v2063 = vsel %vm909, %v2052, %v2054
        %v2064 = vsel %vm909, %v2054, %v2056
        %v2065 = vsel %vm909, %v2058, %v2060
        %v2066 = vsel %vm909, %v2060, %v2062
        %v2071 = vsel %vm698, %v2063, 0.0
        %v2072 = vsel %vm699, %v2064, 0.0
        %v2073 = vsel %vm698, %v2065, 0.0
        %v2074 = vsel %vm699, %v2066, 0.0
        %v2075 = vpack.c.bf16 %v2073, %v2071
        %v2076 = vpack.c.bf16 %v2074, %v2072
        %2077 = vst [vmem:[#allocation4 + $0x60] sm:$0xff] %v2075
        %2078 = vst [vmem:[#allocation4 + $0x68] sm:$0xff] %v2076
        %v2079 = vld [vmem:[#allocation3] sm:$0xff]
        %v2080 = vld [vmem:[#allocation3 + $0x8] sm:$0xff]
        %v2081 = vld [vmem:[#allocation3 + $0x10] sm:$0xff]
        %v2082 = vld [vmem:[#allocation3 + $0x18] sm:$0xff]
        %v2083 = vld [vmem:[#allocation3 + $0x20] sm:$0xff]
        %v2084 = vld [vmem:[#allocation3 + $0x28] sm:$0xff]
        %v2085 = vpack.c.bf16 %v2082, %v2079
        %v2086 = vpack.c.bf16 %v2083, %v2080
        %v2087 = vpack.c.bf16 %v2084, %v2081
        %2091 = vrot.lane.b32.xlu0 %v2085, 95
        %v2092 = vpop.permute.xlu0 %2091
        %2093 = vrot.lane.b32.xlu0 %v2086, 95
        %v2094 = vpop.permute.xlu0 %2093
        %2095 = vrot.lane.b32.xlu0 %v2087, 95
        %v2096 = vpop.permute.xlu0 %2095
        %v2097 = vsel %vm944, %v2092, %v2094
        %v2098 = vsel %vm944, %v2094, %v2096
        %2101 = vst [vmem:[#allocation4 + $0x70] sm:$0xff] %v2097
        %2102 = vst [vmem:[#allocation4 + $0x78] sm:$0xff] %v2098
        %v2103 = vld [vmem:[#allocation3] sm:$0xff]
        %v2104 = vld [vmem:[#allocation3 + $0x8] sm:$0xff]
        %v2105 = vld [vmem:[#allocation3 + $0x10] sm:$0xff]
        %v2106 = vld [vmem:[#allocation3 + $0x18] sm:$0xff]
        %v2107 = vld [vmem:[#allocation3 + $0x20] sm:$0xff]
        %v2108 = vld [vmem:[#allocation3 + $0x28] sm:$0xff]
        %2115 = vrot.lane.b32.xlu0 %v2103, 94
        %v2116 = vpop.permute.xlu0 %2115
        %2117 = vrot.lane.b32.xlu0 %v2104, 94
        %v2118 = vpop.permute.xlu0 %2117
        %2119 = vrot.lane.b32.xlu0 %v2105, 94
        %v2120 = vpop.permute.xlu0 %2119
        %2121 = vrot.lane.b32.xlu0 %v2106, 94
        %v2122 = vpop.permute.xlu0 %2121
        %2123 = vrot.lane.b32.xlu0 %v2107, 94
        %v2124 = vpop.permute.xlu0 %2123
        %2125 = vrot.lane.b32.xlu0 %v2108, 94
        %v2126 = vpop.permute.xlu0 %2125
        %v2127 = vsel %vm975, %v2116, %v2118
        %v2128 = vsel %vm975, %v2118, %v2120
        %v2129 = vsel %vm975, %v2122, %v2124
        %v2130 = vsel %vm975, %v2124, %v2126
        %v2135 = vsel %vm741, %v2127, 0.0
        %v2136 = vsel %vm742, %v2128, 0.0
        %v2137 = vsel %vm741, %v2129, 0.0
        %v2138 = vsel %vm742, %v2130, 0.0
        %v2139 = vpack.c.bf16 %v2137, %v2135
        %v2140 = vpack.c.bf16 %v2138, %v2136
        %2141 = vst [vmem:[#allocation4 + $0x80] sm:$0xff] %v2139
        %2142 = vst [vmem:[#allocation4 + $0x88] sm:$0xff] %v2140
        %v2143 = vld [vmem:[%s9] sm:$0xff]
        %v2144 = vld [vmem:[#allocation4] sm:$0xff]
        %v2145 = vld [vmem:[#allocation4 + $0x8] sm:$0xff]
        %v2146 = vld [vmem:[#allocation4 + $0x10] sm:$0xff]
        %v2147 = vld [vmem:[#allocation4 + $0x18] sm:$0xff]
        %v2148 = vld [vmem:[#allocation4 + $0x20] sm:$0xff]
        %v2149 = vld [vmem:[#allocation4 + $0x28] sm:$0xff]
        %v2150 = vld [vmem:[#allocation4 + $0x30] sm:$0xff]
        %v2151 = vld [vmem:[#allocation4 + $0x38] sm:$0xff]
        %v2152 = vld [vmem:[#allocation4 + $0x40] sm:$0xff]
        %v2153 = vld [vmem:[#allocation4 + $0x48] sm:$0xff]
        %v2154 = vld [vmem:[#allocation4 + $0x50] sm:$0xff]
        %v2155 = vld [vmem:[#allocation4 + $0x58] sm:$0xff]
        %v2156 = vld [vmem:[#allocation4 + $0x60] sm:$0xff]
        %v2157 = vld [vmem:[#allocation4 + $0x68] sm:$0xff]
        %v2158 = vld [vmem:[#allocation4 + $0x70] sm:$0xff]
        %v2159 = vld [vmem:[#allocation4 + $0x78] sm:$0xff]
        %v2160 = vld [vmem:[#allocation4 + $0x80] sm:$0xff]
        %v2161 = vld [vmem:[#allocation4 + $0x88] sm:$0xff]
        %v2163 = vunpack.c.l.b16 %v2143
        %v2164 = vunpack.c.h.b16 %v2143
        %v2165 = vpack.c.b16 %v2163, %v2163
        %v2166 = vpack.c.b16 %v2164, %v2164
        %v2169 = vsel %vm1021, %v2166, 0
        %2171 = vmatprep.subr.bf16.mxu0 %v2145
        %2172 = vmatpush1.bf16.msra.mxu0 %v2144
        %2173 = vmatprep.subr.bf16.mxu0 %v2147
        %2174 = vmatpush1.bf16.msra.mxu0 %v2146
        %2175 = vmatprep.subr.bf16.mxu0 %v2149
        %2176 = vmatpush1.bf16.msra.mxu0 %v2148
        %2177 = vmatprep.subr.bf16.mxu0 %v2151
        %2178 = vmatpush1.bf16.msra.mxu0 %v2150
        %2179 = vmatprep.subr.bf16.mxu0 %v2153
        %2180 = vmatpush1.bf16.msra.mxu0 %v2152
        %2181 = vmatprep.subr.bf16.mxu0 %v2155
        %2182 = vmatpush1.bf16.msra.mxu0 %v2154
        %2183 = vmatprep.subr.bf16.mxu0 %v2157
        %2184 = vmatpush1.bf16.msra.mxu0 %v2156
        %2185 = vmatprep.subr.bf16.mxu0 %v2159
        %2186 = vmatpush1.bf16.msra.mxu0 %v2158
        %2187 = vmatprep.subr.bf16.mxu0 %v2161
        %2188 = vmatpush1.bf16.msra.mxu0 %v2160
        %2189 = vmatprep.subr.bf16.mxu0 0
        %2190 = vmatpush1.bf16.msra.mxu0 0
        %2191 = vmatprep.subr.bf16.mxu0 0
        %2192 = vmatpush1.bf16.msra.mxu0 0
        %2193 = vmatprep.subr.bf16.mxu0 0
        %2194 = vmatpush1.bf16.msra.mxu0 0
        %2195 = vmatprep.subr.bf16.mxu0 0
        %2196 = vmatpush1.bf16.msra.mxu0 0
        %2197 = vmatprep.subr.bf16.mxu0 0
        %2198 = vmatpush1.bf16.msra.mxu0 0
        %2199 = vmatprep.subr.bf16.mxu0 0
        %2200 = vmatpush1.bf16.msra.mxu0 0
        %2201 = vmatprep.subr.bf16.mxu0 0
        %2202 = vmatpush1.bf16.msra.mxu0 0
        %2203 = vmatprep.mubr.bf16.mxu0 %v2169
        %2204 = vmatmul.mubr.bf16.gmra.mrb[0].mxu0 %v2165
        %v2205 = vpop.f32.mrb[0].mxu0
        %v2206 = vadd.f32 0.0, %v2205
        %v2207 = vpop.f32.mrb[0].mxu0
        %v2208 = vadd.f32 0.0, %v2207
        %v2209 = vpop.f32.mrb[0].mxu0
        %v2210 = vpop.f32.mrb[0].mxu0
        %2211 = vdwg.mxu0
        %v2212 = vadd.f32 %v2206, %v2208
        %2213 = vadd.xlane.f32.xlu0 %v2212
        %v2214 = vpop.xlane.xlu0 %2213
        %v2215 = vrot.slane %v2214, 4
        %v2216 = vadd.f32 %v2214, %v2215
        %v2217 = vrot.slane %v2216, 2
        %v2218 = vadd.f32 %v2216, %v2217
        %v2219 = vrot.slane %v2218, 1
        %v2220 = vadd.f32 %v2218, %v2219
        %s2221 = vtos %v2220
        %v2222 = vrcp.pop 2048.0
        %s2223 = vtos %v2222
        %s2224 = smul.f32 %s2221, %s2223
        %v2225 = vstv %s2224
        %v2226 = vsub.f32 %v2206, %v2225
        %v2227 = vsub.f32 %v2208, %v2225
        %v2228 = vmul.f32 %v2226, %v2226
        %v2229 = vmul.f32 %v2227, %v2227
        %v2230 = vadd.f32 %v2228, %v2229
        %2231 = vadd.xlane.f32.xlu0 %v2230
        %v2232 = vpop.xlane.xlu0 %2231
        %v2233 = vrot.slane %v2232, 4
        %v2234 = vadd.f32 %v2232, %v2233
        %v2235 = vrot.slane %v2234, 2
        %v2236 = vadd.f32 %v2234, %v2235
        %v2237 = vrot.slane %v2236, 1
        %v2238 = vadd.f32 %v2236, %v2237
        %s2239 = vtos %v2238
        %v2240 = vrcp.pop 2048.0
        %s2241 = vtos %v2240
        %s2242 = smul.f32 %s2239, %s2241
        %s2243 = sadd.f32 %s2242, 1e-05
        %v2244 = vstv %s2243
        %v2245 = vrsqrt.pop %v2244
        %s2246 = vtos %v2245
        %v2247 = vstv %s2246
        %v2248 = vmul.f32 %v2226, %v2247
        %v2249 = vmul.f32 %v2227, %v2247
        %v2250 = vld [vmem:[%s10] sm:$0xff]
        %2252 = vset.pattern.permute.xlu0 0
        %2253 = vperm.xlu0 %2252, %v2250
        %v2254 = vpop.permute.xlu0 %2253
        %v2256 = vmul.f32 %v2248, %v2254
        %v2257 = vmul.f32 %v2249, %v2254
        %v2258 = vld [vmem:[%s11] sm:$0xff]
        %2260 = vset.pattern.permute.xlu0 0
        %2261 = vperm.xlu0 %2260, %v2258
        %v2262 = vpop.permute.xlu0 %2261
        %v2264 = vadd.f32 %v2256, %v2262
        %v2265 = vadd.f32 %v2257, %v2262
        %v2266 = vmul.f32 %v2264, 0.5
        %v2267 = vmul.f32 %v2265, 0.5
        %v2268 = vmul.f32 %v2264, 0.70710677
        %v2269 = vmul.f32 %v2265, 0.70710677
        %v2270 = vand.u32 2147483647, %v2268
        %v2271 = vand.u32 2147483647, %v2269
        %v2272 = vmul.f32 %v2270, 0.3275911
        %v2273 = vmul.f32 %v2271, 0.3275911
        %v2274 = vadd.f32 %v2272, 1.0
        %v2275 = vadd.f32 %v2273, 1.0
        %v2276 = vrcp.pop %v2274
        %v2277 = vmul.f32 1.0, %v2276
        %v2278 = vrcp.pop %v2275
        %v2279 = vmul.f32 1.0, %v2278
        %v2280 = vmul.f32 %v2277, 1.0614054
        %v2281 = vmul.f32 %v2279, 1.0614054
        %v2282 = vadd.f32 %v2280, -1.4531521
        %v2283 = vadd.f32 %v2281, -1.4531521
        %v2284 = vmul.f32 %v2277, %v2282
        %v2285 = vmul.f32 %v2279, %v2283
        %v2286 = vadd.f32 %v2284, 1.4214138
        %v2287 = vadd.f32 %v2285, 1.4214138
        %v2288 = vmul.f32 %v2277, %v2286
        %v2289 = vmul.f32 %v2279, %v2287
        %v2290 = vadd.f32 %v2288, -0.28449672
        %v2291 = vadd.f32 %v2289, -0.28449672
        %v2292 = vmul.f32 %v2277, %v2290
        %v2293 = vmul.f32 %v2279, %v2291
        %v2294 = vadd.f32 %v2292, 0.2548296
        %v2295 = vadd.f32 %v2293, 0.2548296
        %v2296 = vmul.f32 %v2277, %v2294
        %v2297 = vmul.f32 %v2279, %v2295
        %v2298 = vsub.f32 0.0, %v2270
        %v2299 = vsub.f32 0.0, %v2271
        %v2300 = vmul.f32 %v2298, %v2270
        %v2301 = vmul.f32 %v2299, %v2271
        %v2302 = vmul.f32 %v2300, 1.442695
        %v2303 = vpow.pop %v2302
        %v2304 = vmul.f32 %v2301, 1.442695
        %v2305 = vpow.pop %v2304
        %v2306 = vmul.f32 %v2296, %v2303
        %v2307 = vmul.f32 %v2297, %v2305
        %v2308 = vsub.f32 1.0, %v2306
        %v2309 = vsub.f32 1.0, %v2307
        %vm2310 = vcmp.lt.f32.partialorder %v2268, 0.0
        %vm2311 = vcmp.lt.f32.partialorder %v2269, 0.0
        %v2312 = vsub.f32 0.0, %v2308
        %v2313 = vsub.f32 0.0, %v2309
        %v2314 = vsel %vm2310, %v2312, %v2308
        %v2315 = vsel %vm2311, %v2313, %v2309
        %v2316 = vadd.f32 %v2314, 1.0
        %v2317 = vadd.f32 %v2315, 1.0
        %v2318 = vmul.f32 %v2266, %v2316
        %v2319 = vmul.f32 %v2267, %v2317
        %2322 = vrot.lane.b32.xlu0 %v2318, 17
        %v2323 = vpop.permute.xlu0 %2322
        %2324 = vrot.lane.b32.xlu0 %v2319, 17
        %v2325 = vpop.permute.xlu0 %2324
        %v2326 = vsel %vm628, %v2323, %v2325
        %2330 = vst.msk [vmem:[#allocation3] sm:$0xff] %vm685, %v2323
        %2331 = vst [vmem:[#allocation3 + $0x8] sm:$0xff] %v2326
        %2332 = vst.msk [vmem:[#allocation3 + $0x10] sm:$0xff] %vm628, %v2325
        %v2333 = vld [vmem:[#allocation3] sm:$0xff]
        %v2334 = vld [vmem:[#allocation3 + $0x8] sm:$0xff]
        %v2335 = vsel %vm698, %v2333, 0.0
        %v2336 = vsel %vm699, %v2334, 0.0
        %v2337 = vpack.c.bf16 %v2335, %v2335
        %v2338 = vpack.c.bf16 %v2336, %v2336
        %2339 = vst [vmem:[#allocation4] sm:$0xf] %v2337
        %2340 = vst [vmem:[#allocation4 + $0x8] sm:$0xf] %v2338
        %v2341 = vld [vmem:[#allocation3] sm:$0xff]
        %v2342 = vld [vmem:[#allocation3 + $0x8] sm:$0xff]
        %v2343 = vld [vmem:[#allocation3 + $0x10] sm:$0xff]
        %v2344 = vpack.c.bf16 %v2341, %v2341
        %v2345 = vpack.c.bf16 %v2342, %v2342
        %v2346 = vpack.c.bf16 %v2343, %v2343
        %v2350 = vrot.slane %v2344, 4
        %v2351 = vrot.slane %v2345, 4
        %v2352 = vrot.slane %v2346, 4
        %2353 = vrot.lane.b32.xlu0 %v2350, 127
        %v2354 = vpop.permute.xlu0 %2353
        %2355 = vrot.lane.b32.xlu0 %v2351, 127
        %v2356 = vpop.permute.xlu0 %2355
        %2357 = vrot.lane.b32.xlu0 %v2352, 127
        %v2358 = vpop.permute.xlu0 %2357
        %v2359 = vsel %vm726, %v2354, %v2356
        %v2360 = vsel %vm726, %v2356, %v2358
        %2363 = vst [vmem:[#allocation4] sm:$0xf0] %v2359
        %2364 = vst [vmem:[#allocation4 + $0x8] sm:$0xf0] %v2360
        %v2365 = vld [vmem:[#allocation3] sm:$0xff]
        %v2366 = vld [vmem:[#allocation3 + $0x8] sm:$0xff]
        %v2367 = vld [vmem:[#allocation3 + $0x10] sm:$0xff]
        %2371 = vrot.lane.b32.xlu0 %v2365, 126
        %v2372 = vpop.permute.xlu0 %2371
        %2373 = vrot.lane.b32.xlu0 %v2366, 126
        %v2374 = vpop.permute.xlu0 %2373
        %2375 = vrot.lane.b32.xlu0 %v2367, 126
        %v2376 = vpop.permute.xlu0 %2375
        %v2377 = vsel %vm761, %v2372, %v2374
        %v2378 = vsel %vm761, %v2374, %v2376
        %v2381 = vsel %vm741, %v2377, 0.0
        %v2382 = vsel %vm742, %v2378, 0.0
        %v2383 = vpack.c.bf16 %v2381, %v2381
        %v2384 = vpack.c.bf16 %v2382, %v2382
        %2385 = vst [vmem:[#allocation4 + $0x10] sm:$0xf] %v2383
        %2386 = vst [vmem:[#allocation4 + $0x18] sm:$0xf] %v2384
        %v2387 = vld [vmem:[#allocation3] sm:$0xff]
        %v2388 = vld [vmem:[#allocation3 + $0x8] sm:$0xff]
        %v2389 = vld [vmem:[#allocation3 + $0x10] sm:$0xff]
        %2393 = vrot.lane.b32.xlu0 %v2387, 112
        %v2394 = vpop.permute.xlu0 %2393
        %2395 = vrot.lane.b32.xlu0 %v2388, 112
        %v2396 = vpop.permute.xlu0 %2395
        %2397 = vrot.lane.b32.xlu0 %v2389, 112
        %v2398 = vpop.permute.xlu0 %2397
        %v2399 = vsel %vm802, %v2394, %v2396
        %v2400 = vsel %vm802, %v2396, %v2398
        %v2403 = vsel %vm698, %v2399, 0.0
        %v2404 = vsel %vm699, %v2400, 0.0
        %v2405 = vpack.c.bf16 %v2403, %v2403
        %v2406 = vpack.c.bf16 %v2404, %v2404
        %v2409 = vrot.slane %v2405, 4
        %v2410 = vrot.slane %v2406, 4
        %2413 = vst [vmem:[#allocation4 + $0x10] sm:$0xf0] %v2409
        %2414 = vst [vmem:[#allocation4 + $0x18] sm:$0xf0] %v2410
        %v2415 = vld [vmem:[#allocation3] sm:$0xff]
        %v2416 = vld [vmem:[#allocation3 + $0x8] sm:$0xff]
        %v2417 = vld [vmem:[#allocation3 + $0x10] sm:$0xff]
        %v2418 = vpack.c.bf16 %v2415, %v2415
        %v2419 = vpack.c.bf16 %v2416, %v2416
        %v2420 = vpack.c.bf16 %v2417, %v2417
        %2424 = vrot.lane.b32.xlu0 %v2418, 111
        %v2425 = vpop.permute.xlu0 %2424
        %2426 = vrot.lane.b32.xlu0 %v2419, 111
        %v2427 = vpop.permute.xlu0 %2426
        %2428 = vrot.lane.b32.xlu0 %v2420, 111
        %v2429 = vpop.permute.xlu0 %2428
        %v2430 = vsel %vm837, %v2425, %v2427
        %v2431 = vsel %vm837, %v2427, %v2429
        %2434 = vst [vmem:[#allocation4 + $0x20] sm:$0xf] %v2430
        %2435 = vst [vmem:[#allocation4 + $0x28] sm:$0xf] %v2431
        %v2436 = vld [vmem:[#allocation3] sm:$0xff]
        %v2437 = vld [vmem:[#allocation3 + $0x8] sm:$0xff]
        %v2438 = vld [vmem:[#allocation3 + $0x10] sm:$0xff]
        %2442 = vrot.lane.b32.xlu0 %v2436, 110
        %v2443 = vpop.permute.xlu0 %2442
        %2444 = vrot.lane.b32.xlu0 %v2437, 110
        %v2445 = vpop.permute.xlu0 %2444
        %2446 = vrot.lane.b32.xlu0 %v2438, 110
        %v2447 = vpop.permute.xlu0 %2446
        %v2448 = vsel %vm868, %v2443, %v2445
        %v2449 = vsel %vm868, %v2445, %v2447
        %v2452 = vsel %vm741, %v2448, 0.0
        %v2453 = vsel %vm742, %v2449, 0.0
        %v2454 = vpack.c.bf16 %v2452, %v2452
        %v2455 = vpack.c.bf16 %v2453, %v2453
        %v2458 = vrot.slane %v2454, 4
        %v2459 = vrot.slane %v2455, 4
        %2462 = vst [vmem:[#allocation4 + $0x20] sm:$0xf0] %v2458
        %2463 = vst [vmem:[#allocation4 + $0x28] sm:$0xf0] %v2459
        %v2464 = vld [vmem:[#allocation3] sm:$0xff]
        %v2465 = vld [vmem:[#allocation3 + $0x8] sm:$0xff]
        %v2466 = vld [vmem:[#allocation3 + $0x10] sm:$0xff]
        %2470 = vrot.lane.b32.xlu0 %v2464, 96
        %v2471 = vpop.permute.xlu0 %2470
        %2472 = vrot.lane.b32.xlu0 %v2465, 96
        %v2473 = vpop.permute.xlu0 %2472
        %2474 = vrot.lane.b32.xlu0 %v2466, 96
        %v2475 = vpop.permute.xlu0 %2474
        %v2476 = vsel %vm909, %v2471, %v2473
        %v2477 = vsel %vm909, %v2473, %v2475
        %v2480 = vsel %vm698, %v2476, 0.0
        %v2481 = vsel %vm699, %v2477, 0.0
        %v2482 = vpack.c.bf16 %v2480, %v2480
        %v2483 = vpack.c.bf16 %v2481, %v2481
        %2484 = vst [vmem:[#allocation4 + $0x30] sm:$0xf] %v2482
        %2485 = vst [vmem:[#allocation4 + $0x38] sm:$0xf] %v2483
        %v2486 = vld [vmem:[#allocation3] sm:$0xff]
        %v2487 = vld [vmem:[#allocation3 + $0x8] sm:$0xff]
        %v2488 = vld [vmem:[#allocation3 + $0x10] sm:$0xff]
        %v2489 = vpack.c.bf16 %v2486, %v2486
        %v2490 = vpack.c.bf16 %v2487, %v2487
        %v2491 = vpack.c.bf16 %v2488, %v2488
        %v2495 = vrot.slane %v2489, 4
        %v2496 = vrot.slane %v2490, 4
        %v2497 = vrot.slane %v2491, 4
        %2498 = vrot.lane.b32.xlu0 %v2495, 95
        %v2499 = vpop.permute.xlu0 %2498
        %2500 = vrot.lane.b32.xlu0 %v2496, 95
        %v2501 = vpop.permute.xlu0 %2500
        %2502 = vrot.lane.b32.xlu0 %v2497, 95
        %v2503 = vpop.permute.xlu0 %2502
        %v2504 = vsel %vm944, %v2499, %v2501
        %v2505 = vsel %vm944, %v2501, %v2503
        %2508 = vst [vmem:[#allocation4 + $0x30] sm:$0xf0] %v2504
        %2509 = vst [vmem:[#allocation4 + $0x38] sm:$0xf0] %v2505
        %v2510 = vld [vmem:[#allocation3] sm:$0xff]
        %v2511 = vld [vmem:[#allocation3 + $0x8] sm:$0xff]
        %v2512 = vld [vmem:[#allocation3 + $0x10] sm:$0xff]
        %2516 = vrot.lane.b32.xlu0 %v2510, 94
        %v2517 = vpop.permute.xlu0 %2516
        %2518 = vrot.lane.b32.xlu0 %v2511, 94
        %v2519 = vpop.permute.xlu0 %2518
        %2520 = vrot.lane.b32.xlu0 %v2512, 94
        %v2521 = vpop.permute.xlu0 %2520
        %v2522 = vsel %vm975, %v2517, %v2519
        %v2523 = vsel %vm975, %v2519, %v2521
        %v2526 = vsel %vm741, %v2522, 0.0
        %v2527 = vsel %vm742, %v2523, 0.0
        %v2528 = vpack.c.bf16 %v2526, %v2526
        %v2529 = vpack.c.bf16 %v2527, %v2527
        %2530 = vst [vmem:[#allocation4 + $0x40] sm:$0xf] %v2528
        %2531 = vst [vmem:[#allocation4 + $0x48] sm:$0xf] %v2529
        %v2532 = vld [vmem:[%s12] sm:$0xf]
        %v2533 = vld [vmem:[#allocation4] sm:$0xff]
        %v2534 = vld [vmem:[#allocation4 + $0x8] sm:$0xff]
        %v2535 = vld [vmem:[#allocation4 + $0x10] sm:$0xff]
        %v2536 = vld [vmem:[#allocation4 + $0x18] sm:$0xff]
        %v2537 = vld [vmem:[#allocation4 + $0x20] sm:$0xff]
        %v2538 = vld [vmem:[#allocation4 + $0x28] sm:$0xff]
        %v2539 = vld [vmem:[#allocation4 + $0x30] sm:$0xff]
        %v2540 = vld [vmem:[#allocation4 + $0x38] sm:$0xff]
        %v2541 = vld [vmem:[#allocation4 + $0x40] sm:$0xf]
        %v2542 = vld [vmem:[#allocation4 + $0x48] sm:$0xf]
        %vm2543 = vcmask 588800
        %v2545 = vsel %vm2543, %v2532, 0
        %vm2547 = vcmask 1043456
        %v2549 = vsel %vm2547, %v2541, 0
        %v2552 = vsel %vm2547, %v2542, 0
        %2554 = vmatprep.subr.bf16.mxu0 %v2534
        %2555 = vmatpush1.bf16.msra.mxu0 %v2533
        %2556 = vmatprep.subr.bf16.mxu0 %v2536
        %2557 = vmatpush1.bf16.msra.mxu0 %v2535
        %2558 = vmatprep.subr.bf16.mxu0 %v2538
        %2559 = vmatpush1.bf16.msra.mxu0 %v2537
        %2560 = vmatprep.subr.bf16.mxu0 %v2540
        %2561 = vmatpush1.bf16.msra.mxu0 %v2539
        %2562 = vmatprep.subr.bf16.mxu0 %v2552
        %2563 = vmatpush1.bf16.msra.mxu0 %v2549
        %2564 = vmatprep.subr.bf16.mxu0 0
        %2565 = vmatpush1.bf16.msra.mxu0 0
        %2566 = vmatprep.subr.bf16.mxu0 0
        %2567 = vmatpush1.bf16.msra.mxu0 0
        %2568 = vmatprep.subr.bf16.mxu0 0
        %2569 = vmatpush1.bf16.msra.mxu0 0
        %2570 = vmatprep.subr.bf16.mxu0 0
        %2571 = vmatpush1.bf16.msra.mxu0 0
        %2572 = vmatprep.subr.bf16.mxu0 0
        %2573 = vmatpush1.bf16.msra.mxu0 0
        %2574 = vmatprep.subr.bf16.mxu0 0
        %2575 = vmatpush1.bf16.msra.mxu0 0
        %2576 = vmatprep.subr.bf16.mxu0 0
        %2577 = vmatpush1.bf16.msra.mxu0 0
        %2578 = vmatprep.subr.bf16.mxu0 0
        %2579 = vmatpush1.bf16.msra.mxu0 0
        %2580 = vmatprep.subr.bf16.mxu0 0
        %2581 = vmatpush1.bf16.msra.mxu0 0
        %2582 = vmatprep.subr.bf16.mxu0 0
        %2583 = vmatpush1.bf16.msra.mxu0 0
        %2584 = vmatprep.subr.bf16.mxu0 0
        %2585 = vmatpush1.bf16.msra.mxu0 0
        %2586 = vmatprep.mubr.bf16.mxu0 0
        %2587 = vmatmul.mubr.bf16.gmra.mrb[0].mxu0 %v2545
        %v2588 = vpop.f32.mrb[0].mxu0
        %v2589 = vadd.f32 0.0, %v2588
        %v2590 = vpop.f32.mrb[0].mxu0
        %v2591 = vadd.f32 0.0, %v2590
        %v2592 = vpop.f32.mrb[0].mxu0
        %v2593 = vpop.f32.mrb[0].mxu0
        %2594 = vdwg.mxu0
        %v2595 = vadd.f32 %v2589, %v2591
        %2596 = vadd.xlane.f32.xlu0 %v2595
        %v2597 = vpop.xlane.xlu0 %2596
        %v2598 = vrot.slane %v2597, 4
        %v2599 = vadd.f32 %v2597, %v2598
        %v2600 = vrot.slane %v2599, 2
        %v2601 = vadd.f32 %v2599, %v2600
        %v2602 = vrot.slane %v2601, 1
        %v2603 = vadd.f32 %v2601, %v2602
        %s2604 = vtos %v2603
        %v2605 = vrcp.pop 2048.0
        %s2606 = vtos %v2605
        %s2607 = smul.f32 %s2604, %s2606
        %v2608 = vstv %s2607
        %v2609 = vsub.f32 %v2589, %v2608
        %v2610 = vsub.f32 %v2591, %v2608
        %v2611 = vmul.f32 %v2609, %v2609
        %v2612 = vmul.f32 %v2610, %v2610
        %v2613 = vadd.f32 %v2611, %v2612
        %2614 = vadd.xlane.f32.xlu0 %v2613
        %v2615 = vpop.xlane.xlu0 %2614
        %v2616 = vrot.slane %v2615, 4
        %v2617 = vadd.f32 %v2615, %v2616
        %v2618 = vrot.slane %v2617, 2
        %v2619 = vadd.f32 %v2617, %v2618
        %v2620 = vrot.slane %v2619, 1
        %v2621 = vadd.f32 %v2619, %v2620
        %s2622 = vtos %v2621
        %v2623 = vrcp.pop 2048.0
        %s2624 = vtos %v2623
        %s2625 = smul.f32 %s2622, %s2624
        %s2626 = sadd.f32 %s2625, 1e-05
        %v2627 = vstv %s2626
        %v2628 = vrsqrt.pop %v2627
        %s2629 = vtos %v2628
        %v2630 = vstv %s2629
        %v2631 = vmul.f32 %v2609, %v2630
        %v2632 = vmul.f32 %v2610, %v2630
        %v2633 = vld [vmem:[%s13] sm:$0xff]
        %2635 = vset.pattern.permute.xlu0 0
        %2636 = vperm.xlu0 %2635, %v2633
        %v2637 = vpop.permute.xlu0 %2636
        %v2639 = vmul.f32 %v2631, %v2637
        %v2640 = vmul.f32 %v2632, %v2637
        %v2641 = vld [vmem:[%s14] sm:$0xff]
        %2643 = vset.pattern.permute.xlu0 0
        %2644 = vperm.xlu0 %2643, %v2641
        %v2645 = vpop.permute.xlu0 %2644
        %v2647 = vadd.f32 %v2639, %v2645
        %v2648 = vadd.f32 %v2640, %v2645
        %2649 = vst [vmem:[%s515] sm:$0xff] %v2647
        %2650 = vst [vmem:[%s515 + $0x8] sm:$0xff] %v2648
        %s2651 = sand.u32 %s363, 1
        %s2652 = scalar_lea.sflag [#allocation7], %s2651
        %s2653 = sand.u32 %s363, 1
        %s2654 = smul.addr %s2653, 16
        %s2655 = scalar_lea.vmem [#allocation8], %s2654
        // Predicated region
        $region85: #{tpu_custom_call.1} parent=79 // pred_check
          %p2656 = pneg %p373
        $region86: #{tpu_custom_call.1} parent=79 // pred_check_branch
          %2658 = sbr.rel (%p2656) target = $region88
        $region87: #{tpu_custom_call.1} parent=79 // pred_region
          %s2660 = ssub.s32 256, 256
          %2661 = vsyncadd %s2652, %s2660
          %s2662 = smul.addr %s30, 2
          %s2663 = smul.addr %s2662, 128
          %s2664 = scalar_lea.hbm %s15, %s2663
          %s2666 = sshll.u32 %s2655, 4
          %s2667 = int_to_ptr.vmem [resolvable:$true] %s2666
          %2669 = dma.vmem_to_hbm [thread:$0]  %s2667, 256, %s2664, %s2652
        $region88: #{tpu_custom_call.1} parent=79 // pred_fallthru
          _
      $region80: #{tpu_custom_call.1} parent=5 // pred_fallthru
        _
      %p2670 = scmp.le.s32.totalorder 2, %s25
      // Predicated region
      $region89: #{tpu_custom_call.1} parent=5 // pred_check
        %p2671 = pneg %p2670
      $region90: #{tpu_custom_call.1} parent=5 // pred_check_branch
        %2673 = sbr.rel (%p2671) target = $region92
      $region91: #{tpu_custom_call.1} parent=5 // pred_region
        %s2674 = ssub.s32 %s25, 2
        // Predicated region
        $region93: #{tpu_custom_call.1} parent=91 // pred_check
          %p2675 = pneg %p379
        $region94: #{tpu_custom_call.1} parent=91 // pred_check_branch
          %2677 = sbr.rel (%p2675) target = $region96
        $region95: #{tpu_custom_call.1} parent=91 // pred_region
          %s2678 = sand.u32 %s364, 1
          %s2679 = scalar_lea.sflag [#allocation7], %s2678
          %s2680 = sand.u32 %s364, 1
          %s2681 = smul.addr %s2680, 16
          %s2682 = scalar_lea.vmem [#allocation8], %s2681
          %2683 = dma.done %s2679, 256
        $region96: #{tpu_custom_call.1} parent=91 // pred_fallthru
          _
      $region92: #{tpu_custom_call.1} parent=5 // pred_fallthru
        _
    $region6: #{tpu_custom_call.1} parent=1 // loop_footer
      %s29 = sadd.s32 1, %s25
    $region7: #{tpu_custom_call.1} parent=1 // loop_footer_branch
      %24 = sbr.rel target = $region3
    $region8: #{tpu_custom_call.1} parent=1 // loop_exit
      _
    %2684 = vsyncpa [#allocation6], 1
    %s2685 = scalar_lea.sflag [#allocation6], 1
    %2686 = vsyncpa %s2685, 1
    %2687 = vsyncpa [#allocation7], 1
    %s2688 = scalar_lea.sflag [#allocation7], 1
    %2689 = vsyncpa %s2688, 1

</llo_original>
